<compile_context>
chip_gen: v7x
topology: tpu7x:2x2x1
jax: 0.10.0
libtpu: 0.0.40
codegen_flags: <defaults>
</compile_context>

<pallas_src>
import functools

import jax
import jax.numpy as jnp
from jax.experimental import pallas as pl
from jax.experimental.pallas import tpu as pltpu


def _round_up(x, m):
    return ((x + m - 1) // m) * m


# ----------------------------------------------------------------------------
# Kernel A (gridded over batch chunks):
#   conv1 -> ReLU -> conv2 -> maxpool -> flatten -> fc1  (per chunk)
# ----------------------------------------------------------------------------
def _feature_kernel(x_ref, m_ref, w1_ref, b1_ref, w2_ref, b2_ref, v1_ref, bfc1_ref,
                    z_ref, ap_ref, p1_ref, p2_ref, f_ref,
                    *, Bc, H, W, C_in, C1, C2, rpt2, pad):
    f32 = jnp.float32
    HW = H * W
    NN = Bc * HW
    Cslab = ap_ref.shape[0]

    # Zero only what must be zero (done every grid step so the kernel is correct under
    # any megacore split): the two pad-column strips of the activation slab (conv taps
    # and the pool read them).  The payload region is fully overwritten before each use.
    ap_ref[:, 0:pad] = jnp.zeros((Cslab, pad), f32)
    ap_ref[:, pad + NN:pad + NN + pad] = jnp.zeros((Cslab, pad), f32)

    def build_patches(group, p_ref):
        # im2col: tap k occupies rows [k*group, (k+1)*group) of p_ref; taps that fall
        # into the conv's zero padding are zeroed via the precomputed masks in m_ref
        # (center tap needs no mask).  Only live slab rows are read.
        for k in range(9):
            dy, dx = k // 3 - 1, k % 3 - 1
            delta = dy * W + dx
            sl = ap_ref[0:group, pad + delta:pad + delta + NN]
            if dy == 0 and dx == 0:
                p_ref[k * group:(k + 1) * group, :] = sl
            else:
                mrow = k if k < 4 else k - 1
                p_ref[k * group:(k + 1) * group, :] = sl * m_ref[mrow:mrow + 1, :]

    # ---- conv1 (3x3, pad 1) + ReLU (the module's back-to-back ReLUs are idempotent) ----
    ap_ref[0:C_in, pad:pad + NN] = x_ref[...]
    build_patches(C_in, p1_ref)                       # dense: K1 = 9*C_in rows, all live
    y1 = jnp.dot(w1_ref[...], p1_ref[...], preferred_element_type=f32) + b1_ref[...]
    y1 = jnp.maximum(y1, 0.0)                         # (C1, NN)

    # ---- conv2 (3x3, pad 1) ----
    # Slab rows C1..rpt2-1 feed conv2's aligned 8-row tap stores as zeros (the packed
    # weight is zero there too), so zero just those rows instead of the whole p2 slab.
    if C1 < rpt2:
        ap_ref[C1:rpt2, :] = jnp.zeros((rpt2 - C1, NN + 2 * pad), f32)
    ap_ref[0:C1, pad:pad + NN] = y1
    build_patches(rpt2, p2_ref)                       # per-tap padded: aligned stores
    y2 = jnp.dot(w2_ref[...], p2_ref[...], preferred_element_type=f32) + b2_ref[...]   # (C2, NN)

    # ---- MaxPool2d(2, 2): shift + max on the slab; only even-(h, w) columns are
    #      consumed downstream (the folded fc1 weight is zero for all other columns). ----
    ap_ref[0:C2, pad:pad + NN] = y2
    t = jnp.maximum(
        jnp.maximum(y2, ap_ref[0:C2, pad + 1:pad + 1 + NN]),
        jnp.maximum(ap_ref[0:C2, pad + W:pad + W + NN],
                    ap_ref[0:C2, pad + W + 1:pad + W + 1 + NN]))

    # ---- pool-flatten (batch-independent layout): f[b, c*HW + s] = t[c, b*HW + s] ----
    for b in range(Bc):
        for c in range(C2):
            f_ref[b:b + 1, c * HW:(c + 1) * HW] = t[c:c + 1, b * HW:(b + 1) * HW]

    # ---- fc1 for this batch chunk: ONE MXU matmul vs the batch-independent weight ----
    z_ref[...] = (jnp.dot(f_ref[...], v1_ref[...], preferred_element_type=f32)
                  + bfc1_ref[...])


# ----------------------------------------------------------------------------
# Kernel B (no grid): BatchNorm1d (training-mode batch stats) -> ReLU -> fc2
# ----------------------------------------------------------------------------
def _classifier_kernel(z_ref, g_ref, be_ref, w3_ref, b3_ref, o_ref):
    z = z_ref[...]
    mean = jnp.mean(z, axis=0, keepdims=True)
    zc = z - mean
    var = jnp.mean(zc * zc, axis=0, keepdims=True)          # biased variance, eps=1e-5
    zn = g_ref[...] * (zc * jax.lax.rsqrt(var + 1e-5)) + be_ref[...]
    zn = jnp.maximum(zn, 0.0)
    o_ref[...] = jnp.dot(zn, w3_ref[...], preferred_element_type=jnp.float32) + b3_ref[...]


# ----------------------------------------------------------------------------
# Wrapper-side weight / mask packing (pure layout plumbing, done once by XLA)
# ----------------------------------------------------------------------------
def _pack_conv_w(w, group, K):
    # (Cout, Cin, 3, 3) torch OIHW -> (Cout, K): tap-major, input-channel minor, each
    # tap's channel block zero-padded to `group` rows (matches the im2col scratch).
    cout, cin, kh, kw = w.shape
    assert (kh, kw) == (3, 3) and cin <= group and 9 * group <= K
    wt = jnp.transpose(w, (0, 2, 3, 1)).reshape(cout, kh * kw, cin)
    wt = jnp.pad(wt, ((0, 0), (0, 0), (0, group - cin))).reshape(cout, kh * kw * group)
    return jnp.pad(wt, ((0, 0), (0, K - kh * kw * group))).astype(jnp.float32)


def _pack_fc1(w_fc1, C2, H, W):
    # Fold the 2x2 max-pool column selection and the NCHW .view() flatten into fc1:
    #   V[c*H*W + h*W + w, j] = w_fc1[j, c*Hp*Wp + (h//2)*Wp + (w//2)]  if h, w both even
    #                         = 0                                       otherwise
    # Batch-independent: O(C2*H*W*hidden) bytes regardless of batch size.
    Hp, Wp = H // 2, W // 2
    s = jnp.arange(H * W)
    hh, ww = s // W, s % W
    sel = ((hh % 2 == 0) & (ww % 2 == 0)).astype(jnp.float32)           # (H*W,)
    m_base = (hh // 2) * Wp + (ww // 2)                                  # (H*W,)
    w_t = w_fc1.T.astype(jnp.float32)                                    # (feat_dim, hidden)
    feat_idx = jnp.arange(C2)[:, None] * (Hp * Wp) + m_base[None, :]     # (C2, H*W)
    v = w_t[feat_idx] * sel[None, :, None]                               # (C2, H*W, hidden)
    return v.reshape(C2 * H * W, w_fc1.shape[0])


def _tap_masks(H, W, Bc):
    # Validity (1.0/0.0) of the 8 non-center 3x3 taps under the conv's zero padding of 1,
    # over the flattened per-chunk column index b*H*W + h*W + w.
    s = jnp.arange(H * W)
    hh, ww = s // W, s % W
    rows = []
    for k in range(9):
        if k == 4:
            continue
        dy, dx = k // 3 - 1, k % 3 - 1
        ok = (hh + dy >= 0) & (hh + dy < H) & (ww + dx >= 0) & (ww + dx < W)
        rows.append(ok.astype(jnp.float32))
    return jnp.tile(jnp.stack(rows, axis=0), (1, Bc))                    # (8, Bc*H*W)


# ----------------------------------------------------------------------------
# Full forward pass (n_hidden = 3)
# ----------------------------------------------------------------------------
@functools.partial(jax.jit, static_argnames=("batch_chunk",))
def conv_net_forward(x, params, batch_chunk=None):
    B, C_in, H, W = x.shape
    assert H % 2 == 0 and W % 2 == 0, "MaxPool2d(2,2) folding assumes even H, W"

    w1, w2 = params["w_conv1"], params["w_conv2"]
    C1, C2 = w1.shape[0], w2.shape[0]
    hidden = params["w_fc1"].shape[0]
    n_classes = params["w_fc2"].shape[0]
    HW = H * W
    assert params["w_fc1"].shape[1] == C2 * (H // 2) * (W // 2)

    if batch_chunk is None:
        # Largest divisor of B whose chunk is lane-dense (multiple of 128 columns) and
        # keeps per-step scratch well inside the default scoped-VMEM limits.
        divs = [d for d in range(1, B + 1)
                if B % d == 0 and (d * HW) % 128 == 0 and d * HW <= 8192]
        bc = max(divs) if divs else B
    else:
        bc = int(batch_chunk)
        assert B % bc == 0 and (bc == B or (bc * HW) % 128 == 0)
    nchunk = B // bc

    K1 = 9 * C_in                        # conv1 im2col packed densely
    rpt2 = _round_up(C1, 8)              # conv2 taps padded to aligned 8-row blocks
    K2 = 9 * rpt2
    pad = _round_up(W + 1, 8)            # slab lane padding: just enough for taps + pool
    cslab = max(C_in, C2, rpt2)

    # Wrapper-side layout plumbing only: NCHW -> (channels, B*H*W) slab + packed weights.
    x2 = jnp.transpose(x, (1, 0, 2, 3)).reshape(C_in, B * HW).astype(jnp.float32)
    tapm = _tap_masks(H, W, bc)
    w1p = _pack_conv_w(w1, C_in, K1)
    w2p = _pack_conv_w(w2, rpt2, K2)
    b1 = params["b_conv1"].reshape(C1, 1).astype(jnp.float32)
    b2 = params["b_conv2"].reshape(C2, 1).astype(jnp.float32)
    v1 = _pack_fc1(params["w_fc1"], C2, H, W)
    bfc1 = params["b_fc1"].reshape(1, hidden).astype(jnp.float32)
    gamma = params["gamma"].reshape(1, hidden).astype(jnp.float32)
    beta = params["beta"].reshape(1, hidden).astype(jnp.float32)
    wfc2t = params["w_fc2"].T.astype(jnp.float32)
    bfc2 = params["b_fc2"].reshape(1, n_classes).astype(jnp.float32)

    feat_kernel = functools.partial(
        _feature_kernel, Bc=bc, H=H, W=W, C_in=C_in, C1=C1, C2=C2, rpt2=rpt2, pad=pad)

    z_parts = pl.pallas_call(
        feat_kernel,
        out_shape=jax.ShapeDtypeStruct((nchunk, bc, hidden), jnp.float32),
        grid_spec=pltpu.PrefetchScalarGridSpec(
            num_scalar_prefetch=0,
            grid=(nchunk,),
            in_specs=[
                pl.BlockSpec((C_in, bc * HW), lambda i: (0, i)),      # input chunk
                pl.BlockSpec((8, bc * HW), lambda i: (0, 0)),         # tap masks (resident)
                pl.BlockSpec((C1, K1), lambda i: (0, 0)),
                pl.BlockSpec((C1, 1), lambda i: (0, 0)),
                pl.BlockSpec((C2, K2), lambda i: (0, 0)),
                pl.BlockSpec((C2, 1), lambda i: (0, 0)),
                pl.BlockSpec((C2 * HW, hidden), lambda i: (0, 0)),    # folded fc1 weight
                pl.BlockSpec((1, hidden), lambda i: (0, 0)),
            ],
            out_specs=pl.BlockSpec((None, bc, hidden), lambda i: (i, 0, 0)),
            scratch_shapes=[
                pltpu.VMEM((cslab, bc * HW + 2 * pad), jnp.float32),  # padded act. slab
                pltpu.VMEM((K1, bc * HW), jnp.float32),               # conv1 im2col
                pltpu.VMEM((K2, bc * HW), jnp.float32),               # conv2 im2col
                pltpu.VMEM((bc, C2 * HW), jnp.float32),               # pooled-flat feats
            ]),
        compiler_params=pltpu.CompilerParams(
            dimension_semantics=("parallel",)),
    )(x2, tapm, w1p, b1, w2p, b2, v1, bfc1)

    z = z_parts.reshape(B, hidden)

    # BatchNorm1d needs whole-batch statistics -> tiny second call after the batch grid.
    return pl.pallas_call(
        _classifier_kernel,
        out_shape=jax.ShapeDtypeStruct((B, n_classes), jnp.float32),
    )(z, gamma, beta, wfc2t, bfc2)


# Pure-JAX reference (correctness check for the Pallas kernels).
def reference_forward(x, params):
    def conv(x, w, b):
        y = jax.lax.conv_general_dilated(
            x, w, window_strides=(1, 1), padding="SAME",
            dimension_numbers=("NCHW", "OIHW", "NCHW"))
        return y + b[None, :, None, None]

    h = jax.nn.relu(conv(x, params["w_conv1"], params["b_conv1"]))
    h = jax.nn.relu(h)
    h = conv(h, params["w_conv2"], params["b_conv2"])
    h = jax.lax.reduce_window(h, -jnp.inf, jax.lax.max,
                              (1, 1, 2, 2), (1, 1, 2, 2), "VALID")
    f = h.reshape(h.shape[0], -1)
    z = f @ params["w_fc1"].T + params["b_fc1"]
    mean = jnp.mean(z, axis=0, keepdims=True)
    var = jnp.mean((z - mean) ** 2, axis=0, keepdims=True)
    z = params["gamma"] * ((z - mean) * jax.lax.rsqrt(var + 1e-5)) + params["beta"]
    z = jax.nn.relu(z)
    return z @ params["w_fc2"].T + params["b_fc2"]


if __name__ == "__main__":
    # Small shapes consistent with the module: ch=1, width=5, n_hidden=3.
    B, CH, H, W = 4, 1, 16, 16
    width = 5
    hidden_dim = 32
    n_classes = 10
    feat_dim = (2 * width) * (H // 2) * (W // 2)          # features_dim

    key = jax.random.PRNGKey(0)
    ks = jax.random.split(key, 12)
    x = jax.random.normal(ks[0], (B, CH, H, W), jnp.float32)

    params = {
        "w_conv1": 0.30 * jax.random.normal(ks[1], (width, CH, 3, 3), jnp.float32),
        "b_conv1": 0.10 * jax.random.normal(ks[2], (width,), jnp.float32),
        "w_conv2": 0.20 * jax.random.normal(ks[3], (2 * width, width, 3, 3), jnp.float32),
        "b_conv2": 0.10 * jax.random.normal(ks[4], (2 * width,), jnp.float32),
        "w_fc1":   0.05 * jax.random.normal(ks[5], (hidden_dim, feat_dim), jnp.float32),
        "b_fc1":   0.05 * jax.random.normal(ks[6], (hidden_dim,), jnp.float32),
        "gamma":   1.0 + 0.10 * jax.random.normal(ks[7], (hidden_dim,), jnp.float32),
        "beta":    0.10 * jax.random.normal(ks[8], (hidden_dim,), jnp.float32),
        "w_fc2":   0.05 * jax.random.normal(ks[9], (n_classes, hidden_dim), jnp.float32),
        "b_fc2":   0.05 * jax.random.normal(ks[10], (n_classes,), jnp.float32),
    }

    # batch_chunk=2 -> 2 grid steps of 2 images each (exercises the batch-chunk grid).
    out = conv_net_forward(x, params, batch_chunk=2)
    out = jax.block_until_ready(out)
    assert out.shape == (B, n_classes), out.shape

    ref = jax.block_until_ready(reference_forward(x, params))
    err = float(jnp.max(jnp.abs(out - ref)))
    if not err < 1e-3:
        raise AssertionError(f"Pallas output mismatch vs JAX reference, max |diff| = {err}")

    print("KERNEL_OK")
</pallas_src>

<mosaic_0001>
module attributes {stable_mosaic.version = 11 : i64} {
  func.func @_classifier_kernel(%arg0: memref<4x32xf32, #tpu.memory_space<vmem>>, %arg1: memref<1x32xf32, #tpu.memory_space<vmem>>, %arg2: memref<1x32xf32, #tpu.memory_space<vmem>>, %arg3: memref<32x10xf32, #tpu.memory_space<vmem>>, %arg4: memref<1x10xf32, #tpu.memory_space<vmem>>, %arg5: memref<4x10xf32, #tpu.memory_space<vmem>>) attributes {dimension_semantics = [], scalar_prefetch = 0 : i64, scratch_operands = 0 : i64, tpu.core_type = #tpu.core_type<tc>} {
    %c0 = arith.constant 0 : index
    %c0_0 = arith.constant 0 : index
    %0 = vector.load %arg0[%c0, %c0_0] : memref<4x32xf32, #tpu.memory_space<vmem>>, vector<4x32xf32>
    %cst = arith.constant dense<0.000000e+00> : vector<32xf32>
    %1 = vector.multi_reduction <add>, %0, %cst [0] : vector<4x32xf32> to vector<32xf32>
    %2 = vector.shape_cast %1 : vector<32xf32> to vector<1x32xf32>
    %cst_1 = arith.constant 4.000000e+00 : f32
    %3 = vector.broadcast %cst_1 : f32 to vector<1x32xf32>
    %4 = arith.divf %2, %3 : vector<1x32xf32>
    %5 = vector.broadcast %4 : vector<1x32xf32> to vector<4x32xf32>
    %6 = arith.subf %0, %5 : vector<4x32xf32>
    %7 = arith.mulf %6, %6 : vector<4x32xf32>
    %cst_2 = arith.constant dense<0.000000e+00> : vector<32xf32>
    %8 = vector.multi_reduction <add>, %7, %cst_2 [0] : vector<4x32xf32> to vector<32xf32>
    %9 = vector.shape_cast %8 : vector<32xf32> to vector<1x32xf32>
    %cst_3 = arith.constant 4.000000e+00 : f32
    %10 = vector.broadcast %cst_3 : f32 to vector<1x32xf32>
    %11 = arith.divf %9, %10 : vector<1x32xf32>
    %c0_4 = arith.constant 0 : index
    %c0_5 = arith.constant 0 : index
    %12 = vector.load %arg1[%c0_4, %c0_5] : memref<1x32xf32, #tpu.memory_space<vmem>>, vector<1x32xf32>
    %cst_6 = arith.constant 9.99999974E-6 : f32
    %13 = vector.broadcast %cst_6 : f32 to vector<1x32xf32>
    %14 = arith.addf %11, %13 : vector<1x32xf32>
    %15 = math.rsqrt %14 : vector<1x32xf32>
    %16 = vector.broadcast %15 : vector<1x32xf32> to vector<4x32xf32>
    %17 = arith.mulf %6, %16 : vector<4x32xf32>
    %18 = vector.broadcast %12 : vector<1x32xf32> to vector<4x32xf32>
    %19 = arith.mulf %18, %17 : vector<4x32xf32>
    %c0_7 = arith.constant 0 : index
    %c0_8 = arith.constant 0 : index
    %20 = vector.load %arg2[%c0_7, %c0_8] : memref<1x32xf32, #tpu.memory_space<vmem>>, vector<1x32xf32>
    %21 = vector.broadcast %20 : vector<1x32xf32> to vector<4x32xf32>
    %22 = arith.addf %19, %21 : vector<4x32xf32>
    %cst_9 = arith.constant 0.000000e+00 : f32
    %23 = vector.broadcast %cst_9 : f32 to vector<4x32xf32>
    %24 = arith.maximumf %22, %23 : vector<4x32xf32>
    %c0_10 = arith.constant 0 : index
    %c0_11 = arith.constant 0 : index
    %25 = vector.load %arg3[%c0_10, %c0_11] : memref<32x10xf32, #tpu.memory_space<vmem>>, vector<32x10xf32>
    %cst_12 = arith.constant dense<0.000000e+00> : vector<4x10xf32>
    %26 = tpu.matmul %24, %25, %cst_12 {dimension_numbers = #tpu.dot_dimension_numbers<[1], [0], [0], [1], [0, 0, 1, 1], [], []>} : vector<4x32xf32>, vector<32x10xf32>, vector<4x10xf32> -> vector<4x10xf32>
    %c0_13 = arith.constant 0 : index
    %c0_14 = arith.constant 0 : index
    %27 = vector.load %arg4[%c0_13, %c0_14] : memref<1x10xf32, #tpu.memory_space<vmem>>, vector<1x10xf32>
    %28 = vector.broadcast %27 : vector<1x10xf32> to vector<4x10xf32>
    %29 = arith.addf %26, %28 : vector<4x10xf32>
    %c0_15 = arith.constant 0 : index
    %c0_16 = arith.constant 0 : index
    %30 = vector.load %arg5[%c0_15, %c0_16] : memref<4x10xf32, #tpu.memory_space<vmem>>, vector<4x10xf32>
    tpu.vector_store %arg5[%c0_15, %c0_16], %29 {strides = array<i32>} : memref<4x10xf32, #tpu.memory_space<vmem>>, vector<4x10xf32>,
    return
  }
}

module attributes {stable_mosaic.version = 11 : i64} {
  func.func @_feature_kernel(%arg0: i32, %arg1: memref<1x512xf32, #tpu.memory_space<vmem>>, %arg2: memref<8x512xf32, #tpu.memory_space<vmem>>, %arg3: memref<5x9xf32, #tpu.memory_space<vmem>>, %arg4: memref<5x1xf32, #tpu.memory_space<vmem>>, %arg5: memref<10x72xf32, #tpu.memory_space<vmem>>, %arg6: memref<10x1xf32, #tpu.memory_space<vmem>>, %arg7: memref<2560x32xf32, #tpu.memory_space<vmem>>, %arg8: memref<1x32xf32, #tpu.memory_space<vmem>>, %arg9: memref<1x2x32xf32, #tpu.memory_space<vmem>>, %arg10: memref<10x560xf32, #tpu.memory_space<vmem>>, %arg11: memref<9x512xf32, #tpu.memory_space<vmem>>, %arg12: memref<72x512xf32, #tpu.memory_space<vmem>>, %arg13: memref<2x2560xf32, #tpu.memory_space<vmem>>) attributes {dimension_semantics = [#tpu.dimension_semantics<parallel>], iteration_bounds = array<i64: 2>, scalar_prefetch = 0 : i64, scratch_operands = 4 : i64, tpu.core_type = #tpu.core_type<tc>, window_params = [{transform_indices = @transform_0, window_bounds = array<i64: 1, 512>}, {pipeline_mode = #tpu.pipeline_mode<synchronous>, transform_indices = @transform_1, window_bounds = array<i64: 8, 512>}, {pipeline_mode = #tpu.pipeline_mode<synchronous>, transform_indices = @transform_2, window_bounds = array<i64: 5, 9>}, {pipeline_mode = #tpu.pipeline_mode<synchronous>, transform_indices = @transform_3, window_bounds = array<i64: 5, 1>}, {pipeline_mode = #tpu.pipeline_mode<synchronous>, transform_indices = @transform_4, window_bounds = array<i64: 10, 72>}, {pipeline_mode = #tpu.pipeline_mode<synchronous>, transform_indices = @transform_5, window_bounds = array<i64: 10, 1>}, {pipeline_mode = #tpu.pipeline_mode<synchronous>, transform_indices = @transform_6, window_bounds = array<i64: 2560, 32>}, {pipeline_mode = #tpu.pipeline_mode<synchronous>, transform_indices = @transform_7, window_bounds = array<i64: 1, 32>}, {transform_indices = @transform_8, window_bounds = array<i64: 1, 2, 32>}]} {
    %cst = arith.constant 0.000000e+00 : f32
    %0 = vector.broadcast %cst : f32 to vector<10x24xf32>
    %c0 = arith.constant 0 : index
    %c0_0 = arith.constant 0 : index
    %1 = vector.load %arg10[%c0, %c0_0] : memref<10x560xf32, #tpu.memory_space<vmem>>, vector<10x24xf32>
    tpu.vector_store %arg10[%c0, %c0_0], %0 {strides = array<i32>} : memref<10x560xf32, #tpu.memory_space<vmem>>, vector<10x24xf32>,
    %cst_1 = arith.constant 0.000000e+00 : f32
    %2 = vector.broadcast %cst_1 : f32 to vector<10x24xf32>
    %c0_2 = arith.constant 0 : index
    %c536 = arith.constant 536 : index
    %3 = vector.load %arg10[%c0_2, %c536] : memref<10x560xf32, #tpu.memory_space<vmem>>, vector<10x24xf32>
    tpu.vector_store %arg10[%c0_2, %c536], %2 {strides = array<i32>} : memref<10x560xf32, #tpu.memory_space<vmem>>, vector<10x24xf32>,
    %c0_3 = arith.constant 0 : index
    %c0_4 = arith.constant 0 : index
    %4 = vector.load %arg1[%c0_3, %c0_4] : memref<1x512xf32, #tpu.memory_space<vmem>>, vector<1x512xf32>
    %c0_5 = arith.constant 0 : index
    %c24 = arith.constant 24 : index
    %5 = vector.load %arg10[%c0_5, %c24] : memref<10x560xf32, #tpu.memory_space<vmem>>, vector<1x512xf32>
    tpu.vector_store %arg10[%c0_5, %c24], %4 {strides = array<i32>} : memref<10x560xf32, #tpu.memory_space<vmem>>, vector<1x512xf32>,
    %c0_6 = arith.constant 0 : index
    %c7 = arith.constant 7 : index
    %6 = vector.load %arg10[%c0_6, %c7] : memref<10x560xf32, #tpu.memory_space<vmem>>, vector<1x512xf32>
    %c0_7 = arith.constant 0 : index
    %c0_8 = arith.constant 0 : index
    %7 = vector.load %arg2[%c0_7, %c0_8] : memref<8x512xf32, #tpu.memory_space<vmem>>, vector<1x512xf32>
    %8 = arith.mulf %6, %7 : vector<1x512xf32>
    %c0_9 = arith.constant 0 : index
    %c0_10 = arith.constant 0 : index
    %9 = vector.load %arg11[%c0_9, %c0_10] : memref<9x512xf32, #tpu.memory_space<vmem>>, vector<1x512xf32>
    tpu.vector_store %arg11[%c0_9, %c0_10], %8 {strides = array<i32>} : memref<9x512xf32, #tpu.memory_space<vmem>>, vector<1x512xf32>,
    %c0_11 = arith.constant 0 : index
    %c8 = arith.constant 8 : index
    %10 = vector.load %arg10[%c0_11, %c8] : memref<10x560xf32, #tpu.memory_space<vmem>>, vector<1x512xf32>
    %c1 = arith.constant 1 : index
    %c0_12 = arith.constant 0 : index
    %11 = vector.load %arg2[%c1, %c0_12] : memref<8x512xf32, #tpu.memory_space<vmem>>, vector<1x512xf32>
    %12 = arith.mulf %10, %11 : vector<1x512xf32>
    %c1_13 = arith.constant 1 : index
    %c0_14 = arith.constant 0 : index
    %13 = vector.load %arg11[%c1_13, %c0_14] : memref<9x512xf32, #tpu.memory_space<vmem>>, vector<1x512xf32>
    tpu.vector_store %arg11[%c1_13, %c0_14], %12 {strides = array<i32>} : memref<9x512xf32, #tpu.memory_space<vmem>>, vector<1x512xf32>,
    %c0_15 = arith.constant 0 : index
    %c9 = arith.constant 9 : index
    %14 = vector.load %arg10[%c0_15, %c9] : memref<10x560xf32, #tpu.memory_space<vmem>>, vector<1x512xf32>
    %c2 = arith.constant 2 : index
    %c0_16 = arith.constant 0 : index
    %15 = vector.load %arg2[%c2, %c0_16] : memref<8x512xf32, #tpu.memory_space<vmem>>, vector<1x512xf32>
    %16 = arith.mulf %14, %15 : vector<1x512xf32>
    %c2_17 = arith.constant 2 : index
    %c0_18 = arith.constant 0 : index
    %17 = vector.load %arg11[%c2_17, %c0_18] : memref<9x512xf32, #tpu.memory_space<vmem>>, vector<1x512xf32>
    tpu.vector_store %arg11[%c2_17, %c0_18], %16 {strides = array<i32>} : memref<9x512xf32, #tpu.memory_space<vmem>>, vector<1x512xf32>,
    %c0_19 = arith.constant 0 : index
    %c23 = arith.constant 23 : index
    %18 = vector.load %arg10[%c0_19, %c23] : memref<10x560xf32, #tpu.memory_space<vmem>>, vector<1x512xf32>
    %c3 = arith.constant 3 : index
    %c0_20 = arith.constant 0 : index
    %19 = vector.load %arg2[%c3, %c0_20] : memref<8x512xf32, #tpu.memory_space<vmem>>, vector<1x512xf32>
    %20 = arith.mulf %18, %19 : vector<1x512xf32>
    %c3_21 = arith.constant 3 : index
    %c0_22 = arith.constant 0 : index
    %21 = vector.load %arg11[%c3_21, %c0_22] : memref<9x512xf32, #tpu.memory_space<vmem>>, vector<1x512xf32>
    tpu.vector_store %arg11[%c3_21, %c0_22], %20 {strides = array<i32>} : memref<9x512xf32, #tpu.memory_space<vmem>>, vector<1x512xf32>,
    %c0_23 = arith.constant 0 : index
    %c24_24 = arith.constant 24 : index
    %22 = vector.load %arg10[%c0_23, %c24_24] : memref<10x560xf32, #tpu.memory_space<vmem>>, vector<1x512xf32>
    %c4 = arith.constant 4 : index
    %c0_25 = arith.constant 0 : index
    %23 = vector.load %arg11[%c4, %c0_25] : memref<9x512xf32, #tpu.memory_space<vmem>>, vector<1x512xf32>
    tpu.vector_store %arg11[%c4, %c0_25], %22 {strides = array<i32>} : memref<9x512xf32, #tpu.memory_space<vmem>>, vector<1x512xf32>,
    %c0_26 = arith.constant 0 : index
    %c25 = arith.constant 25 : index
    %24 = vector.load %arg10[%c0_26, %c25] : memref<10x560xf32, #tpu.memory_space<vmem>>, vector<1x512xf32>
    %c4_27 = arith.constant 4 : index
    %c0_28 = arith.constant 0 : index
    %25 = vector.load %arg2[%c4_27, %c0_28] : memref<8x512xf32, #tpu.memory_space<vmem>>, vector<1x512xf32>
    %26 = arith.mulf %24, %25 : vector<1x512xf32>
    %c5 = arith.constant 5 : index
    %c0_29 = arith.constant 0 : index
    %27 = vector.load %arg11[%c5, %c0_29] : memref<9x512xf32, #tpu.memory_space<vmem>>, vector<1x512xf32>
    tpu.vector_store %arg11[%c5, %c0_29], %26 {strides = array<i32>} : memref<9x512xf32, #tpu.memory_space<vmem>>, vector<1x512xf32>,
    %c0_30 = arith.constant 0 : index
    %c39 = arith.constant 39 : index
    %28 = vector.load %arg10[%c0_30, %c39] : memref<10x560xf32, #tpu.memory_space<vmem>>, vector<1x512xf32>
    %c5_31 = arith.constant 5 : index
    %c0_32 = arith.constant 0 : index
    %29 = vector.load %arg2[%c5_31, %c0_32] : memref<8x512xf32, #tpu.memory_space<vmem>>, vector<1x512xf32>
    %30 = arith.mulf %28, %29 : vector<1x512xf32>
    %c6 = arith.constant 6 : index
    %c0_33 = arith.constant 0 : index
    %31 = vector.load %arg11[%c6, %c0_33] : memref<9x512xf32, #tpu.memory_space<vmem>>, vector<1x512xf32>
    tpu.vector_store %arg11[%c6, %c0_33], %30 {strides = array<i32>} : memref<9x512xf32, #tpu.memory_space<vmem>>, vector<1x512xf32>,
    %c0_34 = arith.constant 0 : index
    %c40 = arith.constant 40 : index
    %32 = vector.load %arg10[%c0_34, %c40] : memref<10x560xf32, #tpu.memory_space<vmem>>, vector<1x512xf32>
    %c6_35 = arith.constant 6 : index
    %c0_36 = arith.constant 0 : index
    %33 = vector.load %arg2[%c6_35, %c0_36] : memref<8x512xf32, #tpu.memory_space<vmem>>, vector<1x512xf32>
    %34 = arith.mulf %32, %33 : vector<1x512xf32>
    %c7_37 = arith.constant 7 : index
    %c0_38 = arith.constant 0 : index
    %35 = vector.load %arg11[%c7_37, %c0_38] : memref<9x512xf32, #tpu.memory_space<vmem>>, vector<1x512xf32>
    tpu.vector_store %arg11[%c7_37, %c0_38], %34 {strides = array<i32>} : memref<9x512xf32, #tpu.memory_space<vmem>>, vector<1x512xf32>,
    %c0_39 = arith.constant 0 : index
    %c41 = arith.constant 41 : index
    %36 = vector.load %arg10[%c0_39, %c41] : memref<10x560xf32, #tpu.memory_space<vmem>>, vector<1x512xf32>
    %c7_40 = arith.constant 7 : index
    %c0_41 = arith.constant 0 : index
    %37 = vector.load %arg2[%c7_40, %c0_41] : memref<8x512xf32, #tpu.memory_space<vmem>>, vector<1x512xf32>
    %38 = arith.mulf %36, %37 : vector<1x512xf32>
    %c8_42 = arith.constant 8 : index
    %c0_43 = arith.constant 0 : index
    %39 = vector.load %arg11[%c8_42, %c0_43] : memref<9x512xf32, #tpu.memory_space<vmem>>, vector<1x512xf32>
    tpu.vector_store %arg11[%c8_42, %c0_43], %38 {strides = array<i32>} : memref<9x512xf32, #tpu.memory_space<vmem>>, vector<1x512xf32>,
    %c0_44 = arith.constant 0 : index
    %c0_45 = arith.constant 0 : index
    %40 = vector.load %arg3[%c0_44, %c0_45] : memref<5x9xf32, #tpu.memory_space<vmem>>, vector<5x9xf32>
    %c0_46 = arith.constant 0 : index
    %c0_47 = arith.constant 0 : index
    %41 = vector.load %arg11[%c0_46, %c0_47] : memref<9x512xf32, #tpu.memory_space<vmem>>, vector<9x512xf32>
    %cst_48 = arith.constant dense<0.000000e+00> : vector<5x512xf32>
    %42 = tpu.matmul %40, %41, %cst_48 {dimension_numbers = #tpu.dot_dimension_numbers<[1], [0], [0], [1], [0, 0, 1, 1], [], []>} : vector<5x9xf32>, vector<9x512xf32>, vector<5x512xf32> -> vector<5x512xf32>
    %c0_49 = arith.constant 0 : index
    %c0_50 = arith.constant 0 : index
    %43 = vector.load %arg4[%c0_49, %c0_50] : memref<5x1xf32, #tpu.memory_space<vmem>>, vector<5x1xf32>
    %44 = vector.broadcast %43 : vector<5x1xf32> to vector<5x512xf32>
    %45 = arith.addf %42, %44 : vector<5x512xf32>
    %cst_51 = arith.constant 0.000000e+00 : f32
    %46 = vector.broadcast %cst_51 : f32 to vector<5x512xf32>
    %47 = arith.maximumf %45, %46 : vector<5x512xf32>
    %cst_52 = arith.constant 0.000000e+00 : f32
    %48 = vector.broadcast %cst_52 : f32 to vector<3x560xf32>
    %c5_53 = arith.constant 5 : index
    %c0_54 = arith.constant 0 : index
    %49 = vector.load %arg10[%c5_53, %c0_54] : memref<10x560xf32, #tpu.memory_space<vmem>>, vector<3x560xf32>
    tpu.vector_store %arg10[%c5_53, %c0_54], %48 {strides = array<i32>} : memref<10x560xf32, #tpu.memory_space<vmem>>, vector<3x560xf32>,
    %c0_55 = arith.constant 0 : index
    %c24_56 = arith.constant 24 : index
    %50 = vector.load %arg10[%c0_55, %c24_56] : memref<10x560xf32, #tpu.memory_space<vmem>>, vector<5x512xf32>
    tpu.vector_store %arg10[%c0_55, %c24_56], %47 {strides = array<i32>} : memref<10x560xf32, #tpu.memory_space<vmem>>, vector<5x512xf32>,
    %c0_57 = arith.constant 0 : index
    %c7_58 = arith.constant 7 : index
    %51 = vector.load %arg10[%c0_57, %c7_58] : memref<10x560xf32, #tpu.memory_space<vmem>>, vector<8x512xf32>
    %c0_59 = arith.constant 0 : index
    %c0_60 = arith.constant 0 : index
    %52 = vector.load %arg2[%c0_59, %c0_60] : memref<8x512xf32, #tpu.memory_space<vmem>>, vector<1x512xf32>
    %53 = vector.broadcast %52 : vector<1x512xf32> to vector<8x512xf32>
    %54 = arith.mulf %51, %53 : vector<8x512xf32>
    %c0_61 = arith.constant 0 : index
    %c0_62 = arith.constant 0 : index
    %55 = vector.load %arg12[%c0_61, %c0_62] : memref<72x512xf32, #tpu.memory_space<vmem>>, vector<8x512xf32>
    tpu.vector_store %arg12[%c0_61, %c0_62], %54 {strides = array<i32>} : memref<72x512xf32, #tpu.memory_space<vmem>>, vector<8x512xf32>,
    %c0_63 = arith.constant 0 : index
    %c8_64 = arith.constant 8 : index
    %56 = vector.load %arg10[%c0_63, %c8_64] : memref<10x560xf32, #tpu.memory_space<vmem>>, vector<8x512xf32>
    %c1_65 = arith.constant 1 : index
    %c0_66 = arith.constant 0 : index
    %57 = vector.load %arg2[%c1_65, %c0_66] : memref<8x512xf32, #tpu.memory_space<vmem>>, vector<1x512xf32>
    %58 = vector.broadcast %57 : vector<1x512xf32> to vector<8x512xf32>
    %59 = arith.mulf %56, %58 : vector<8x512xf32>
    %c8_67 = arith.constant 8 : index
    %c0_68 = arith.constant 0 : index
    %60 = vector.load %arg12[%c8_67, %c0_68] : memref<72x512xf32, #tpu.memory_space<vmem>>, vector<8x512xf32>
    tpu.vector_store %arg12[%c8_67, %c0_68], %59 {strides = array<i32>} : memref<72x512xf32, #tpu.memory_space<vmem>>, vector<8x512xf32>,
    %c0_69 = arith.constant 0 : index
    %c9_70 = arith.constant 9 : index
    %61 = vector.load %arg10[%c0_69, %c9_70] : memref<10x560xf32, #tpu.memory_space<vmem>>, vector<8x512xf32>
    %c2_71 = arith.constant 2 : index
    %c0_72 = arith.constant 0 : index
    %62 = vector.load %arg2[%c2_71, %c0_72] : memref<8x512xf32, #tpu.memory_space<vmem>>, vector<1x512xf32>
    %63 = vector.broadcast %62 : vector<1x512xf32> to vector<8x512xf32>
    %64 = arith.mulf %61, %63 : vector<8x512xf32>
    %c16 = arith.constant 16 : index
    %c0_73 = arith.constant 0 : index
    %65 = vector.load %arg12[%c16, %c0_73] : memref<72x512xf32, #tpu.memory_space<vmem>>, vector<8x512xf32>
    tpu.vector_store %arg12[%c16, %c0_73], %64 {strides = array<i32>} : memref<72x512xf32, #tpu.memory_space<vmem>>, vector<8x512xf32>,
    %c0_74 = arith.constant 0 : index
    %c23_75 = arith.constant 23 : index
    %66 = vector.load %arg10[%c0_74, %c23_75] : memref<10x560xf32, #tpu.memory_space<vmem>>, vector<8x512xf32>
    %c3_76 = arith.constant 3 : index
    %c0_77 = arith.constant 0 : index
    %67 = vector.load %arg2[%c3_76, %c0_77] : memref<8x512xf32, #tpu.memory_space<vmem>>, vector<1x512xf32>
    %68 = vector.broadcast %67 : vector<1x512xf32> to vector<8x512xf32>
    %69 = arith.mulf %66, %68 : vector<8x512xf32>
    %c24_78 = arith.constant 24 : index
    %c0_79 = arith.constant 0 : index
    %70 = vector.load %arg12[%c24_78, %c0_79] : memref<72x512xf32, #tpu.memory_space<vmem>>, vector<8x512xf32>
    tpu.vector_store %arg12[%c24_78, %c0_79], %69 {strides = array<i32>} : memref<72x512xf32, #tpu.memory_space<vmem>>, vector<8x512xf32>,
    %c0_80 = arith.constant 0 : index
    %c24_81 = arith.constant 24 : index
    %71 = vector.load %arg10[%c0_80, %c24_81] : memref<10x560xf32, #tpu.memory_space<vmem>>, vector<8x512xf32>
    %c32 = arith.constant 32 : index
    %c0_82 = arith.constant 0 : index
    %72 = vector.load %arg12[%c32, %c0_82] : memref<72x512xf32, #tpu.memory_space<vmem>>, vector<8x512xf32>
    tpu.vector_store %arg12[%c32, %c0_82], %71 {strides = array<i32>} : memref<72x512xf32, #tpu.memory_space<vmem>>, vector<8x512xf32>,
    %c0_83 = arith.constant 0 : index
    %c25_84 = arith.constant 25 : index
    %73 = vector.load %arg10[%c0_83, %c25_84] : memref<10x560xf32, #tpu.memory_space<vmem>>, vector<8x512xf32>
    %c4_85 = arith.constant 4 : index
    %c0_86 = arith.constant 0 : index
    %74 = vector.load %arg2[%c4_85, %c0_86] : memref<8x512xf32, #tpu.memory_space<vmem>>, vector<1x512xf32>
    %75 = vector.broadcast %74 : vector<1x512xf32> to vector<8x512xf32>
    %76 = arith.mulf %73, %75 : vector<8x512xf32>
    %c40_87 = arith.constant 40 : index
    %c0_88 = arith.constant 0 : index
    %77 = vector.load %arg12[%c40_87, %c0_88] : memref<72x512xf32, #tpu.memory_space<vmem>>, vector<8x512xf32>
    tpu.vector_store %arg12[%c40_87, %c0_88], %76 {strides = array<i32>} : memref<72x512xf32, #tpu.memory_space<vmem>>, vector<8x512xf32>,
    %c0_89 = arith.constant 0 : index
    %c39_90 = arith.constant 39 : index
    %78 = vector.load %arg10[%c0_89, %c39_90] : memref<10x560xf32, #tpu.memory_space<vmem>>, vector<8x512xf32>
    %c5_91 = arith.constant 5 : index
    %c0_92 = arith.constant 0 : index
    %79 = vector.load %arg2[%c5_91, %c0_92] : memref<8x512xf32, #tpu.memory_space<vmem>>, vector<1x512xf32>
    %80 = vector.broadcast %79 : vector<1x512xf32> to vector<8x512xf32>
    %81 = arith.mulf %78, %80 : vector<8x512xf32>
    %c48 = arith.constant 48 : index
    %c0_93 = arith.constant 0 : index
    %82 = vector.load %arg12[%c48, %c0_93] : memref<72x512xf32, #tpu.memory_space<vmem>>, vector<8x512xf32>
    tpu.vector_store %arg12[%c48, %c0_93], %81 {strides = array<i32>} : memref<72x512xf32, #tpu.memory_space<vmem>>, vector<8x512xf32>,
    %c0_94 = arith.constant 0 : index
    %c40_95 = arith.constant 40 : index
    %83 = vector.load %arg10[%c0_94, %c40_95] : memref<10x560xf32, #tpu.memory_space<vmem>>, vector<8x512xf32>
    %c6_96 = arith.constant 6 : index
    %c0_97 = arith.constant 0 : index
    %84 = vector.load %arg2[%c6_96, %c0_97] : memref<8x512xf32, #tpu.memory_space<vmem>>, vector<1x512xf32>
    %85 = vector.broadcast %84 : vector<1x512xf32> to vector<8x512xf32>
    %86 = arith.mulf %83, %85 : vector<8x512xf32>
    %c56 = arith.constant 56 : index
    %c0_98 = arith.constant 0 : index
    %87 = vector.load %arg12[%c56, %c0_98] : memref<72x512xf32, #tpu.memory_space<vmem>>, vector<8x512xf32>
    tpu.vector_store %arg12[%c56, %c0_98], %86 {strides = array<i32>} : memref<72x512xf32, #tpu.memory_space<vmem>>, vector<8x512xf32>,
    %c0_99 = arith.constant 0 : index
    %c41_100 = arith.constant 41 : index
    %88 = vector.load %arg10[%c0_99, %c41_100] : memref<10x560xf32, #tpu.memory_space<vmem>>, vector<8x512xf32>
    %c7_101 = arith.constant 7 : index
    %c0_102 = arith.constant 0 : index
    %89 = vector.load %arg2[%c7_101, %c0_102] : memref<8x512xf32, #tpu.memory_space<vmem>>, vector<1x512xf32>
    %90 = vector.broadcast %89 : vector<1x512xf32> to vector<8x512xf32>
    %91 = arith.mulf %88, %90 : vector<8x512xf32>
    %c64 = arith.constant 64 : index
    %c0_103 = arith.constant 0 : index
    %92 = vector.load %arg12[%c64, %c0_103] : memref<72x512xf32, #tpu.memory_space<vmem>>, vector<8x512xf32>
    tpu.vector_store %arg12[%c64, %c0_103], %91 {strides = array<i32>} : memref<72x512xf32, #tpu.memory_space<vmem>>, vector<8x512xf32>,
    %c0_104 = arith.constant 0 : index
    %c0_105 = arith.constant 0 : index
    %93 = vector.load %arg5[%c0_104, %c0_105] : memref<10x72xf32, #tpu.memory_space<vmem>>, vector<10x72xf32>
    %c0_106 = arith.constant 0 : index
    %c0_107 = arith.constant 0 : index
    %94 = vector.load %arg12[%c0_106, %c0_107] : memref<72x512xf32, #tpu.memory_space<vmem>>, vector<72x512xf32>
    %cst_108 = arith.constant dense<0.000000e+00> : vector<10x512xf32>
    %95 = tpu.matmul %93, %94, %cst_108 {dimension_numbers = #tpu.dot_dimension_numbers<[1], [0], [0], [1], [0, 0, 1, 1], [], []>} : vector<10x72xf32>, vector<72x512xf32>, vector<10x512xf32> -> vector<10x512xf32>
    %c0_109 = arith.constant 0 : index
    %c0_110 = arith.constant 0 : index
    %96 = vector.load %arg6[%c0_109, %c0_110] : memref<10x1xf32, #tpu.memory_space<vmem>>, vector<10x1xf32>
    %97 = vector.broadcast %96 : vector<10x1xf32> to vector<10x512xf32>
    %98 = arith.addf %95, %97 : vector<10x512xf32>
    %c0_111 = arith.constant 0 : index
    %c24_112 = arith.constant 24 : index
    %99 = vector.load %arg10[%c0_111, %c24_112] : memref<10x560xf32, #tpu.memory_space<vmem>>, vector<10x512xf32>
    tpu.vector_store %arg10[%c0_111, %c24_112], %98 {strides = array<i32>} : memref<10x560xf32, #tpu.memory_space<vmem>>, vector<10x512xf32>,
    %c0_113 = arith.constant 0 : index
    %c25_114 = arith.constant 25 : index
    %100 = vector.load %arg10[%c0_113, %c25_114] : memref<10x560xf32, #tpu.memory_space<vmem>>, vector<10x512xf32>
    %101 = arith.maximumf %98, %100 : vector<10x512xf32>
    %c0_115 = arith.constant 0 : index
    %c40_116 = arith.constant 40 : index
    %102 = vector.load %arg10[%c0_115, %c40_116] : memref<10x560xf32, #tpu.memory_space<vmem>>, vector<10x512xf32>
    %c0_117 = arith.constant 0 : index
    %c41_118 = arith.constant 41 : index
    %103 = vector.load %arg10[%c0_117, %c41_118] : memref<10x560xf32, #tpu.memory_space<vmem>>, vector<10x512xf32>
    %104 = arith.maximumf %102, %103 : vector<10x512xf32>
    %105 = arith.maximumf %101, %104 : vector<10x512xf32>
    %106 = vector.extract_strided_slice %105 {offsets = [0, 0], sizes = [1, 256], strides = [1, 1]} : vector<10x512xf32> to vector<1x256xf32>
    %c0_119 = arith.constant 0 : index
    %c0_120 = arith.constant 0 : index
    %107 = vector.load %arg13[%c0_119, %c0_120] : memref<2x2560xf32, #tpu.memory_space<vmem>>, vector<1x256xf32>
    tpu.vector_store %arg13[%c0_119, %c0_120], %106 {strides = array<i32>} : memref<2x2560xf32, #tpu.memory_space<vmem>>, vector<1x256xf32>,
    %108 = vector.extract_strided_slice %105 {offsets = [1, 0], sizes = [1, 256], strides = [1, 1]} : vector<10x512xf32> to vector<1x256xf32>
    %c0_121 = arith.constant 0 : index
    %c256 = arith.constant 256 : index
    %109 = vector.load %arg13[%c0_121, %c256] : memref<2x2560xf32, #tpu.memory_space<vmem>>, vector<1x256xf32>
    tpu.vector_store %arg13[%c0_121, %c256], %108 {strides = array<i32>} : memref<2x2560xf32, #tpu.memory_space<vmem>>, vector<1x256xf32>,
    %110 = vector.extract_strided_slice %105 {offsets = [2, 0], sizes = [1, 256], strides = [1, 1]} : vector<10x512xf32> to vector<1x256xf32>
    %c0_122 = arith.constant 0 : index
    %c512 = arith.constant 512 : index
    %111 = vector.load %arg13[%c0_122, %c512] : memref<2x2560xf32, #tpu.memory_space<vmem>>, vector<1x256xf32>
    tpu.vector_store %arg13[%c0_122, %c512], %110 {strides = array<i32>} : memref<2x2560xf32, #tpu.memory_space<vmem>>, vector<1x256xf32>,
    %112 = vector.extract_strided_slice %105 {offsets = [3, 0], sizes = [1, 256], strides = [1, 1]} : vector<10x512xf32> to vector<1x256xf32>
    %c0_123 = arith.constant 0 : index
    %c768 = arith.constant 768 : index
    %113 = vector.load %arg13[%c0_123, %c768] : memref<2x2560xf32, #tpu.memory_space<vmem>>, vector<1x256xf32>
    tpu.vector_store %arg13[%c0_123, %c768], %112 {strides = array<i32>} : memref<2x2560xf32, #tpu.memory_space<vmem>>, vector<1x256xf32>,
    %114 = vector.extract_strided_slice %105 {offsets = [4, 0], sizes = [1, 256], strides = [1, 1]} : vector<10x512xf32> to vector<1x256xf32>
    %c0_124 = arith.constant 0 : index
    %c1024 = arith.constant 1024 : index
    %115 = vector.load %arg13[%c0_124, %c1024] : memref<2x2560xf32, #tpu.memory_space<vmem>>, vector<1x256xf32>
    tpu.vector_store %arg13[%c0_124, %c1024], %114 {strides = array<i32>} : memref<2x2560xf32, #tpu.memory_space<vmem>>, vector<1x256xf32>,
    %116 = vector.extract_strided_slice %105 {offsets = [5, 0], sizes = [1, 256], strides = [1, 1]} : vector<10x512xf32> to vector<1x256xf32>
    %c0_125 = arith.constant 0 : index
    %c1280 = arith.constant 1280 : index
    %117 = vector.load %arg13[%c0_125, %c1280] : memref<2x2560xf32, #tpu.memory_space<vmem>>, vector<1x256xf32>
    tpu.vector_store %arg13[%c0_125, %c1280], %116 {strides = array<i32>} : memref<2x2560xf32, #tpu.memory_space<vmem>>, vector<1x256xf32>,
    %118 = vector.extract_strided_slice %105 {offsets = [6, 0], sizes = [1, 256], strides = [1, 1]} : vector<10x512xf32> to vector<1x256xf32>
    %c0_126 = arith.constant 0 : index
    %c1536 = arith.constant 1536 : index
    %119 = vector.load %arg13[%c0_126, %c1536] : memref<2x2560xf32, #tpu.memory_space<vmem>>, vector<1x256xf32>
    tpu.vector_store %arg13[%c0_126, %c1536], %118 {strides = array<i32>} : memref<2x2560xf32, #tpu.memory_space<vmem>>, vector<1x256xf32>,
    %120 = vector.extract_strided_slice %105 {offsets = [7, 0], sizes = [1, 256], strides = [1, 1]} : vector<10x512xf32> to vector<1x256xf32>
    %c0_127 = arith.constant 0 : index
    %c1792 = arith.constant 1792 : index
    %121 = vector.load %arg13[%c0_127, %c1792] : memref<2x2560xf32, #tpu.memory_space<vmem>>, vector<1x256xf32>
    tpu.vector_store %arg13[%c0_127, %c1792], %120 {strides = array<i32>} : memref<2x2560xf32, #tpu.memory_space<vmem>>, vector<1x256xf32>,
    %122 = vector.extract_strided_slice %105 {offsets = [8, 0], sizes = [1, 256], strides = [1, 1]} : vector<10x512xf32> to vector<1x256xf32>
    %c0_128 = arith.constant 0 : index
    %c2048 = arith.constant 2048 : index
    %123 = vector.load %arg13[%c0_128, %c2048] : memref<2x2560xf32, #tpu.memory_space<vmem>>, vector<1x256xf32>
    tpu.vector_store %arg13[%c0_128, %c2048], %122 {strides = array<i32>} : memref<2x2560xf32, #tpu.memory_space<vmem>>, vector<1x256xf32>,
    %124 = vector.extract_strided_slice %105 {offsets = [9, 0], sizes = [1, 256], strides = [1, 1]} : vector<10x512xf32> to vector<1x256xf32>
    %c0_129 = arith.constant 0 : index
    %c2304 = arith.constant 2304 : index
    %125 = vector.load %arg13[%c0_129, %c2304] : memref<2x2560xf32, #tpu.memory_space<vmem>>, vector<1x256xf32>
    tpu.vector_store %arg13[%c0_129, %c2304], %124 {strides = array<i32>} : memref<2x2560xf32, #tpu.memory_space<vmem>>, vector<1x256xf32>,
    %126 = vector.extract_strided_slice %105 {offsets = [0, 256], sizes = [1, 256], strides = [1, 1]} : vector<10x512xf32> to vector<1x256xf32>
    %c1_130 = arith.constant 1 : index
    %c0_131 = arith.constant 0 : index
    %127 = vector.load %arg13[%c1_130, %c0_131] : memref<2x2560xf32, #tpu.memory_space<vmem>>, vector<1x256xf32>
    tpu.vector_store %arg13[%c1_130, %c0_131], %126 {strides = array<i32>} : memref<2x2560xf32, #tpu.memory_space<vmem>>, vector<1x256xf32>,
    %128 = vector.extract_strided_slice %105 {offsets = [1, 256], sizes = [1, 256], strides = [1, 1]} : vector<10x512xf32> to vector<1x256xf32>
    %c1_132 = arith.constant 1 : index
    %c256_133 = arith.constant 256 : index
    %129 = vector.load %arg13[%c1_132, %c256_133] : memref<2x2560xf32, #tpu.memory_space<vmem>>, vector<1x256xf32>
    tpu.vector_store %arg13[%c1_132, %c256_133], %128 {strides = array<i32>} : memref<2x2560xf32, #tpu.memory_space<vmem>>, vector<1x256xf32>,
    %130 = vector.extract_strided_slice %105 {offsets = [2, 256], sizes = [1, 256], strides = [1, 1]} : vector<10x512xf32> to vector<1x256xf32>
    %c1_134 = arith.constant 1 : index
    %c512_135 = arith.constant 512 : index
    %131 = vector.load %arg13[%c1_134, %c512_135] : memref<2x2560xf32, #tpu.memory_space<vmem>>, vector<1x256xf32>
    tpu.vector_store %arg13[%c1_134, %c512_135], %130 {strides = array<i32>} : memref<2x2560xf32, #tpu.memory_space<vmem>>, vector<1x256xf32>,
    %132 = vector.extract_strided_slice %105 {offsets = [3, 256], sizes = [1, 256], strides = [1, 1]} : vector<10x512xf32> to vector<1x256xf32>
    %c1_136 = arith.constant 1 : index
    %c768_137 = arith.constant 768 : index
    %133 = vector.load %arg13[%c1_136, %c768_137] : memref<2x2560xf32, #tpu.memory_space<vmem>>, vector<1x256xf32>
    tpu.vector_store %arg13[%c1_136, %c768_137], %132 {strides = array<i32>} : memref<2x2560xf32, #tpu.memory_space<vmem>>, vector<1x256xf32>,
    %134 = vector.extract_strided_slice %105 {offsets = [4, 256], sizes = [1, 256], strides = [1, 1]} : vector<10x512xf32> to vector<1x256xf32>
    %c1_138 = arith.constant 1 : index
    %c1024_139 = arith.constant 1024 : index
    %135 = vector.load %arg13[%c1_138, %c1024_139] : memref<2x2560xf32, #tpu.memory_space<vmem>>, vector<1x256xf32>
    tpu.vector_store %arg13[%c1_138, %c1024_139], %134 {strides = array<i32>} : memref<2x2560xf32, #tpu.memory_space<vmem>>, vector<1x256xf32>,
    %136 = vector.extract_strided_slice %105 {offsets = [5, 256], sizes = [1, 256], strides = [1, 1]} : vector<10x512xf32> to vector<1x256xf32>
    %c1_140 = arith.constant 1 : index
    %c1280_141 = arith.constant 1280 : index
    %137 = vector.load %arg13[%c1_140, %c1280_141] : memref<2x2560xf32, #tpu.memory_space<vmem>>, vector<1x256xf32>
    tpu.vector_store %arg13[%c1_140, %c1280_141], %136 {strides = array<i32>} : memref<2x2560xf32, #tpu.memory_space<vmem>>, vector<1x256xf32>,
    %138 = vector.extract_strided_slice %105 {offsets = [6, 256], sizes = [1, 256], strides = [1, 1]} : vector<10x512xf32> to vector<1x256xf32>
    %c1_142 = arith.constant 1 : index
    %c1536_143 = arith.constant 1536 : index
    %139 = vector.load %arg13[%c1_142, %c1536_143] : memref<2x2560xf32, #tpu.memory_space<vmem>>, vector<1x256xf32>
    tpu.vector_store %arg13[%c1_142, %c1536_143], %138 {strides = array<i32>} : memref<2x2560xf32, #tpu.memory_space<vmem>>, vector<1x256xf32>,
    %140 = vector.extract_strided_slice %105 {offsets = [7, 256], sizes = [1, 256], strides = [1, 1]} : vector<10x512xf32> to vector<1x256xf32>
    %c1_144 = arith.constant 1 : index
    %c1792_145 = arith.constant 1792 : index
    %141 = vector.load %arg13[%c1_144, %c1792_145] : memref<2x2560xf32, #tpu.memory_space<vmem>>, vector<1x256xf32>
    tpu.vector_store %arg13[%c1_144, %c1792_145], %140 {strides = array<i32>} : memref<2x2560xf32, #tpu.memory_space<vmem>>, vector<1x256xf32>,
    %142 = vector.extract_strided_slice %105 {offsets = [8, 256], sizes = [1, 256], strides = [1, 1]} : vector<10x512xf32> to vector<1x256xf32>
    %c1_146 = arith.constant 1 : index
    %c2048_147 = arith.constant 2048 : index
    %143 = vector.load %arg13[%c1_146, %c2048_147] : memref<2x2560xf32, #tpu.memory_space<vmem>>, vector<1x256xf32>
    tpu.vector_store %arg13[%c1_146, %c2048_147], %142 {strides = array<i32>} : memref<2x2560xf32, #tpu.memory_space<vmem>>, vector<1x256xf32>,
    %144 = vector.extract_strided_slice %105 {offsets = [9, 256], sizes = [1, 256], strides = [1, 1]} : vector<10x512xf32> to vector<1x256xf32>
    %c1_148 = arith.constant 1 : index
    %c2304_149 = arith.constant 2304 : index
    %145 = vector.load %arg13[%c1_148, %c2304_149] : memref<2x2560xf32, #tpu.memory_space<vmem>>, vector<1x256xf32>
    tpu.vector_store %arg13[%c1_148, %c2304_149], %144 {strides = array<i32>} : memref<2x2560xf32, #tpu.memory_space<vmem>>, vector<1x256xf32>,
    %c0_150 = arith.constant 0 : index
    %c0_151 = arith.constant 0 : index
    %146 = vector.load %arg13[%c0_150, %c0_151] : memref<2x2560xf32, #tpu.memory_space<vmem>>, vector<2x2560xf32>
    %c0_152 = arith.constant 0 : index
    %c0_153 = arith.constant 0 : index
    %147 = vector.load %arg7[%c0_152, %c0_153] : memref<2560x32xf32, #tpu.memory_space<vmem>>, vector<2560x32xf32>
    %cst_154 = arith.constant dense<0.000000e+00> : vector<2x32xf32>
    %148 = tpu.matmul %146, %147, %cst_154 {dimension_numbers = #tpu.dot_dimension_numbers<[1], [0], [0], [1], [0, 0, 1, 1], [], []>} : vector<2x2560xf32>, vector<2560x32xf32>, vector<2x32xf32> -> vector<2x32xf32>
    %c0_155 = arith.constant 0 : index
    %c0_156 = arith.constant 0 : index
    %149 = vector.load %arg8[%c0_155, %c0_156] : memref<1x32xf32, #tpu.memory_space<vmem>>, vector<1x32xf32>
    %150 = vector.broadcast %149 : vector<1x32xf32> to vector<2x32xf32>
    %151 = arith.addf %148, %150 : vector<2x32xf32>
    %c0_157 = arith.constant 0 : index
    %c0_158 = arith.constant 0 : index
    %c0_159 = arith.constant 0 : index
    %152 = vector.load %arg9[%c0_157, %c0_158, %c0_159] : memref<1x2x32xf32, #tpu.memory_space<vmem>>, vector<1x2x32xf32>
    %153 = vector.shape_cast %152 : vector<1x2x32xf32> to vector<2x32xf32>
    %154 = vector.shape_cast %151 : vector<2x32xf32> to vector<1x2x32xf32>
    tpu.vector_store %arg9[%c0_157, %c0_158, %c0_159], %154 {strides = array<i32>} : memref<1x2x32xf32, #tpu.memory_space<vmem>>, vector<1x2x32xf32>,
    return
  }
  func.func @transform_0(%arg0: i32) -> (i32, i32) {
    %c0_i32 = arith.constant 0 : i32
    %c0_i32_0 = arith.constant 0 : i32
    return %c0_i32, %arg0 : i32, i32
  }
  func.func @transform_1(%arg0: i32) -> (i32, i32) {
    %c0_i32 = arith.constant 0 : i32
    %c0_i32_0 = arith.constant 0 : i32
    %c0_i32_1 = arith.constant 0 : i32
    return %c0_i32, %c0_i32_0 : i32, i32
  }
  func.func @transform_2(%arg0: i32) -> (i32, i32) {
    %c0_i32 = arith.constant 0 : i32
    %c0_i32_0 = arith.constant 0 : i32
    %c0_i32_1 = arith.constant 0 : i32
    return %c0_i32, %c0_i32_0 : i32, i32
  }
  func.func @transform_3(%arg0: i32) -> (i32, i32) {
    %c0_i32 = arith.constant 0 : i32
    %c0_i32_0 = arith.constant 0 : i32
    %c0_i32_1 = arith.constant 0 : i32
    return %c0_i32, %c0_i32_0 : i32, i32
  }
  func.func @transform_4(%arg0: i32) -> (i32, i32) {
    %c0_i32 = arith.constant 0 : i32
    %c0_i32_0 = arith.constant 0 : i32
    %c0_i32_1 = arith.constant 0 : i32
    return %c0_i32, %c0_i32_0 : i32, i32
  }
  func.func @transform_5(%arg0: i32) -> (i32, i32) {
    %c0_i32 = arith.constant 0 : i32
    %c0_i32_0 = arith.constant 0 : i32
    %c0_i32_1 = arith.constant 0 : i32
    return %c0_i32, %c0_i32_0 : i32, i32
  }
  func.func @transform_6(%arg0: i32) -> (i32, i32) {
    %c0_i32 = arith.constant 0 : i32
    %c0_i32_0 = arith.constant 0 : i32
    %c0_i32_1 = arith.constant 0 : i32
    return %c0_i32, %c0_i32_0 : i32, i32
  }
  func.func @transform_7(%arg0: i32) -> (i32, i32) {
    %c0_i32 = arith.constant 0 : i32
    %c0_i32_0 = arith.constant 0 : i32
    %c0_i32_1 = arith.constant 0 : i32
    return %c0_i32, %c0_i32_0 : i32, i32
  }
  func.func @transform_8(%arg0: i32) -> (i32, i32, i32) {
    %c0_i32 = arith.constant 0 : i32
    %c0_i32_0 = arith.constant 0 : i32
    %c0_i32_1 = arith.constant 0 : i32
    return %arg0, %c0_i32, %c0_i32_0 : i32, i32, i32
  }
}

</mosaic_0001>

<llo_original>
// kernel: conv_net_forward.3
$region0: #{conv_net_forward.3}
  #allocation0 [shape = 'u32[]', space=smem, size = 0x4, offset = 0x4, fixed_abs, tag = 'smem constant byte address 0x4 - core index']
  #allocation1 [shape = 'u32[144,128]{1,0:T(1,128)}', space=vmem, size = 0x12000, scoped, tag = 'internal scratch']
  %s0 = inlined_call_operand.vmem [shape: f32[4,32], index: 0, kind: input, shape index: {}]
  %s1 = inlined_call_operand.vmem [shape: f32[1,32], index: 1, kind: input, shape index: {}]
  %s2 = inlined_call_operand.vmem [shape: f32[1,32], index: 2, kind: input, shape index: {}]
  %s3 = inlined_call_operand.vmem [shape: f32[32,10], index: 3, kind: input, shape index: {}]
  %s4 = inlined_call_operand.vmem [shape: f32[1,10], index: 4, kind: input, shape index: {}]
  %s5 = inlined_call_operand.hbm [shape: f32[4,10], index: 5, kind: output, shape index: {}]
  %s6 = sld [smem:[#allocation0]]
  $region30: #{conv_net_forward.3} parent=0
    _
  %s8 = ssub.s32 1, %s6
  %s9 = scalar_select 0, %s8, %s6
  $region1: #{conv_net_forward.3} parent=0
    #allocation2 [shape = 'u8[2048]{0}', space=vmem, size = 0x800, scoped, tag = 'output window, operand 0, single buffered']
    #allocation3 [shape = 's32[1]{0}', space=sflag, size = 0x4, scoped, tag = 'scoped memory for conv_net_forward.3']
    %10 = vsyncpa [#allocation3], 0
    // Predicated region
    $region2: #{conv_net_forward.3} parent=1 // pred_check
      _
    $region3: #{conv_net_forward.3} parent=1 // pred_check_branch
      %12 = sbr.rel (0) target = $region5
    $region4: #{conv_net_forward.3} parent=1 // pred_region
      _
    $region5: #{conv_net_forward.3} parent=1 // pred_fallthru
      _
    // Predicated region
    $region6: #{conv_net_forward.3} parent=1 // pred_check
      _
    $region7: #{conv_net_forward.3} parent=1 // pred_check_branch
      %14 = sbr.rel (0) target = $region9
    $region8: #{conv_net_forward.3} parent=1 // pred_region
      _
    $region9: #{conv_net_forward.3} parent=1 // pred_fallthru
      _
    // Predicated region
    $region10: #{conv_net_forward.3} parent=1 // pred_check
      _
    $region11: #{conv_net_forward.3} parent=1 // pred_check_branch
      %16 = sbr.rel (0) target = $region13
    $region12: #{conv_net_forward.3} parent=1 // pred_region
      _
    $region13: #{conv_net_forward.3} parent=1 // pred_fallthru
      _
    // Predicated region
    $region14: #{conv_net_forward.3} parent=1 // pred_check
      _
    $region15: #{conv_net_forward.3} parent=1 // pred_check_branch
      %18 = sbr.rel (0) target = $region17
    $region16: #{conv_net_forward.3} parent=1 // pred_region
      _
    $region17: #{conv_net_forward.3} parent=1 // pred_fallthru
      _
    // Predicated region
    $region18: #{conv_net_forward.3} parent=1 // pred_check
      _
    $region19: #{conv_net_forward.3} parent=1 // pred_check_branch
      %20 = sbr.rel (0) target = $region21
    $region20: #{conv_net_forward.3} parent=1 // pred_region
      _
    $region21: #{conv_net_forward.3} parent=1 // pred_fallthru
      _
    %v21 = vld [vmem:[%s0] sm:$0xf]
    %vm22 = vcmask 257024
    %v23 = vsel %vm22, %v21, 0.0
    %v24 = vrot.slane %v23, 4
    %v25 = vadd.f32 %v23, %v24
    %v26 = vrot.slane %v25, 2
    %v27 = vadd.f32 %v25, %v26
    %v28 = vrot.slane %v27, 1
    %v29 = vadd.f32 %v27, %v28
    %v30 = vrcp.pop 4.0
    %v31 = vmul.f32 %v29, %v30
    %v32 = vsub.f32 %v21, %v31
    %v33 = vmul.f32 %v32, %v32
    %v34 = vsel %vm22, %v33, 0.0
    %v35 = vrot.slane %v34, 4
    %v36 = vadd.f32 %v34, %v35
    %v37 = vrot.slane %v36, 2
    %v38 = vadd.f32 %v36, %v37
    %v39 = vrot.slane %v38, 1
    %v40 = vadd.f32 %v38, %v39
    %v41 = vmul.f32 %v40, %v30
    %v42 = vld [vmem:[%s1] sm:$0x1]
    %v43 = vadd.f32 %v41, 1e-05
    %v44 = vrsqrt.pop %v43
    %v45 = vmul.f32 %v32, %v44
    %v47 = vlaneseq
    %v48 = vshrl.u32 %v47, 7
    %v49 = vsub.s32 0, %v48
    %v50 = vrot.slane %v42, %v49
    %v52 = vmul.f32 %v50, %v45
    %v53 = vld [vmem:[%s2] sm:$0x1]
    %v55 = vlaneseq
    %v56 = vshrl.u32 %v55, 7
    %v57 = vsub.s32 0, %v56
    %v58 = vrot.slane %v53, %v57
    %v60 = vadd.f32 %v52, %v58
    %v61 = vmax.f32 %v60, 0.0
    %v62 = vld [vmem:[%s3] sm:$0xff]
    %v63 = vld [vmem:[%s3 + $0x8] sm:$0xff]
    %v64 = vld [vmem:[%s3 + $0x10] sm:$0xff]
    %v65 = vld [vmem:[%s3 + $0x18] sm:$0xff]
    %v66 = vld [vmem:[%s4] sm:$0x1]
    %v68 = vlaneseq
    %v69 = vshrl.u32 %v68, 7
    %v70 = vsub.s32 0, %v69
    %v71 = vrot.slane %v66, %v70
    %vm73 = vcmask 261120
    %v75 = vsel %vm73, %v61, 0
    %77 = vmatprep.subr.mxu0 0.0
    %78 = vmatpush1.msra.mxu0 %v62
    %79 = vmatprep.subr.mxu0 0.0
    %80 = vmatpush1.msra.mxu0 %v63
    %81 = vmatprep.subr.mxu0 0.0
    %82 = vmatpush1.msra.mxu0 %v64
    %83 = vmatprep.subr.mxu0 0.0
    %84 = vmatpush1.msra.mxu0 %v65
    %85 = vmatprep.subr.mxu0 0.0
    %86 = vmatpush1.msra.mxu0 0.0
    %87 = vmatprep.subr.mxu0 0.0
    %88 = vmatpush1.msra.mxu0 0.0
    %89 = vmatprep.subr.mxu0 0.0
    %90 = vmatpush1.msra.mxu0 0.0
    %91 = vmatprep.subr.mxu0 0.0
    %92 = vmatpush1.msra.mxu0 0.0
    %93 = vmatprep.subr.mxu0 0.0
    %94 = vmatpush1.msra.mxu0 0.0
    %95 = vmatprep.subr.mxu0 0.0
    %96 = vmatpush1.msra.mxu0 0.0
    %97 = vmatprep.subr.mxu0 0.0
    %98 = vmatpush1.msra.mxu0 0.0
    %99 = vmatprep.subr.mxu0 0.0
    %100 = vmatpush1.msra.mxu0 0.0
    %101 = vmatprep.subr.mxu0 0.0
    %102 = vmatpush1.msra.mxu0 0.0
    %103 = vmatprep.subr.mxu0 0.0
    %104 = vmatpush1.msra.mxu0 0.0
    %105 = vmatprep.subr.mxu0 0.0
    %106 = vmatpush1.msra.mxu0 0.0
    %107 = vmatprep.subr.mxu0 0.0
    %108 = vmatpush1.msra.mxu0 0.0
    %109 = vmatprep.subr.mxu0 0.0
    %110 = vmatpush1.msra.mxu0 0.0
    %111 = vmatprep.subr.mxu0 0.0
    %112 = vmatpush1.msra.mxu0 0.0
    %113 = vmatprep.subr.mxu0 0.0
    %114 = vmatpush1.msra.mxu0 0.0
    %115 = vmatprep.subr.mxu0 0.0
    %116 = vmatpush1.msra.mxu0 0.0
    %117 = vmatprep.subr.mxu0 0.0
    %118 = vmatpush1.msra.mxu0 0.0
    %119 = vmatprep.subr.mxu0 0.0
    %120 = vmatpush1.msra.mxu0 0.0
    %121 = vmatprep.subr.mxu0 0.0
    %122 = vmatpush1.msra.mxu0 0.0
    %123 = vmatprep.subr.mxu0 0.0
    %124 = vmatpush1.msra.mxu0 0.0
    %125 = vmatprep.subr.mxu0 0.0
    %126 = vmatpush1.msra.mxu0 0.0
    %127 = vmatprep.subr.mxu0 0.0
    %128 = vmatpush1.msra.mxu0 0.0
    %129 = vmatprep.subr.mxu0 0.0
    %130 = vmatpush1.msra.mxu0 0.0
    %131 = vmatprep.subr.mxu0 0.0
    %132 = vmatpush1.msra.mxu0 0.0
    %133 = vmatprep.subr.mxu0 0.0
    %134 = vmatpush1.msra.mxu0 0.0
    %135 = vmatprep.subr.mxu0 0.0
    %136 = vmatpush1.msra.mxu0 0.0
    %137 = vmatprep.subr.mxu0 0.0
    %138 = vmatpush1.msra.mxu0 0.0
    %139 = vmatprep.subr.mxu0 0.0
    %140 = vmatpush1.msra.mxu0 0.0
    %141 = vmatprep.mubr.f32.mxu0 0.0
    %142 = vmatmul.mubr.f32.gmra.mrb[0].mxu0 %v75
    %v143 = vpop.f32.mrb[0].mxu0
    %v144 = vadd.f32 %v71, %v143
    %v145 = vpop.f32.mrb[0].mxu0
    %146 = vdwg.mxu0
    %vm147 = vcmask 76800
    %148 = vst.msk [vmem:[#allocation2] sm:$0xf] %vm147, %v144
    // Predicated region
    $region22: #{conv_net_forward.3} parent=1 // pred_check
      _
    $region23: #{conv_net_forward.3} parent=1 // pred_check_branch
      %150 = sbr.rel (0) target = $region25
    $region24: #{conv_net_forward.3} parent=1 // pred_region
      %s152 = ssub.s32 64, 64
      %153 = vsyncadd [#allocation3], %s152
      %s155 = sshll.u32 [#allocation2], 4
      %s156 = int_to_ptr.vmem [resolvable:$true] %s155
      %158 = dma.vmem_to_hbm [thread:$0]  %s156, 64, %s5, [#allocation3]
    $region25: #{conv_net_forward.3} parent=1 // pred_fallthru
      _
    // Predicated region
    $region26: #{conv_net_forward.3} parent=1 // pred_check
      _
    $region27: #{conv_net_forward.3} parent=1 // pred_check_branch
      %160 = sbr.rel (0) target = $region29
    $region28: #{conv_net_forward.3} parent=1 // pred_region
      %161 = dma.done [#allocation3], 64
    $region29: #{conv_net_forward.3} parent=1 // pred_fallthru
      _
    %162 = vsyncpa [#allocation3], 1

// kernel: conv_net_forward.2
$region0: #{conv_net_forward.2}
  #allocation0 [shape = 'u32[]', space=smem, size = 0x4, offset = 0x4, fixed_abs, tag = 'smem constant byte address 0x4 - core index']
  #allocation1 [shape = 'u32[144,128]{1,0:T(1,128)}', space=vmem, size = 0x12000, scoped, tag = 'internal scratch']
  #allocation2 [shape = 'f32[10,560]{1,0:T(8,128)}', space=vmem, size = 0xa000, scoped, tag = 'scratch operand']
  #allocation3 [shape = 'f32[9,512]{1,0:T(8,128)}', space=vmem, size = 0x8000, scoped, tag = 'scratch operand']
  #allocation4 [shape = 'f32[72,512]{1,0:T(8,128)}', space=vmem, size = 0x24000, scoped, tag = 'scratch operand']
  #allocation5 [shape = 'f32[2,2560]{1,0:T(2,128)}', space=vmem, size = 0x5000, scoped, tag = 'scratch operand']
  %s0 = inlined_call_operand.vmem [shape: f32[1,1024], index: 0, kind: input, shape index: {}]
  %s1 = inlined_call_operand.vmem [shape: f32[8,512], index: 1, kind: input, shape index: {}]
  %s2 = inlined_call_operand.vmem [shape: f32[5,9], index: 2, kind: input, shape index: {}]
  %s3 = inlined_call_operand.vmem [shape: f32[5,1], index: 3, kind: input, shape index: {}]
  %s4 = inlined_call_operand.vmem [shape: f32[10,72], index: 4, kind: input, shape index: {}]
  %s5 = inlined_call_operand.vmem [shape: f32[10,1], index: 5, kind: input, shape index: {}]
  %s6 = inlined_call_operand.vmem [shape: f32[2560,32], index: 6, kind: input, shape index: {}]
  %s7 = inlined_call_operand.vmem [shape: f32[1,32], index: 7, kind: input, shape index: {}]
  %s8 = inlined_call_operand.vmem [shape: f32[2,2,32], index: 8, kind: output, shape index: {}]
  %s9 = sld [smem:[#allocation0]]
  $region65: #{conv_net_forward.2} parent=0
    _
  %s11 = ssub.s32 1, %s9
  %s12 = scalar_select 0, %s11, %s9
  loop: start=0, step=1, limit=4
  $region2: #{conv_net_forward.2} parent=0 // loop_pre_header
    _
  $region3: #{conv_net_forward.2} parent=0 // loop_header
    %s14 = sphi 0, %s18
    %p15 = scmp.ge.s32.totalorder %s14, 4
    %s24 = sphi 0, %s26
    %s27 = sphi 0, %s24
    %s28 = sphi 0, %s27
    %s44 = sphi 0, %s28
    %s48 = sphi 0, %s48
    %s50 = sphi 0, %s48
    %s51 = sphi 0, %s50
    %s65 = sphi 0, %s51
    %s69 = sphi 0, %s69
    %s71 = sphi 0, %s69
    %s72 = sphi 0, %s71
    %s86 = sphi 0, %s72
    %s90 = sphi 0, %s90
    %s92 = sphi 0, %s90
    %s93 = sphi 0, %s92
    %s107 = sphi 0, %s93
    %s111 = sphi 0, %s111
    %s113 = sphi 0, %s111
    %s114 = sphi 0, %s113
    %s128 = sphi 0, %s114
    %s132 = sphi 0, %s132
    %s134 = sphi 0, %s132
    %s135 = sphi 0, %s134
    %s149 = sphi 0, %s135
    %s153 = sphi 0, %s153
    %s155 = sphi 0, %s153
    %s156 = sphi 0, %s155
    %s170 = sphi 0, %s156
    %s174 = sphi 0, %s174
    %s176 = sphi 0, %s174
    %s177 = sphi 0, %s176
    %s191 = sphi 0, %s177
    %s197 = sphi 0, %s199
    %s200 = sphi 0, %s197
    %s201 = sphi 0, %s200
    %s217 = sphi 0, %s201
  $region4: #{conv_net_forward.2} parent=0 // loop_header_branch
    %17 = sbr.rel (%p15) target = $region8
  $region5: #{conv_net_forward.2} parent=0 // loop_body
    %s19 = ssub.s32 %s14, 1
    %s20 = ssub.s32 %s14, 2
    %s21 = sadd.s32 %s14, 1
    %s22 = ssub.s32 %s14, %s21
    %p23 = scmp.eq.s32.totalorder %s22, 0
    %s25 = sadd.s32 %s24, 1
    %s26 = scalar_select %p23, %s24, %s25
    %p29 = pneg %p23
    %p30 = scmp.eq.s32.totalorder %s14, 1
    %p31 = por %p29, %p30
    %p32 = scmp.ne.s32.totalorder %s24, %s27
    %p33 = scmp.eq.s32.totalorder %s14, 0
    %p34 = por %p32, %p33
    %p35 = scmp.ne.s32.totalorder %s24, %s27
    %p36 = scmp.eq.s32.totalorder %s19, 1
    %p37 = por %p35, %p36
    %p38 = scmp.ne.s32.totalorder %s27, %s28
    %p39 = scmp.eq.s32.totalorder %s19, 0
    %p40 = por %p38, %p39
    %p41 = scmp.ne.s32.totalorder %s27, %s28
    %p42 = scmp.eq.s32.totalorder %s20, 1
    %p43 = por %p41, %p42
    %p45 = scmp.ne.s32.totalorder %s28, %s44
    %p46 = scmp.eq.s32.totalorder %s20, 0
    %p47 = por %p45, %p46
    %s49 = sadd.s32 %s48, 1
    %p52 = scmp.eq.s32.totalorder %s14, 1
    %p53 = scmp.ne.s32.totalorder %s48, %s50
    %p54 = scmp.eq.s32.totalorder %s14, 0
    %p55 = por %p53, %p54
    %p56 = scmp.ne.s32.totalorder %s48, %s50
    %p57 = scmp.eq.s32.totalorder %s19, 1
    %p58 = por %p56, %p57
    %p59 = scmp.ne.s32.totalorder %s50, %s51
    %p60 = scmp.eq.s32.totalorder %s19, 0
    %p61 = por %p59, %p60
    %p62 = scmp.ne.s32.totalorder %s50, %s51
    %p63 = scmp.eq.s32.totalorder %s20, 1
    %p64 = por %p62, %p63
    %p66 = scmp.ne.s32.totalorder %s51, %s65
    %p67 = scmp.eq.s32.totalorder %s20, 0
    %p68 = por %p66, %p67
    %s70 = sadd.s32 %s69, 1
    %p73 = scmp.eq.s32.totalorder %s14, 1
    %p74 = scmp.ne.s32.totalorder %s69, %s71
    %p75 = scmp.eq.s32.totalorder %s14, 0
    %p76 = por %p74, %p75
    %p77 = scmp.ne.s32.totalorder %s69, %s71
    %p78 = scmp.eq.s32.totalorder %s19, 1
    %p79 = por %p77, %p78
    %p80 = scmp.ne.s32.totalorder %s71, %s72
    %p81 = scmp.eq.s32.totalorder %s19, 0
    %p82 = por %p80, %p81
    %p83 = scmp.ne.s32.totalorder %s71, %s72
    %p84 = scmp.eq.s32.totalorder %s20, 1
    %p85 = por %p83, %p84
    %p87 = scmp.ne.s32.totalorder %s72, %s86
    %p88 = scmp.eq.s32.totalorder %s20, 0
    %p89 = por %p87, %p88
    %s91 = sadd.s32 %s90, 1
    %p94 = scmp.eq.s32.totalorder %s14, 1
    %p95 = scmp.ne.s32.totalorder %s90, %s92
    %p96 = scmp.eq.s32.totalorder %s14, 0
    %p97 = por %p95, %p96
    %p98 = scmp.ne.s32.totalorder %s90, %s92
    %p99 = scmp.eq.s32.totalorder %s19, 1
    %p100 = por %p98, %p99
    %p101 = scmp.ne.s32.totalorder %s92, %s93
    %p102 = scmp.eq.s32.totalorder %s19, 0
    %p103 = por %p101, %p102
    %p104 = scmp.ne.s32.totalorder %s92, %s93
    %p105 = scmp.eq.s32.totalorder %s20, 1
    %p106 = por %p104, %p105
    %p108 = scmp.ne.s32.totalorder %s93, %s107
    %p109 = scmp.eq.s32.totalorder %s20, 0
    %p110 = por %p108, %p109
    %s112 = sadd.s32 %s111, 1
    %p115 = scmp.eq.s32.totalorder %s14, 1
    %p116 = scmp.ne.s32.totalorder %s111, %s113
    %p117 = scmp.eq.s32.totalorder %s14, 0
    %p118 = por %p116, %p117
    %p119 = scmp.ne.s32.totalorder %s111, %s113
    %p120 = scmp.eq.s32.totalorder %s19, 1
    %p121 = por %p119, %p120
    %p122 = scmp.ne.s32.totalorder %s113, %s114
    %p123 = scmp.eq.s32.totalorder %s19, 0
    %p124 = por %p122, %p123
    %p125 = scmp.ne.s32.totalorder %s113, %s114
    %p126 = scmp.eq.s32.totalorder %s20, 1
    %p127 = por %p125, %p126
    %p129 = scmp.ne.s32.totalorder %s114, %s128
    %p130 = scmp.eq.s32.totalorder %s20, 0
    %p131 = por %p129, %p130
    %s133 = sadd.s32 %s132, 1
    %p136 = scmp.eq.s32.totalorder %s14, 1
    %p137 = scmp.ne.s32.totalorder %s132, %s134
    %p138 = scmp.eq.s32.totalorder %s14, 0
    %p139 = por %p137, %p138
    %p140 = scmp.ne.s32.totalorder %s132, %s134
    %p141 = scmp.eq.s32.totalorder %s19, 1
    %p142 = por %p140, %p141
    %p143 = scmp.ne.s32.totalorder %s134, %s135
    %p144 = scmp.eq.s32.totalorder %s19, 0
    %p145 = por %p143, %p144
    %p146 = scmp.ne.s32.totalorder %s134, %s135
    %p147 = scmp.eq.s32.totalorder %s20, 1
    %p148 = por %p146, %p147
    %p150 = scmp.ne.s32.totalorder %s135, %s149
    %p151 = scmp.eq.s32.totalorder %s20, 0
    %p152 = por %p150, %p151
    %s154 = sadd.s32 %s153, 1
    %p157 = scmp.eq.s32.totalorder %s14, 1
    %p158 = scmp.ne.s32.totalorder %s153, %s155
    %p159 = scmp.eq.s32.totalorder %s14, 0
    %p160 = por %p158, %p159
    %p161 = scmp.ne.s32.totalorder %s153, %s155
    %p162 = scmp.eq.s32.totalorder %s19, 1
    %p163 = por %p161, %p162
    %p164 = scmp.ne.s32.totalorder %s155, %s156
    %p165 = scmp.eq.s32.totalorder %s19, 0
    %p166 = por %p164, %p165
    %p167 = scmp.ne.s32.totalorder %s155, %s156
    %p168 = scmp.eq.s32.totalorder %s20, 1
    %p169 = por %p167, %p168
    %p171 = scmp.ne.s32.totalorder %s156, %s170
    %p172 = scmp.eq.s32.totalorder %s20, 0
    %p173 = por %p171, %p172
    %s175 = sadd.s32 %s174, 1
    %p178 = scmp.eq.s32.totalorder %s14, 1
    %p179 = scmp.ne.s32.totalorder %s174, %s176
    %p180 = scmp.eq.s32.totalorder %s14, 0
    %p181 = por %p179, %p180
    %p182 = scmp.ne.s32.totalorder %s174, %s176
    %p183 = scmp.eq.s32.totalorder %s19, 1
    %p184 = por %p182, %p183
    %p185 = scmp.ne.s32.totalorder %s176, %s177
    %p186 = scmp.eq.s32.totalorder %s19, 0
    %p187 = por %p185, %p186
    %p188 = scmp.ne.s32.totalorder %s176, %s177
    %p189 = scmp.eq.s32.totalorder %s20, 1
    %p190 = por %p188, %p189
    %p192 = scmp.ne.s32.totalorder %s177, %s191
    %p193 = scmp.eq.s32.totalorder %s20, 0
    %p194 = por %p192, %p193
    %s195 = ssub.s32 %s14, %s21
    %p196 = scmp.eq.s32.totalorder %s195, 0
    %s198 = sadd.s32 %s197, 1
    %s199 = scalar_select %p196, %s197, %s198
    %p202 = pneg %p196
    %p203 = scmp.eq.s32.totalorder %s14, 1
    %p204 = por %p202, %p203
    %p205 = scmp.ne.s32.totalorder %s197, %s200
    %p206 = scmp.eq.s32.totalorder %s14, 0
    %p207 = por %p205, %p206
    %p208 = scmp.ne.s32.totalorder %s197, %s200
    %p209 = scmp.eq.s32.totalorder %s19, 1
    %p210 = por %p208, %p209
    %p211 = scmp.ne.s32.totalorder %s200, %s201
    %p212 = scmp.eq.s32.totalorder %s19, 0
    %p213 = por %p211, %p212
    %p214 = scmp.ne.s32.totalorder %s200, %s201
    %p215 = scmp.eq.s32.totalorder %s20, 1
    %p216 = por %p214, %p215
    %p218 = scmp.ne.s32.totalorder %s201, %s217
    %p219 = scmp.eq.s32.totalorder %s20, 0
    %p220 = por %p218, %p219
    %p221 = scmp.le.s32.totalorder 1, %s14
    %p222 = scmp.lt.s32.totalorder %s14, 3
    %p223 = pnand %p221, %p222
    %p224 = pneg %p223
    // Predicated region
    $region9: #{conv_net_forward.2} parent=5 // pred_check
      _
    $region10: #{conv_net_forward.2} parent=5 // pred_check_branch
      %226 = sbr.rel (%p223) target = $region12
    $region11: #{conv_net_forward.2} parent=5 // pred_region
      %s227 = ssub.s32 %s14, 1
      // Predicated region
      $region13: #{conv_net_forward.2} parent=11 // pred_check
        %p228 = pneg %p61
      $region14: #{conv_net_forward.2} parent=11 // pred_check_branch
        %230 = sbr.rel (%p228) target = $region16
      $region15: #{conv_net_forward.2} parent=11 // pred_region
        _
      $region16: #{conv_net_forward.2} parent=11 // pred_fallthru
        _
      // Predicated region
      $region17: #{conv_net_forward.2} parent=11 // pred_check
        %p231 = pneg %p82
      $region18: #{conv_net_forward.2} parent=11 // pred_check_branch
        %233 = sbr.rel (%p231) target = $region20
      $region19: #{conv_net_forward.2} parent=11 // pred_region
        _
      $region20: #{conv_net_forward.2} parent=11 // pred_fallthru
        _
      // Predicated region
      $region21: #{conv_net_forward.2} parent=11 // pred_check
        %p234 = pneg %p103
      $region22: #{conv_net_forward.2} parent=11 // pred_check_branch
        %236 = sbr.rel (%p234) target = $region24
      $region23: #{conv_net_forward.2} parent=11 // pred_region
        _
      $region24: #{conv_net_forward.2} parent=11 // pred_fallthru
        _
      // Predicated region
      $region25: #{conv_net_forward.2} parent=11 // pred_check
        %p237 = pneg %p124
      $region26: #{conv_net_forward.2} parent=11 // pred_check_branch
        %239 = sbr.rel (%p237) target = $region28
      $region27: #{conv_net_forward.2} parent=11 // pred_region
        _
      $region28: #{conv_net_forward.2} parent=11 // pred_fallthru
        _
      // Predicated region
      $region29: #{conv_net_forward.2} parent=11 // pred_check
        %p240 = pneg %p145
      $region30: #{conv_net_forward.2} parent=11 // pred_check_branch
        %242 = sbr.rel (%p240) target = $region32
      $region31: #{conv_net_forward.2} parent=11 // pred_region
        _
      $region32: #{conv_net_forward.2} parent=11 // pred_fallthru
        _
      // Predicated region
      $region33: #{conv_net_forward.2} parent=11 // pred_check
        %p243 = pneg %p166
      $region34: #{conv_net_forward.2} parent=11 // pred_check_branch
        %245 = sbr.rel (%p243) target = $region36
      $region35: #{conv_net_forward.2} parent=11 // pred_region
        _
      $region36: #{conv_net_forward.2} parent=11 // pred_fallthru
        _
      // Predicated region
      $region37: #{conv_net_forward.2} parent=11 // pred_check
        %p246 = pneg %p187
      $region38: #{conv_net_forward.2} parent=11 // pred_check_branch
        %248 = sbr.rel (%p246) target = $region40
      $region39: #{conv_net_forward.2} parent=11 // pred_region
        _
      $region40: #{conv_net_forward.2} parent=11 // pred_fallthru
        _
    $region12: #{conv_net_forward.2} parent=5 // pred_fallthru
      _
    %p249 = scmp.lt.s32.totalorder %s14, 2
    // Predicated region
    $region41: #{conv_net_forward.2} parent=5 // pred_check
      %p250 = pneg %p249
    $region42: #{conv_net_forward.2} parent=5 // pred_check_branch
      %252 = sbr.rel (%p250) target = $region44
    $region43: #{conv_net_forward.2} parent=5 // pred_region
      // Predicated region
      $region45: #{conv_net_forward.2} parent=43 // pred_check
        %p253 = pneg %p34
      $region46: #{conv_net_forward.2} parent=43 // pred_check_branch
        %255 = sbr.rel (%p253) target = $region48
      $region47: #{conv_net_forward.2} parent=43 // pred_region
        %s256 = smul.u32 4, %s14
        %p257 = scmp.lt.s32.totalorder %s256, 7
        %s258 = scalar_select %p257, %s256, 7
        %s259 = scalar_lea.vmem %s0, %s258
        %s260 = smul.u32 4, %s14
      $region48: #{conv_net_forward.2} parent=43 // pred_fallthru
        _
    $region44: #{conv_net_forward.2} parent=5 // pred_fallthru
      _
    %p261 = scmp.le.s32.totalorder 1, %s14
    %p262 = scmp.lt.s32.totalorder %s14, 3
    %p263 = pnand %p261, %p262
    %p264 = pneg %p263
    // Predicated region
    $region49: #{conv_net_forward.2} parent=5 // pred_check
      _
    $region50: #{conv_net_forward.2} parent=5 // pred_check_branch
      %266 = sbr.rel (%p263) target = $region52
    $region51: #{conv_net_forward.2} parent=5 // pred_region
      %s267 = ssub.s32 %s14, 1
      %s268 = smul.u32 4, %s19
      %p269 = scmp.lt.s32.totalorder %s268, 7
      %s270 = scalar_select %p269, %s268, 7
      %s271 = scalar_lea.vmem %s0, %s270
      %p272 = pneg %p40
      %p273 = pneg %p37
      %p274 = pneg %p61
      %p275 = pneg %p58
      %p276 = pneg %p82
      %p277 = pneg %p79
      %p278 = pneg %p103
      %p279 = pneg %p100
      %p280 = pneg %p124
      %p281 = pneg %p121
      %p282 = pneg %p145
      %p283 = pneg %p142
      %p284 = pneg %p166
      %p285 = pneg %p163
      %p286 = pneg %p187
      %p287 = pneg %p184
      %p288 = pneg %p213
      %p289 = pneg %p210
      %p290 = scmp.lt.s32.totalorder %s19, 1
      %s291 = scalar_select %p290, %s19, 1
      %s292 = smul.addr %s291, 2
      %s293 = scalar_lea.vmem %s8, %s292
      %s294 = smul.u32 4, %s19
      %p295 = scmp.lt.s32.totalorder %s294, 7
      %s296 = scalar_select %p295, %s294, 7
      %s297 = scalar_lea.vmem %s0, %s296
      %s298 = smul.u32 4, %s19
      %p299 = scmp.lt.s32.totalorder %s19, 1
      %s300 = scalar_select %p299, %s19, 1
      %s301 = smul.addr %s300, 2
      %s302 = scalar_lea.vmem %s8, %s301
      %vm303 = vcmask 195584
      %304 = vst.msk [vmem:[#allocation2] sm:$0xff] %vm303, 0.0
      %vm305 = vcmask 189440
      %306 = vst.msk [vmem:[#allocation2 + $0x28] sm:$0x3] %vm305, 0.0
      %vm307 = vcmask 392384
      %308 = vst.msk [vmem:[#allocation2 + $0x20] sm:$0xff] %vm307, 0.0
      %vm309 = vcmask 386240
      %310 = vst.msk [vmem:[#allocation2 + $0x48] sm:$0x3] %vm309, 0.0
      %v311 = vld [vmem:[%s297] sm:$0xf]
      %313 = vrot.lane.b32.xlu0 %v311, 24
      %v314 = vpop.permute.xlu0 %313
      %v315 = vrot.slane %v314, 7
      %v316 = vsel %vm303, %v315, %v314
      %v318 = vlaneseq
      %vm319 = vcmp.ge.s32.totalorder %v318, 24
      %vm320 = vcmp.lt.s32.totalorder %v318, 536
      %vm321 = vmand %vm319, %vm320
      %322 = vst.msk [vmem:[#allocation2] ss:$8 sm:$0xf] %vm321, %v316
      %323 = vst.msk [vmem:[#allocation2] ss:$8 sm:$0x10] %vm321, %v316
      %v324 = vld [vmem:[#allocation2] ss:$8 sm:$0xf]
      %v325 = vld [vmem:[#allocation2] ss:$8 sm:$0x10]
      %v326 = vor.u32 %v324, %v325
      %v327 = vld [vmem:[%s1] ss:$8 sm:$0xf]
      %329 = vrot.lane.b32.xlu0 %v327, 7
      %v330 = vpop.permute.xlu0 %329
      %v331 = vrot.slane %v330, 7
      %vm332 = vcmask 56320
      %v333 = vsel %vm332, %v331, %v330
      %v335 = vmul.f32 %v326, %v333
      %337 = vrot.lane.b32.xlu0 %v335, 121
      %v338 = vpop.permute.xlu0 %337
      %v339 = vrot.slane %v338, 1
      %vm340 = vcmask 990208
      %v341 = vsel %vm340, %v338, %v339
      %vm343 = vcmp.ge.s32.totalorder %v318, 0
      %vm344 = vcmp.lt.s32.totalorder %v318, 512
      %vm345 = vmand %vm343, %vm344
      %346 = vst.msk [vmem:[#allocation3] ss:$8 sm:$0xf] %vm345, %v341
      %347 = vst.msk [vmem:[#allocation3] ss:$8 sm:$0x0] %vm345, %v341
      %v348 = vld [vmem:[#allocation2] ss:$8 sm:$0xf]
      %v349 = vld [vmem:[#allocation2] ss:$8 sm:$0x10]
      %v350 = vor.u32 %v348, %v349
      %s351 = scalar_lea.vmem %s1, 1
      %v352 = vld [vmem:[%s351] ss:$8 sm:$0xf]
      %354 = vrot.lane.b32.xlu0 %v352, 8
      %v355 = vpop.permute.xlu0 %354
      %v356 = vrot.slane %v355, 7
      %vm357 = vcmask 64512
      %v358 = vsel %vm357, %v356, %v355
      %v360 = vmul.f32 %v350, %v358
      %362 = vrot.lane.b32.xlu0 %v360, 120
      %v363 = vpop.permute.xlu0 %362
      %v364 = vrot.slane %v363, 1
      %vm365 = vcmask 982016
      %v366 = vsel %vm365, %v363, %v364
      %s368 = scalar_lea.vmem [#allocation3], 1
      %369 = vst.msk [vmem:[%s368] ss:$8 sm:$0xf] %vm345, %v366
      %370 = vst.msk [vmem:[%s368] ss:$8 sm:$0x0] %vm345, %v366
      %v371 = vld [vmem:[#allocation2] ss:$8 sm:$0xf]
      %v372 = vld [vmem:[#allocation2] ss:$8 sm:$0x10]
      %v373 = vor.u32 %v371, %v372
      %s374 = scalar_lea.vmem %s1, 2
      %v375 = vld [vmem:[%s374] ss:$8 sm:$0xf]
      %377 = vrot.lane.b32.xlu0 %v375, 9
      %v378 = vpop.permute.xlu0 %377
      %v379 = vrot.slane %v378, 7
      %vm380 = vcmask 72704
      %v381 = vsel %vm380, %v379, %v378
      %v383 = vmul.f32 %v373, %v381
      %385 = vrot.lane.b32.xlu0 %v383, 119
      %v386 = vpop.permute.xlu0 %385
      %v387 = vrot.slane %v386, 1
      %vm388 = vcmask 973824
      %v389 = vsel %vm388, %v386, %v387
      %s391 = scalar_lea.vmem [#allocation3], 2
      %392 = vst.msk [vmem:[%s391] ss:$8 sm:$0xf] %vm345, %v389
      %393 = vst.msk [vmem:[%s391] ss:$8 sm:$0x0] %vm345, %v389
      %v394 = vld [vmem:[#allocation2] ss:$8 sm:$0xf]
      %v395 = vld [vmem:[#allocation2] ss:$8 sm:$0x10]
      %v396 = vor.u32 %v394, %v395
      %s397 = scalar_lea.vmem %s1, 3
      %v398 = vld [vmem:[%s397] ss:$8 sm:$0xf]
      %400 = vrot.lane.b32.xlu0 %v398, 23
      %v401 = vpop.permute.xlu0 %400
      %v402 = vrot.slane %v401, 7
      %vm403 = vcmask 187392
      %v404 = vsel %vm403, %v402, %v401
      %v406 = vmul.f32 %v396, %v404
      %408 = vrot.lane.b32.xlu0 %v406, 105
      %v409 = vpop.permute.xlu0 %408
      %v410 = vrot.slane %v409, 1
      %vm411 = vcmask 859136
      %v412 = vsel %vm411, %v409, %v410
      %s414 = scalar_lea.vmem [#allocation3], 3
      %415 = vst.msk [vmem:[%s414] ss:$8 sm:$0xf] %vm345, %v412
      %416 = vst.msk [vmem:[%s414] ss:$8 sm:$0x0] %vm345, %v412
      %v417 = vld [vmem:[#allocation2] ss:$8 sm:$0xf]
      %v418 = vld [vmem:[#allocation2] ss:$8 sm:$0x10]
      %v419 = vor.u32 %v417, %v418
      %421 = vrot.lane.b32.xlu0 %v419, 104
      %v422 = vpop.permute.xlu0 %421
      %v423 = vrot.slane %v422, 1
      %vm424 = vcmask 850944
      %v425 = vsel %vm424, %v422, %v423
      %s427 = scalar_lea.vmem [#allocation3], 4
      %428 = vst.msk [vmem:[%s427] ss:$8 sm:$0xf] %vm345, %v425
      %429 = vst.msk [vmem:[%s427] ss:$8 sm:$0x0] %vm345, %v425
      %v430 = vld [vmem:[#allocation2] ss:$8 sm:$0xf]
      %v431 = vld [vmem:[#allocation2] ss:$8 sm:$0x10]
      %v432 = vor.u32 %v430, %v431
      %s433 = scalar_lea.vmem %s1, 4
      %v434 = vld [vmem:[%s433] ss:$8 sm:$0xf]
      %436 = vrot.lane.b32.xlu0 %v434, 25
      %v437 = vpop.permute.xlu0 %436
      %v438 = vrot.slane %v437, 7
      %vm439 = vcmask 203776
      %v440 = vsel %vm439, %v438, %v437
      %v442 = vmul.f32 %v432, %v440
      %444 = vrot.lane.b32.xlu0 %v442, 103
      %v445 = vpop.permute.xlu0 %444
      %v446 = vrot.slane %v445, 1
      %vm447 = vcmask 842752
      %v448 = vsel %vm447, %v445, %v446
      %s450 = scalar_lea.vmem [#allocation3], 5
      %451 = vst.msk [vmem:[%s450] ss:$8 sm:$0xf] %vm345, %v448
      %452 = vst.msk [vmem:[%s450] ss:$8 sm:$0x0] %vm345, %v448
      %v453 = vld [vmem:[#allocation2] ss:$8 sm:$0xf]
      %v454 = vld [vmem:[#allocation2] ss:$8 sm:$0x10]
      %v455 = vor.u32 %v453, %v454
      %s456 = scalar_lea.vmem %s1, 5
      %v457 = vld [vmem:[%s456] ss:$8 sm:$0xf]
      %459 = vrot.lane.b32.xlu0 %v457, 39
      %v460 = vpop.permute.xlu0 %459
      %v461 = vrot.slane %v460, 7
      %vm462 = vcmask 318464
      %v463 = vsel %vm462, %v461, %v460
      %v465 = vmul.f32 %v455, %v463
      %467 = vrot.lane.b32.xlu0 %v465, 89
      %v468 = vpop.permute.xlu0 %467
      %v469 = vrot.slane %v468, 1
      %vm470 = vcmask 728064
      %v471 = vsel %vm470, %v468, %v469
      %s473 = scalar_lea.vmem [#allocation3], 6
      %474 = vst.msk [vmem:[%s473] ss:$8 sm:$0xf] %vm345, %v471
      %475 = vst.msk [vmem:[%s473] ss:$8 sm:$0x0] %vm345, %v471
      %v476 = vld [vmem:[#allocation2] ss:$8 sm:$0xf]
      %v477 = vld [vmem:[#allocation2] ss:$8 sm:$0x10]
      %v478 = vor.u32 %v476, %v477
      %s479 = scalar_lea.vmem %s1, 6
      %v480 = vld [vmem:[%s479] ss:$8 sm:$0xf]
      %482 = vrot.lane.b32.xlu0 %v480, 40
      %v483 = vpop.permute.xlu0 %482
      %v484 = vrot.slane %v483, 7
      %vm485 = vcmask 326656
      %v486 = vsel %vm485, %v484, %v483
      %v488 = vmul.f32 %v478, %v486
      %490 = vrot.lane.b32.xlu0 %v488, 88
      %v491 = vpop.permute.xlu0 %490
      %v492 = vrot.slane %v491, 1
      %vm493 = vcmask 719872
      %v494 = vsel %vm493, %v491, %v492
      %s496 = scalar_lea.vmem [#allocation3], 7
      %497 = vst.msk [vmem:[%s496] ss:$8 sm:$0xf] %vm345, %v494
      %498 = vst.msk [vmem:[%s496] ss:$8 sm:$0x0] %vm345, %v494
      %v499 = vld [vmem:[#allocation2] ss:$8 sm:$0xf]
      %v500 = vld [vmem:[#allocation2] ss:$8 sm:$0x10]
      %v501 = vor.u32 %v499, %v500
      %s502 = scalar_lea.vmem %s1, 7
      %v503 = vld [vmem:[%s502] ss:$8 sm:$0xf]
      %505 = vrot.lane.b32.xlu0 %v503, 41
      %v506 = vpop.permute.xlu0 %505
      %v507 = vrot.slane %v506, 7
      %vm508 = vcmask 334848
      %v509 = vsel %vm508, %v507, %v506
      %v511 = vmul.f32 %v501, %v509
      %513 = vrot.lane.b32.xlu0 %v511, 87
      %v514 = vpop.permute.xlu0 %513
      %v515 = vrot.slane %v514, 1
      %vm516 = vcmask 711680
      %v517 = vsel %vm516, %v514, %v515
      %s519 = scalar_lea.vmem [#allocation3], 32
      %520 = vst.msk [vmem:[%s519] ss:$8 sm:$0xf] %vm345, %v517
      %521 = vst.msk [vmem:[%s519] ss:$8 sm:$0x0] %vm345, %v517
      %v522 = vld [vmem:[%s2] sm:$0x1f]
      %v523 = vld [vmem:[#allocation3] sm:$0xff]
      %v524 = vld [vmem:[#allocation3 + $0x8] sm:$0xff]
      %v525 = vld [vmem:[#allocation3 + $0x10] sm:$0xff]
      %v526 = vld [vmem:[#allocation3 + $0x18] sm:$0xff]
      %v527 = vld [vmem:[#allocation3 + $0x20] sm:$0x1]
      %v528 = vld [vmem:[#allocation3 + $0x28] sm:$0x1]
      %v529 = vld [vmem:[#allocation3 + $0x30] sm:$0x1]
      %v530 = vld [vmem:[#allocation3 + $0x38] sm:$0x1]
      %v531 = vld [vmem:[%s3] sm:$0x1f]
      %533 = vset.pattern.permute.xlu0 0
      %534 = vperm.xlu0 %533, %v531
      %v535 = vpop.permute.xlu0 %534
      %v538 = vsel %vm380, %v522, 0
      %vm540 = vcmask 1040384
      %v542 = vsel %vm540, %v527, 0
      %v545 = vsel %vm540, %v528, 0
      %v548 = vsel %vm540, %v529, 0
      %v551 = vsel %vm540, %v530, 0
      %553 = vmatprep.subr.mxu0 %v524
      %554 = vmatpush1.msra.mxu0 %v523
      %555 = vmatprep.subr.mxu0 %v545
      %556 = vmatpush1.msra.mxu0 %v542
      %557 = vmatprep.subr.mxu0 0.0
      %558 = vmatpush1.msra.mxu0 0.0
      %559 = vmatprep.subr.mxu0 0.0
      %560 = vmatpush1.msra.mxu0 0.0
      %561 = vmatprep.subr.mxu0 0.0
      %562 = vmatpush1.msra.mxu0 0.0
      %563 = vmatprep.subr.mxu0 0.0
      %564 = vmatpush1.msra.mxu0 0.0
      %565 = vmatprep.subr.mxu0 0.0
      %566 = vmatpush1.msra.mxu0 0.0
      %567 = vmatprep.subr.mxu0 0.0
      %568 = vmatpush1.msra.mxu0 0.0
      %569 = vmatprep.subr.mxu0 0.0
      %570 = vmatpush1.msra.mxu0 0.0
      %571 = vmatprep.subr.mxu0 0.0
      %572 = vmatpush1.msra.mxu0 0.0
      %573 = vmatprep.subr.mxu0 0.0
      %574 = vmatpush1.msra.mxu0 0.0
      %575 = vmatprep.subr.mxu0 0.0
      %576 = vmatpush1.msra.mxu0 0.0
      %577 = vmatprep.subr.mxu0 0.0
      %578 = vmatpush1.msra.mxu0 0.0
      %579 = vmatprep.subr.mxu0 0.0
      %580 = vmatpush1.msra.mxu0 0.0
      %581 = vmatprep.subr.mxu0 0.0
      %582 = vmatpush1.msra.mxu0 0.0
      %583 = vmatprep.subr.mxu0 0.0
      %584 = vmatpush1.msra.mxu0 0.0
      %585 = vmatprep.subr.mxu0 0.0
      %586 = vmatpush1.msra.mxu0 0.0
      %587 = vmatprep.subr.mxu0 0.0
      %588 = vmatpush1.msra.mxu0 0.0
      %589 = vmatprep.subr.mxu0 0.0
      %590 = vmatpush1.msra.mxu0 0.0
      %591 = vmatprep.subr.mxu0 0.0
      %592 = vmatpush1.msra.mxu0 0.0
      %593 = vmatprep.subr.mxu0 0.0
      %594 = vmatpush1.msra.mxu0 0.0
      %595 = vmatprep.subr.mxu0 0.0
      %596 = vmatpush1.msra.mxu0 0.0
      %597 = vmatprep.subr.mxu0 0.0
      %598 = vmatpush1.msra.mxu0 0.0
      %599 = vmatprep.subr.mxu0 0.0
      %600 = vmatpush1.msra.mxu0 0.0
      %601 = vmatprep.subr.mxu0 0.0
      %602 = vmatpush1.msra.mxu0 0.0
      %603 = vmatprep.subr.mxu0 0.0
      %604 = vmatpush1.msra.mxu0 0.0
      %605 = vmatprep.subr.mxu0 0.0
      %606 = vmatpush1.msra.mxu0 0.0
      %607 = vmatprep.subr.mxu0 0.0
      %608 = vmatpush1.msra.mxu0 0.0
      %609 = vmatprep.subr.mxu0 0.0
      %610 = vmatpush1.msra.mxu0 0.0
      %611 = vmatprep.subr.mxu0 0.0
      %612 = vmatpush1.msra.mxu0 0.0
      %613 = vmatprep.subr.mxu0 0.0
      %614 = vmatpush1.msra.mxu0 0.0
      %615 = vmatprep.subr.mxu0 0.0
      %616 = vmatpush1.msra.mxu0 0.0
      %617 = vmatprep.mubr.f32.mxu0 0.0
      %618 = vmatmul.mubr.f32.gmra.mrb[0].mxu0 %v538
      %v619 = vpop.f32.mrb[0].mxu0
      %v620 = vadd.f32 %v535, %v619
      %v621 = vpop.f32.mrb[0].mxu0
      %v622 = vadd.f32 %v535, %v621
      %623 = vdwg.mxu0
      %624 = vmatprep.subr.mxu0 %v526
      %625 = vmatpush1.msra.mxu0 %v525
      %626 = vmatprep.subr.mxu0 %v551
      %627 = vmatpush1.msra.mxu0 %v548
      %628 = vmatprep.subr.mxu0 0.0
      %629 = vmatpush1.msra.mxu0 0.0
      %630 = vmatprep.subr.mxu0 0.0
      %631 = vmatpush1.msra.mxu0 0.0
      %632 = vmatprep.subr.mxu0 0.0
      %633 = vmatpush1.msra.mxu0 0.0
      %634 = vmatprep.subr.mxu0 0.0
      %635 = vmatpush1.msra.mxu0 0.0
      %636 = vmatprep.subr.mxu0 0.0
      %637 = vmatpush1.msra.mxu0 0.0
      %638 = vmatprep.subr.mxu0 0.0
      %639 = vmatpush1.msra.mxu0 0.0
      %640 = vmatprep.subr.mxu0 0.0
      %641 = vmatpush1.msra.mxu0 0.0
      %642 = vmatprep.subr.mxu0 0.0
      %643 = vmatpush1.msra.mxu0 0.0
      %644 = vmatprep.subr.mxu0 0.0
      %645 = vmatpush1.msra.mxu0 0.0
      %646 = vmatprep.subr.mxu0 0.0
      %647 = vmatpush1.msra.mxu0 0.0
      %648 = vmatprep.subr.mxu0 0.0
      %649 = vmatpush1.msra.mxu0 0.0
      %650 = vmatprep.subr.mxu0 0.0
      %651 = vmatpush1.msra.mxu0 0.0
      %652 = vmatprep.subr.mxu0 0.0
      %653 = vmatpush1.msra.mxu0 0.0
      %654 = vmatprep.subr.mxu0 0.0
      %655 = vmatpush1.msra.mxu0 0.0
      %656 = vmatprep.subr.mxu0 0.0
      %657 = vmatpush1.msra.mxu0 0.0
      %658 = vmatprep.subr.mxu0 0.0
      %659 = vmatpush1.msra.mxu0 0.0
      %660 = vmatprep.subr.mxu0 0.0
      %661 = vmatpush1.msra.mxu0 0.0
      %662 = vmatprep.subr.mxu0 0.0
      %663 = vmatpush1.msra.mxu0 0.0
      %664 = vmatprep.subr.mxu0 0.0
      %665 = vmatpush1.msra.mxu0 0.0
      %666 = vmatprep.subr.mxu0 0.0
      %667 = vmatpush1.msra.mxu0 0.0
      %668 = vmatprep.subr.mxu0 0.0
      %669 = vmatpush1.msra.mxu0 0.0
      %670 = vmatprep.subr.mxu0 0.0
      %671 = vmatpush1.msra.mxu0 0.0
      %672 = vmatprep.subr.mxu0 0.0
      %673 = vmatpush1.msra.mxu0 0.0
      %674 = vmatprep.subr.mxu0 0.0
      %675 = vmatpush1.msra.mxu0 0.0
      %676 = vmatprep.subr.mxu0 0.0
      %677 = vmatpush1.msra.mxu0 0.0
      %678 = vmatprep.subr.mxu0 0.0
      %679 = vmatpush1.msra.mxu0 0.0
      %680 = vmatprep.subr.mxu0 0.0
      %681 = vmatpush1.msra.mxu0 0.0
      %682 = vmatprep.subr.mxu0 0.0
      %683 = vmatpush1.msra.mxu0 0.0
      %684 = vmatprep.subr.mxu0 0.0
      %685 = vmatpush1.msra.mxu0 0.0
      %686 = vmatprep.subr.mxu0 0.0
      %687 = vmatpush1.msra.mxu0 0.0
      %688 = vmatprep.mubr.f32.mxu0 0.0
      %689 = vmatmul.mubr.f32.gmra.mrb[0].mxu0 %v538
      %v690 = vpop.f32.mrb[0].mxu0
      %v691 = vadd.f32 %v535, %v690
      %v692 = vpop.f32.mrb[0].mxu0
      %v693 = vadd.f32 %v535, %v692
      %694 = vdwg.mxu0
      %v695 = vmax.f32 %v620, 0.0
      %v696 = vmax.f32 %v622, 0.0
      %v697 = vmax.f32 %v691, 0.0
      %v698 = vmax.f32 %v693, 0.0
      %699 = vst [vmem:[#allocation2] sm:$0xe0] 0.0
      %700 = vst [vmem:[#allocation2 + $0x8] sm:$0xe0] 0.0
      %701 = vst [vmem:[#allocation2 + $0x10] sm:$0xe0] 0.0
      %702 = vst [vmem:[#allocation2 + $0x18] sm:$0xe0] 0.0
      %vm703 = vcmask 392197
      %704 = vst.msk [vmem:[#allocation2 + $0x20] sm:$0xe0] %vm703, 0.0
      %709 = vrot.lane.b32.xlu0 %v695, 24
      %v710 = vpop.permute.xlu0 %709
      %711 = vrot.lane.b32.xlu0 %v696, 24
      %v712 = vpop.permute.xlu0 %711
      %713 = vrot.lane.b32.xlu0 %v697, 24
      %v714 = vpop.permute.xlu0 %713
      %715 = vrot.lane.b32.xlu0 %v698, 24
      %v716 = vpop.permute.xlu0 %715
      %v717 = vsel %vm303, %v710, %v712
      %v718 = vsel %vm303, %v712, %v714
      %v719 = vsel %vm303, %v714, %v716
      %vm725 = vcmask 1044672
      %726 = vst.msk [vmem:[#allocation2] sm:$0x1f] %vm725, %v710
      %727 = vst [vmem:[#allocation2 + $0x8] sm:$0x1f] %v717
      %728 = vst [vmem:[#allocation2 + $0x10] sm:$0x1f] %v718
      %729 = vst [vmem:[#allocation2 + $0x18] sm:$0x1f] %v719
      %vm730 = vcmask 192512
      %731 = vst.msk [vmem:[#allocation2 + $0x20] sm:$0x1f] %vm730, %v716
      %v732 = vld [vmem:[#allocation2] sm:$0xff]
      %v733 = vld [vmem:[#allocation2 + $0x8] sm:$0xff]
      %v734 = vld [vmem:[#allocation2 + $0x10] sm:$0xff]
      %v735 = vld [vmem:[#allocation2 + $0x18] sm:$0xff]
      %v736 = vld [vmem:[#allocation2 + $0x20] sm:$0xff]
      %v737 = vld [vmem:[%s1] ss:$8 sm:$0xf]
      %v739 = vlaneseq
      %v740 = vshrl.u32 %v739, 7
      %v741 = vsub.s32 0, %v740
      %v742 = vrot.slane %v737, %v741
      %v743 = vlaneseq
      %v744 = vshrl.u32 %v743, 7
      %v745 = vsub.s32 1, %v744
      %v746 = vrot.slane %v737, %v745
      %v747 = vlaneseq
      %v748 = vshrl.u32 %v747, 7
      %v749 = vsub.s32 2, %v748
      %v750 = vrot.slane %v737, %v749
      %v751 = vlaneseq
      %v752 = vshrl.u32 %v751, 7
      %v753 = vsub.s32 3, %v752
      %v754 = vrot.slane %v737, %v753
      %755 = vrot.lane.b32.xlu0 %v742, 7
      %v756 = vpop.permute.xlu0 %755
      %757 = vrot.lane.b32.xlu0 %v746, 7
      %v758 = vpop.permute.xlu0 %757
      %759 = vrot.lane.b32.xlu0 %v750, 7
      %v760 = vpop.permute.xlu0 %759
      %761 = vrot.lane.b32.xlu0 %v754, 7
      %v762 = vpop.permute.xlu0 %761
      %v763 = vsel %vm332, %v756, %v758
      %v764 = vsel %vm332, %v758, %v760
      %v765 = vsel %vm332, %v760, %v762
      %v771 = vmul.f32 %v732, %v756
      %v772 = vmul.f32 %v733, %v763
      %v773 = vmul.f32 %v734, %v764
      %v774 = vmul.f32 %v735, %v765
      %v775 = vmul.f32 %v736, %v762
      %781 = vrot.lane.b32.xlu0 %v771, 121
      %v782 = vpop.permute.xlu0 %781
      %783 = vrot.lane.b32.xlu0 %v772, 121
      %v784 = vpop.permute.xlu0 %783
      %785 = vrot.lane.b32.xlu0 %v773, 121
      %v786 = vpop.permute.xlu0 %785
      %787 = vrot.lane.b32.xlu0 %v774, 121
      %v788 = vpop.permute.xlu0 %787
      %789 = vrot.lane.b32.xlu0 %v775, 121
      %v790 = vpop.permute.xlu0 %789
      %v791 = vsel %vm340, %v782, %v784
      %v792 = vsel %vm340, %v784, %v786
      %v793 = vsel %vm340, %v786, %v788
      %v794 = vsel %vm340, %v788, %v790
      %799 = vst [vmem:[#allocation4] sm:$0xff] %v791
      %800 = vst [vmem:[#allocation4 + $0x8] sm:$0xff] %v792
      %801 = vst [vmem:[#allocation4 + $0x10] sm:$0xff] %v793
      %802 = vst [vmem:[#allocation4 + $0x18] sm:$0xff] %v794
      %v803 = vld [vmem:[#allocation2] sm:$0xff]
      %v804 = vld [vmem:[#allocation2 + $0x8] sm:$0xff]
      %v805 = vld [vmem:[#allocation2 + $0x10] sm:$0xff]
      %v806 = vld [vmem:[#allocation2 + $0x18] sm:$0xff]
      %v807 = vld [vmem:[#allocation2 + $0x20] sm:$0xff]
      %v808 = vld [vmem:[%s351] ss:$8 sm:$0xf]
      %v810 = vlaneseq
      %v811 = vshrl.u32 %v810, 7
      %v812 = vsub.s32 0, %v811
      %v813 = vrot.slane %v808, %v812
      %v814 = vlaneseq
      %v815 = vshrl.u32 %v814, 7
      %v816 = vsub.s32 1, %v815
      %v817 = vrot.slane %v808, %v816
      %v818 = vlaneseq
      %v819 = vshrl.u32 %v818, 7
      %v820 = vsub.s32 2, %v819
      %v821 = vrot.slane %v808, %v820
      %v822 = vlaneseq
      %v823 = vshrl.u32 %v822, 7
      %v824 = vsub.s32 3, %v823
      %v825 = vrot.slane %v808, %v824
      %826 = vrot.lane.b32.xlu0 %v813, 8
      %v827 = vpop.permute.xlu0 %826
      %828 = vrot.lane.b32.xlu0 %v817, 8
      %v829 = vpop.permute.xlu0 %828
      %830 = vrot.lane.b32.xlu0 %v821, 8
      %v831 = vpop.permute.xlu0 %830
      %832 = vrot.lane.b32.xlu0 %v825, 8
      %v833 = vpop.permute.xlu0 %832
      %v834 = vsel %vm357, %v827, %v829
      %v835 = vsel %vm357, %v829, %v831
      %v836 = vsel %vm357, %v831, %v833
      %v842 = vmul.f32 %v803, %v827
      %v843 = vmul.f32 %v804, %v834
      %v844 = vmul.f32 %v805, %v835
      %v845 = vmul.f32 %v806, %v836
      %v846 = vmul.f32 %v807, %v833
      %852 = vrot.lane.b32.xlu0 %v842, 120
      %v853 = vpop.permute.xlu0 %852
      %854 = vrot.lane.b32.xlu0 %v843, 120
      %v855 = vpop.permute.xlu0 %854
      %856 = vrot.lane.b32.xlu0 %v844, 120
      %v857 = vpop.permute.xlu0 %856
      %858 = vrot.lane.b32.xlu0 %v845, 120
      %v859 = vpop.permute.xlu0 %858
      %860 = vrot.lane.b32.xlu0 %v846, 120
      %v861 = vpop.permute.xlu0 %860
      %v862 = vsel %vm365, %v853, %v855
      %v863 = vsel %vm365, %v855, %v857
      %v864 = vsel %vm365, %v857, %v859
      %v865 = vsel %vm365, %v859, %v861
      %870 = vst [vmem:[#allocation4 + $0x20] sm:$0xff] %v862
      %871 = vst [vmem:[#allocation4 + $0x28] sm:$0xff] %v863
      %872 = vst [vmem:[#allocation4 + $0x30] sm:$0xff] %v864
      %873 = vst [vmem:[#allocation4 + $0x38] sm:$0xff] %v865
      %v874 = vld [vmem:[#allocation2] sm:$0xff]
      %v875 = vld [vmem:[#allocation2 + $0x8] sm:$0xff]
      %v876 = vld [vmem:[#allocation2 + $0x10] sm:$0xff]
      %v877 = vld [vmem:[#allocation2 + $0x18] sm:$0xff]
      %v878 = vld [vmem:[#allocation2 + $0x20] sm:$0xff]
      %v879 = vld [vmem:[%s374] ss:$8 sm:$0xf]
      %v881 = vlaneseq
      %v882 = vshrl.u32 %v881, 7
      %v883 = vsub.s32 0, %v882
      %v884 = vrot.slane %v879, %v883
      %v885 = vlaneseq
      %v886 = vshrl.u32 %v885, 7
      %v887 = vsub.s32 1, %v886
      %v888 = vrot.slane %v879, %v887
      %v889 = vlaneseq
      %v890 = vshrl.u32 %v889, 7
      %v891 = vsub.s32 2, %v890
      %v892 = vrot.slane %v879, %v891
      %v893 = vlaneseq
      %v894 = vshrl.u32 %v893, 7
      %v895 = vsub.s32 3, %v894
      %v896 = vrot.slane %v879, %v895
      %897 = vrot.lane.b32.xlu0 %v884, 9
      %v898 = vpop.permute.xlu0 %897
      %899 = vrot.lane.b32.xlu0 %v888, 9
      %v900 = vpop.permute.xlu0 %899
      %901 = vrot.lane.b32.xlu0 %v892, 9
      %v902 = vpop.permute.xlu0 %901
      %903 = vrot.lane.b32.xlu0 %v896, 9
      %v904 = vpop.permute.xlu0 %903
      %v905 = vsel %vm380, %v898, %v900
      %v906 = vsel %vm380, %v900, %v902
      %v907 = vsel %vm380, %v902, %v904
      %v913 = vmul.f32 %v874, %v898
      %v914 = vmul.f32 %v875, %v905
      %v915 = vmul.f32 %v876, %v906
      %v916 = vmul.f32 %v877, %v907
      %v917 = vmul.f32 %v878, %v904
      %923 = vrot.lane.b32.xlu0 %v913, 119
      %v924 = vpop.permute.xlu0 %923
      %925 = vrot.lane.b32.xlu0 %v914, 119
      %v926 = vpop.permute.xlu0 %925
      %927 = vrot.lane.b32.xlu0 %v915, 119
      %v928 = vpop.permute.xlu0 %927
      %929 = vrot.lane.b32.xlu0 %v916, 119
      %v930 = vpop.permute.xlu0 %929
      %931 = vrot.lane.b32.xlu0 %v917, 119
      %v932 = vpop.permute.xlu0 %931
      %v933 = vsel %vm388, %v924, %v926
      %v934 = vsel %vm388, %v926, %v928
      %v935 = vsel %vm388, %v928, %v930
      %v936 = vsel %vm388, %v930, %v932
      %941 = vst [vmem:[#allocation4 + $0x40] sm:$0xff] %v933
      %942 = vst [vmem:[#allocation4 + $0x48] sm:$0xff] %v934
      %943 = vst [vmem:[#allocation4 + $0x50] sm:$0xff] %v935
      %944 = vst [vmem:[#allocation4 + $0x58] sm:$0xff] %v936
      %v945 = vld [vmem:[#allocation2] sm:$0xff]
      %v946 = vld [vmem:[#allocation2 + $0x8] sm:$0xff]
      %v947 = vld [vmem:[#allocation2 + $0x10] sm:$0xff]
      %v948 = vld [vmem:[#allocation2 + $0x18] sm:$0xff]
      %v949 = vld [vmem:[#allocation2 + $0x20] sm:$0xff]
      %v950 = vld [vmem:[%s397] ss:$8 sm:$0xf]
      %v952 = vlaneseq
      %v953 = vshrl.u32 %v952, 7
      %v954 = vsub.s32 0, %v953
      %v955 = vrot.slane %v950, %v954
      %v956 = vlaneseq
      %v957 = vshrl.u32 %v956, 7
      %v958 = vsub.s32 1, %v957
      %v959 = vrot.slane %v950, %v958
      %v960 = vlaneseq
      %v961 = vshrl.u32 %v960, 7
      %v962 = vsub.s32 2, %v961
      %v963 = vrot.slane %v950, %v962
      %v964 = vlaneseq
      %v965 = vshrl.u32 %v964, 7
      %v966 = vsub.s32 3, %v965
      %v967 = vrot.slane %v950, %v966
      %968 = vrot.lane.b32.xlu0 %v955, 23
      %v969 = vpop.permute.xlu0 %968
      %970 = vrot.lane.b32.xlu0 %v959, 23
      %v971 = vpop.permute.xlu0 %970
      %972 = vrot.lane.b32.xlu0 %v963, 23
      %v973 = vpop.permute.xlu0 %972
      %974 = vrot.lane.b32.xlu0 %v967, 23
      %v975 = vpop.permute.xlu0 %974
      %v976 = vsel %vm403, %v969, %v971
      %v977 = vsel %vm403, %v971, %v973
      %v978 = vsel %vm403, %v973, %v975
      %v984 = vmul.f32 %v945, %v969
      %v985 = vmul.f32 %v946, %v976
      %v986 = vmul.f32 %v947, %v977
      %v987 = vmul.f32 %v948, %v978
      %v988 = vmul.f32 %v949, %v975
      %994 = vrot.lane.b32.xlu0 %v984, 105
      %v995 = vpop.permute.xlu0 %994
      %996 = vrot.lane.b32.xlu0 %v985, 105
      %v997 = vpop.permute.xlu0 %996
      %998 = vrot.lane.b32.xlu0 %v986, 105
      %v999 = vpop.permute.xlu0 %998
      %1000 = vrot.lane.b32.xlu0 %v987, 105
      %v1001 = vpop.permute.xlu0 %1000
      %1002 = vrot.lane.b32.xlu0 %v988, 105
      %v1003 = vpop.permute.xlu0 %1002
      %v1004 = vsel %vm411, %v995, %v997
      %v1005 = vsel %vm411, %v997, %v999
      %v1006 = vsel %vm411, %v999, %v1001
      %v1007 = vsel %vm411, %v1001, %v1003
      %1012 = vst [vmem:[#allocation4 + $0x60] sm:$0xff] %v1004
      %1013 = vst [vmem:[#allocation4 + $0x68] sm:$0xff] %v1005
      %1014 = vst [vmem:[#allocation4 + $0x70] sm:$0xff] %v1006
      %1015 = vst [vmem:[#allocation4 + $0x78] sm:$0xff] %v1007
      %v1016 = vld [vmem:[#allocation2] sm:$0xff]
      %v1017 = vld [vmem:[#allocation2 + $0x8] sm:$0xff]
      %v1018 = vld [vmem:[#allocation2 + $0x10] sm:$0xff]
      %v1019 = vld [vmem:[#allocation2 + $0x18] sm:$0xff]
      %v1020 = vld [vmem:[#allocation2 + $0x20] sm:$0xff]
      %1026 = vrot.lane.b32.xlu0 %v1016, 104
      %v1027 = vpop.permute.xlu0 %1026
      %1028 = vrot.lane.b32.xlu0 %v1017, 104
      %v1029 = vpop.permute.xlu0 %1028
      %1030 = vrot.lane.b32.xlu0 %v1018, 104
      %v1031 = vpop.permute.xlu0 %1030
      %1032 = vrot.lane.b32.xlu0 %v1019, 104
      %v1033 = vpop.permute.xlu0 %1032
      %1034 = vrot.lane.b32.xlu0 %v1020, 104
      %v1035 = vpop.permute.xlu0 %1034
      %v1036 = vsel %vm424, %v1027, %v1029
      %v1037 = vsel %vm424, %v1029, %v1031
      %v1038 = vsel %vm424, %v1031, %v1033
      %v1039 = vsel %vm424, %v1033, %v1035
      %1044 = vst [vmem:[#allocation4 + $0x80] sm:$0xff] %v1036
      %1045 = vst [vmem:[#allocation4 + $0x88] sm:$0xff] %v1037
      %1046 = vst [vmem:[#allocation4 + $0x90] sm:$0xff] %v1038
      %1047 = vst [vmem:[#allocation4 + $0x98] sm:$0xff] %v1039
      %v1048 = vld [vmem:[#allocation2] sm:$0xff]
      %v1049 = vld [vmem:[#allocation2 + $0x8] sm:$0xff]
      %v1050 = vld [vmem:[#allocation2 + $0x10] sm:$0xff]
      %v1051 = vld [vmem:[#allocation2 + $0x18] sm:$0xff]
      %v1052 = vld [vmem:[#allocation2 + $0x20] sm:$0xff]
      %v1053 = vld [vmem:[%s433] ss:$8 sm:$0xf]
      %v1055 = vlaneseq
      %v1056 = vshrl.u32 %v1055, 7
      %v1057 = vsub.s32 0, %v1056
      %v1058 = vrot.slane %v1053, %v1057
      %v1059 = vlaneseq
      %v1060 = vshrl.u32 %v1059, 7
      %v1061 = vsub.s32 1, %v1060
      %v1062 = vrot.slane %v1053, %v1061
      %v1063 = vlaneseq
      %v1064 = vshrl.u32 %v1063, 7
      %v1065 = vsub.s32 2, %v1064
      %v1066 = vrot.slane %v1053, %v1065
      %v1067 = vlaneseq
      %v1068 = vshrl.u32 %v1067, 7
      %v1069 = vsub.s32 3, %v1068
      %v1070 = vrot.slane %v1053, %v1069
      %1071 = vrot.lane.b32.xlu0 %v1058, 25
      %v1072 = vpop.permute.xlu0 %1071
      %1073 = vrot.lane.b32.xlu0 %v1062, 25
      %v1074 = vpop.permute.xlu0 %1073
      %1075 = vrot.lane.b32.xlu0 %v1066, 25
      %v1076 = vpop.permute.xlu0 %1075
      %1077 = vrot.lane.b32.xlu0 %v1070, 25
      %v1078 = vpop.permute.xlu0 %1077
      %v1079 = vsel %vm439, %v1072, %v1074
      %v1080 = vsel %vm439, %v1074, %v1076
      %v1081 = vsel %vm439, %v1076, %v1078
      %v1087 = vmul.f32 %v1048, %v1072
      %v1088 = vmul.f32 %v1049, %v1079
      %v1089 = vmul.f32 %v1050, %v1080
      %v1090 = vmul.f32 %v1051, %v1081
      %v1091 = vmul.f32 %v1052, %v1078
      %1097 = vrot.lane.b32.xlu0 %v1087, 103
      %v1098 = vpop.permute.xlu0 %1097
      %1099 = vrot.lane.b32.xlu0 %v1088, 103
      %v1100 = vpop.permute.xlu0 %1099
      %1101 = vrot.lane.b32.xlu0 %v1089, 103
      %v1102 = vpop.permute.xlu0 %1101
      %1103 = vrot.lane.b32.xlu0 %v1090, 103
      %v1104 = vpop.permute.xlu0 %1103
      %1105 = vrot.lane.b32.xlu0 %v1091, 103
      %v1106 = vpop.permute.xlu0 %1105
      %v1107 = vsel %vm447, %v1098, %v1100
      %v1108 = vsel %vm447, %v1100, %v1102
      %v1109 = vsel %vm447, %v1102, %v1104
      %v1110 = vsel %vm447, %v1104, %v1106
      %1115 = vst [vmem:[#allocation4 + $0xa0] sm:$0xff] %v1107
      %1116 = vst [vmem:[#allocation4 + $0xa8] sm:$0xff] %v1108
      %1117 = vst [vmem:[#allocation4 + $0xb0] sm:$0xff] %v1109
      %1118 = vst [vmem:[#allocation4 + $0xb8] sm:$0xff] %v1110
      %v1119 = vld [vmem:[#allocation2] sm:$0xff]
      %v1120 = vld [vmem:[#allocation2 + $0x8] sm:$0xff]
      %v1121 = vld [vmem:[#allocation2 + $0x10] sm:$0xff]
      %v1122 = vld [vmem:[#allocation2 + $0x18] sm:$0xff]
      %v1123 = vld [vmem:[#allocation2 + $0x20] sm:$0xff]
      %v1124 = vld [vmem:[%s456] ss:$8 sm:$0xf]
      %v1126 = vlaneseq
      %v1127 = vshrl.u32 %v1126, 7
      %v1128 = vsub.s32 0, %v1127
      %v1129 = vrot.slane %v1124, %v1128
      %v1130 = vlaneseq
      %v1131 = vshrl.u32 %v1130, 7
      %v1132 = vsub.s32 1, %v1131
      %v1133 = vrot.slane %v1124, %v1132
      %v1134 = vlaneseq
      %v1135 = vshrl.u32 %v1134, 7
      %v1136 = vsub.s32 2, %v1135
      %v1137 = vrot.slane %v1124, %v1136
      %v1138 = vlaneseq
      %v1139 = vshrl.u32 %v1138, 7
      %v1140 = vsub.s32 3, %v1139
      %v1141 = vrot.slane %v1124, %v1140
      %1142 = vrot.lane.b32.xlu0 %v1129, 39
      %v1143 = vpop.permute.xlu0 %1142
      %1144 = vrot.lane.b32.xlu0 %v1133, 39
      %v1145 = vpop.permute.xlu0 %1144
      %1146 = vrot.lane.b32.xlu0 %v1137, 39
      %v1147 = vpop.permute.xlu0 %1146
      %1148 = vrot.lane.b32.xlu0 %v1141, 39
      %v1149 = vpop.permute.xlu0 %1148
      %v1150 = vsel %vm462, %v1143, %v1145
      %v1151 = vsel %vm462, %v1145, %v1147
      %v1152 = vsel %vm462, %v1147, %v1149
      %v1158 = vmul.f32 %v1119, %v1143
      %v1159 = vmul.f32 %v1120, %v1150
      %v1160 = vmul.f32 %v1121, %v1151
      %v1161 = vmul.f32 %v1122, %v1152
      %v1162 = vmul.f32 %v1123, %v1149
      %1168 = vrot.lane.b32.xlu0 %v1158, 89
      %v1169 = vpop.permute.xlu0 %1168
      %1170 = vrot.lane.b32.xlu0 %v1159, 89
      %v1171 = vpop.permute.xlu0 %1170
      %1172 = vrot.lane.b32.xlu0 %v1160, 89
      %v1173 = vpop.permute.xlu0 %1172
      %1174 = vrot.lane.b32.xlu0 %v1161, 89
      %v1175 = vpop.permute.xlu0 %1174
      %1176 = vrot.lane.b32.xlu0 %v1162, 89
      %v1177 = vpop.permute.xlu0 %1176
      %v1178 = vsel %vm470, %v1169, %v1171
      %v1179 = vsel %vm470, %v1171, %v1173
      %v1180 = vsel %vm470, %v1173, %v1175
      %v1181 = vsel %vm470, %v1175, %v1177
      %1186 = vst [vmem:[#allocation4 + $0xc0] sm:$0xff] %v1178
      %1187 = vst [vmem:[#allocation4 + $0xc8] sm:$0xff] %v1179
      %1188 = vst [vmem:[#allocation4 + $0xd0] sm:$0xff] %v1180
      %1189 = vst [vmem:[#allocation4 + $0xd8] sm:$0xff] %v1181
      %v1190 = vld [vmem:[#allocation2] sm:$0xff]
      %v1191 = vld [vmem:[#allocation2 + $0x8] sm:$0xff]
      %v1192 = vld [vmem:[#allocation2 + $0x10] sm:$0xff]
      %v1193 = vld [vmem:[#allocation2 + $0x18] sm:$0xff]
      %v1194 = vld [vmem:[#allocation2 + $0x20] sm:$0xff]
      %v1195 = vld [vmem:[%s479] ss:$8 sm:$0xf]
      %v1197 = vlaneseq
      %v1198 = vshrl.u32 %v1197, 7
      %v1199 = vsub.s32 0, %v1198
      %v1200 = vrot.slane %v1195, %v1199
      %v1201 = vlaneseq
      %v1202 = vshrl.u32 %v1201, 7
      %v1203 = vsub.s32 1, %v1202
      %v1204 = vrot.slane %v1195, %v1203
      %v1205 = vlaneseq
      %v1206 = vshrl.u32 %v1205, 7
      %v1207 = vsub.s32 2, %v1206
      %v1208 = vrot.slane %v1195, %v1207
      %v1209 = vlaneseq
      %v1210 = vshrl.u32 %v1209, 7
      %v1211 = vsub.s32 3, %v1210
      %v1212 = vrot.slane %v1195, %v1211
      %1213 = vrot.lane.b32.xlu0 %v1200, 40
      %v1214 = vpop.permute.xlu0 %1213
      %1215 = vrot.lane.b32.xlu0 %v1204, 40
      %v1216 = vpop.permute.xlu0 %1215
      %1217 = vrot.lane.b32.xlu0 %v1208, 40
      %v1218 = vpop.permute.xlu0 %1217
      %1219 = vrot.lane.b32.xlu0 %v1212, 40
      %v1220 = vpop.permute.xlu0 %1219
      %v1221 = vsel %vm485, %v1214, %v1216
      %v1222 = vsel %vm485, %v1216, %v1218
      %v1223 = vsel %vm485, %v1218, %v1220
      %v1229 = vmul.f32 %v1190, %v1214
      %v1230 = vmul.f32 %v1191, %v1221
      %v1231 = vmul.f32 %v1192, %v1222
      %v1232 = vmul.f32 %v1193, %v1223
      %v1233 = vmul.f32 %v1194, %v1220
      %1239 = vrot.lane.b32.xlu0 %v1229, 88
      %v1240 = vpop.permute.xlu0 %1239
      %1241 = vrot.lane.b32.xlu0 %v1230, 88
      %v1242 = vpop.permute.xlu0 %1241
      %1243 = vrot.lane.b32.xlu0 %v1231, 88
      %v1244 = vpop.permute.xlu0 %1243
      %1245 = vrot.lane.b32.xlu0 %v1232, 88
      %v1246 = vpop.permute.xlu0 %1245
      %1247 = vrot.lane.b32.xlu0 %v1233, 88
      %v1248 = vpop.permute.xlu0 %1247
      %v1249 = vsel %vm493, %v1240, %v1242
      %v1250 = vsel %vm493, %v1242, %v1244
      %v1251 = vsel %vm493, %v1244, %v1246
      %v1252 = vsel %vm493, %v1246, %v1248
      %1257 = vst [vmem:[#allocation4 + $0xe0] sm:$0xff] %v1249
      %1258 = vst [vmem:[#allocation4 + $0xe8] sm:$0xff] %v1250
      %1259 = vst [vmem:[#allocation4 + $0xf0] sm:$0xff] %v1251
      %1260 = vst [vmem:[#allocation4 + $0xf8] sm:$0xff] %v1252
      %v1261 = vld [vmem:[#allocation2] sm:$0xff]
      %v1262 = vld [vmem:[#allocation2 + $0x8] sm:$0xff]
      %v1263 = vld [vmem:[#allocation2 + $0x10] sm:$0xff]
      %v1264 = vld [vmem:[#allocation2 + $0x18] sm:$0xff]
      %v1265 = vld [vmem:[#allocation2 + $0x20] sm:$0xff]
      %v1266 = vld [vmem:[%s502] ss:$8 sm:$0xf]
      %v1268 = vlaneseq
      %v1269 = vshrl.u32 %v1268, 7
      %v1270 = vsub.s32 0, %v1269
      %v1271 = vrot.slane %v1266, %v1270
      %v1272 = vlaneseq
      %v1273 = vshrl.u32 %v1272, 7
      %v1274 = vsub.s32 1, %v1273
      %v1275 = vrot.slane %v1266, %v1274
      %v1276 = vlaneseq
      %v1277 = vshrl.u32 %v1276, 7
      %v1278 = vsub.s32 2, %v1277
      %v1279 = vrot.slane %v1266, %v1278
      %v1280 = vlaneseq
      %v1281 = vshrl.u32 %v1280, 7
      %v1282 = vsub.s32 3, %v1281
      %v1283 = vrot.slane %v1266, %v1282
      %1284 = vrot.lane.b32.xlu0 %v1271, 41
      %v1285 = vpop.permute.xlu0 %1284
      %1286 = vrot.lane.b32.xlu0 %v1275, 41
      %v1287 = vpop.permute.xlu0 %1286
      %1288 = vrot.lane.b32.xlu0 %v1279, 41
      %v1289 = vpop.permute.xlu0 %1288
      %1290 = vrot.lane.b32.xlu0 %v1283, 41
      %v1291 = vpop.permute.xlu0 %1290
      %v1292 = vsel %vm508, %v1285, %v1287
      %v1293 = vsel %vm508, %v1287, %v1289
      %v1294 = vsel %vm508, %v1289, %v1291
      %v1300 = vmul.f32 %v1261, %v1285
      %v1301 = vmul.f32 %v1262, %v1292
      %v1302 = vmul.f32 %v1263, %v1293
      %v1303 = vmul.f32 %v1264, %v1294
      %v1304 = vmul.f32 %v1265, %v1291
      %1310 = vrot.lane.b32.xlu0 %v1300, 87
      %v1311 = vpop.permute.xlu0 %1310
      %1312 = vrot.lane.b32.xlu0 %v1301, 87
      %v1313 = vpop.permute.xlu0 %1312
      %1314 = vrot.lane.b32.xlu0 %v1302, 87
      %v1315 = vpop.permute.xlu0 %1314
      %1316 = vrot.lane.b32.xlu0 %v1303, 87
      %v1317 = vpop.permute.xlu0 %1316
      %1318 = vrot.lane.b32.xlu0 %v1304, 87
      %v1319 = vpop.permute.xlu0 %1318
      %v1320 = vsel %vm516, %v1311, %v1313
      %v1321 = vsel %vm516, %v1313, %v1315
      %v1322 = vsel %vm516, %v1315, %v1317
      %v1323 = vsel %vm516, %v1317, %v1319
      %1328 = vst [vmem:[#allocation4 + $0x100] sm:$0xff] %v1320
      %1329 = vst [vmem:[#allocation4 + $0x108] sm:$0xff] %v1321
      %1330 = vst [vmem:[#allocation4 + $0x110] sm:$0xff] %v1322
      %1331 = vst [vmem:[#allocation4 + $0x118] sm:$0xff] %v1323
      %v1332 = vld [vmem:[%s4] sm:$0xff]
      %v1333 = vld [vmem:[%s4 + $0x8] sm:$0x3]
      %v1334 = vld [vmem:[#allocation4] sm:$0xff]
      %v1335 = vld [vmem:[#allocation4 + $0x8] sm:$0xff]
      %v1336 = vld [vmem:[#allocation4 + $0x10] sm:$0xff]
      %v1337 = vld [vmem:[#allocation4 + $0x18] sm:$0xff]
      %v1338 = vld [vmem:[#allocation4 + $0x20] sm:$0xff]
      %v1339 = vld [vmem:[#allocation4 + $0x28] sm:$0xff]
      %v1340 = vld [vmem:[#allocation4 + $0x30] sm:$0xff]
      %v1341 = vld [vmem:[#allocation4 + $0x38] sm:$0xff]
      %v1342 = vld [vmem:[#allocation4 + $0x40] sm:$0xff]
      %v1343 = vld [vmem:[#allocation4 + $0x48] sm:$0xff]
      %v1344 = vld [vmem:[#allocation4 + $0x50] sm:$0xff]
      %v1345 = vld [vmem:[#allocation4 + $0x58] sm:$0xff]
      %v1346 = vld [vmem:[#allocation4 + $0x60] sm:$0xff]
      %v1347 = vld [vmem:[#allocation4 + $0x68] sm:$0xff]
      %v1348 = vld [vmem:[#allocation4 + $0x70] sm:$0xff]
      %v1349 = vld [vmem:[#allocation4 + $0x78] sm:$0xff]
      %v1350 = vld [vmem:[#allocation4 + $0x80] sm:$0xff]
      %v1351 = vld [vmem:[#allocation4 + $0x88] sm:$0xff]
      %v1352 = vld [vmem:[#allocation4 + $0x90] sm:$0xff]
      %v1353 = vld [vmem:[#allocation4 + $0x98] sm:$0xff]
      %v1354 = vld [vmem:[#allocation4 + $0xa0] sm:$0xff]
      %v1355 = vld [vmem:[#allocation4 + $0xa8] sm:$0xff]
      %v1356 = vld [vmem:[#allocation4 + $0xb0] sm:$0xff]
      %v1357 = vld [vmem:[#allocation4 + $0xb8] sm:$0xff]
      %v1358 = vld [vmem:[#allocation4 + $0xc0] sm:$0xff]
      %v1359 = vld [vmem:[#allocation4 + $0xc8] sm:$0xff]
      %v1360 = vld [vmem:[#allocation4 + $0xd0] sm:$0xff]
      %v1361 = vld [vmem:[#allocation4 + $0xd8] sm:$0xff]
      %v1362 = vld [vmem:[#allocation4 + $0xe0] sm:$0xff]
      %v1363 = vld [vmem:[#allocation4 + $0xe8] sm:$0xff]
      %v1364 = vld [vmem:[#allocation4 + $0xf0] sm:$0xff]
      %v1365 = vld [vmem:[#allocation4 + $0xf8] sm:$0xff]
      %v1366 = vld [vmem:[#allocation4 + $0x100] sm:$0xff]
      %v1367 = vld [vmem:[#allocation4 + $0x108] sm:$0xff]
      %v1368 = vld [vmem:[#allocation4 + $0x110] sm:$0xff]
      %v1369 = vld [vmem:[#allocation4 + $0x118] sm:$0xff]
      %v1370 = vld [vmem:[%s5] sm:$0xff]
      %v1371 = vld [vmem:[%s5 + $0x8] sm:$0x3]
      %1373 = vset.pattern.permute.xlu0 0
      %1374 = vperm.xlu0 %1373, %v1370
      %v1375 = vpop.permute.xlu0 %1374
      %1378 = vset.pattern.permute.xlu0 0
      %1379 = vperm.xlu0 %1378, %v1371
      %v1380 = vpop.permute.xlu0 %1379
      %vm1382 = vcmask 588800
      %v1384 = vsel %vm1382, %v1332, 0
      %v1387 = vsel %vm1382, %v1333, 0
      %1389 = vmatprep.subr.mxu0 %v1335
      %1390 = vmatpush1.msra.mxu0 %v1334
      %1391 = vmatprep.subr.mxu0 %v1339
      %1392 = vmatpush1.msra.mxu0 %v1338
      %1393 = vmatprep.subr.mxu0 %v1343
      %1394 = vmatpush1.msra.mxu0 %v1342
      %1395 = vmatprep.subr.mxu0 %v1347
      %1396 = vmatpush1.msra.mxu0 %v1346
      %1397 = vmatprep.subr.mxu0 %v1351
      %1398 = vmatpush1.msra.mxu0 %v1350
      %1399 = vmatprep.subr.mxu0 %v1355
      %1400 = vmatpush1.msra.mxu0 %v1354
      %1401 = vmatprep.subr.mxu0 %v1359
      %1402 = vmatpush1.msra.mxu0 %v1358
      %1403 = vmatprep.subr.mxu0 %v1363
      %1404 = vmatpush1.msra.mxu0 %v1362
      %1405 = vmatprep.subr.mxu0 %v1367
      %1406 = vmatpush1.msra.mxu0 %v1366
      %1407 = vmatprep.subr.mxu0 0.0
      %1408 = vmatpush1.msra.mxu0 0.0
      %1409 = vmatprep.subr.mxu0 0.0
      %1410 = vmatpush1.msra.mxu0 0.0
      %1411 = vmatprep.subr.mxu0 0.0
      %1412 = vmatpush1.msra.mxu0 0.0
      %1413 = vmatprep.subr.mxu0 0.0
      %1414 = vmatpush1.msra.mxu0 0.0
      %1415 = vmatprep.subr.mxu0 0.0
      %1416 = vmatpush1.msra.mxu0 0.0
      %1417 = vmatprep.subr.mxu0 0.0
      %1418 = vmatpush1.msra.mxu0 0.0
      %1419 = vmatprep.subr.mxu0 0.0
      %1420 = vmatpush1.msra.mxu0 0.0
      %1421 = vmatprep.subr.mxu0 0.0
      %1422 = vmatpush1.msra.mxu0 0.0
      %1423 = vmatprep.subr.mxu0 0.0
      %1424 = vmatpush1.msra.mxu0 0.0
      %1425 = vmatprep.subr.mxu0 0.0
      %1426 = vmatpush1.msra.mxu0 0.0
      %1427 = vmatprep.subr.mxu0 0.0
      %1428 = vmatpush1.msra.mxu0 0.0
      %1429 = vmatprep.subr.mxu0 0.0
      %1430 = vmatpush1.msra.mxu0 0.0
      %1431 = vmatprep.subr.mxu0 0.0
      %1432 = vmatpush1.msra.mxu0 0.0
      %1433 = vmatprep.subr.mxu0 0.0
      %1434 = vmatpush1.msra.mxu0 0.0
      %1435 = vmatprep.subr.mxu0 0.0
      %1436 = vmatpush1.msra.mxu0 0.0
      %1437 = vmatprep.subr.mxu0 0.0
      %1438 = vmatpush1.msra.mxu0 0.0
      %1439 = vmatprep.subr.mxu0 0.0
      %1440 = vmatpush1.msra.mxu0 0.0
      %1441 = vmatprep.subr.mxu0 0.0
      %1442 = vmatpush1.msra.mxu0 0.0
      %1443 = vmatprep.subr.mxu0 0.0
      %1444 = vmatpush1.msra.mxu0 0.0
      %1445 = vmatprep.subr.mxu0 0.0
      %1446 = vmatpush1.msra.mxu0 0.0
      %1447 = vmatprep.subr.mxu0 0.0
      %1448 = vmatpush1.msra.mxu0 0.0
      %1449 = vmatprep.subr.mxu0 0.0
      %1450 = vmatpush1.msra.mxu0 0.0
      %1451 = vmatprep.subr.mxu0 0.0
      %1452 = vmatpush1.msra.mxu0 0.0
      %1453 = vmatprep.mubr.f32.mxu0 0.0
      %1454 = vmatmul.mubr.f32.gmra.mrb[0].mxu0 %v1384
      %v1455 = vpop.f32.mrb[0].mxu0
      %v1456 = vadd.f32 %v1375, %v1455
      %v1457 = vpop.f32.mrb[0].mxu0
      %v1458 = vadd.f32 %v1375, %v1457
      %1459 = vmatprep.mubr.f32.mxu0 0.0
      %1460 = vmatmul.mubr.f32.gmra.mrb[0].mxu0 %v1387
      %v1461 = vpop.f32.mrb[0].mxu0
      %v1462 = vadd.f32 %v1380, %v1461
      %v1463 = vpop.f32.mrb[0].mxu0
      %v1464 = vadd.f32 %v1380, %v1463
      %1465 = vdwg.mxu0
      %1466 = vmatprep.subr.mxu0 %v1337
      %1467 = vmatpush1.msra.mxu0 %v1336
      %1468 = vmatprep.subr.mxu0 %v1341
      %1469 = vmatpush1.msra.mxu0 %v1340
      %1470 = vmatprep.subr.mxu0 %v1345
      %1471 = vmatpush1.msra.mxu0 %v1344
      %1472 = vmatprep.subr.mxu0 %v1349
      %1473 = vmatpush1.msra.mxu0 %v1348
      %1474 = vmatprep.subr.mxu0 %v1353
      %1475 = vmatpush1.msra.mxu0 %v1352
      %1476 = vmatprep.subr.mxu0 %v1357
      %1477 = vmatpush1.msra.mxu0 %v1356
      %1478 = vmatprep.subr.mxu0 %v1361
      %1479 = vmatpush1.msra.mxu0 %v1360
      %1480 = vmatprep.subr.mxu0 %v1365
      %1481 = vmatpush1.msra.mxu0 %v1364
      %1482 = vmatprep.subr.mxu0 %v1369
      %1483 = vmatpush1.msra.mxu0 %v1368
      %1484 = vmatprep.subr.mxu0 0.0
      %1485 = vmatpush1.msra.mxu0 0.0
      %1486 = vmatprep.subr.mxu0 0.0
      %1487 = vmatpush1.msra.mxu0 0.0
      %1488 = vmatprep.subr.mxu0 0.0
      %1489 = vmatpush1.msra.mxu0 0.0
      %1490 = vmatprep.subr.mxu0 0.0
      %1491 = vmatpush1.msra.mxu0 0.0
      %1492 = vmatprep.subr.mxu0 0.0
      %1493 = vmatpush1.msra.mxu0 0.0
      %1494 = vmatprep.subr.mxu0 0.0
      %1495 = vmatpush1.msra.mxu0 0.0
      %1496 = vmatprep.subr.mxu0 0.0
      %1497 = vmatpush1.msra.mxu0 0.0
      %1498 = vmatprep.subr.mxu0 0.0
      %1499 = vmatpush1.msra.mxu0 0.0
      %1500 = vmatprep.subr.mxu0 0.0
      %1501 = vmatpush1.msra.mxu0 0.0
      %1502 = vmatprep.subr.mxu0 0.0
      %1503 = vmatpush1.msra.mxu0 0.0
      %1504 = vmatprep.subr.mxu0 0.0
      %1505 = vmatpush1.msra.mxu0 0.0
      %1506 = vmatprep.subr.mxu0 0.0
      %1507 = vmatpush1.msra.mxu0 0.0
      %1508 = vmatprep.subr.mxu0 0.0
      %1509 = vmatpush1.msra.mxu0 0.0
      %1510 = vmatprep.subr.mxu0 0.0
      %1511 = vmatpush1.msra.mxu0 0.0
      %1512 = vmatprep.subr.mxu0 0.0
      %1513 = vmatpush1.msra.mxu0 0.0
      %1514 = vmatprep.subr.mxu0 0.0
      %1515 = vmatpush1.msra.mxu0 0.0
      %1516 = vmatprep.subr.mxu0 0.0
      %1517 = vmatpush1.msra.mxu0 0.0
      %1518 = vmatprep.subr.mxu0 0.0
      %1519 = vmatpush1.msra.mxu0 0.0
      %1520 = vmatprep.subr.mxu0 0.0
      %1521 = vmatpush1.msra.mxu0 0.0
      %1522 = vmatprep.subr.mxu0 0.0
      %1523 = vmatpush1.msra.mxu0 0.0
      %1524 = vmatprep.subr.mxu0 0.0
      %1525 = vmatpush1.msra.mxu0 0.0
      %1526 = vmatprep.subr.mxu0 0.0
      %1527 = vmatpush1.msra.mxu0 0.0
      %1528 = vmatprep.subr.mxu0 0.0
      %1529 = vmatpush1.msra.mxu0 0.0
      %1530 = vmatprep.mubr.f32.mxu0 0.0
      %1531 = vmatmul.mubr.f32.gmra.mrb[0].mxu0 %v1384
      %v1532 = vpop.f32.mrb[0].mxu0
      %v1533 = vadd.f32 %v1375, %v1532
      %v1534 = vpop.f32.mrb[0].mxu0
      %v1535 = vadd.f32 %v1375, %v1534
      %1536 = vmatprep.mubr.f32.mxu0 0.0
      %1537 = vmatmul.mubr.f32.gmra.mrb[0].mxu0 %v1387
      %v1538 = vpop.f32.mrb[0].mxu0
      %v1539 = vadd.f32 %v1380, %v1538
      %v1540 = vpop.f32.mrb[0].mxu0
      %v1541 = vadd.f32 %v1380, %v1540
      %1542 = vdwg.mxu0
      %1551 = vrot.lane.b32.xlu0 %v1456, 24
      %v1552 = vpop.permute.xlu0 %1551
      %1553 = vrot.lane.b32.xlu0 %v1458, 24
      %v1554 = vpop.permute.xlu0 %1553
      %1555 = vrot.lane.b32.xlu0 %v1533, 24
      %v1556 = vpop.permute.xlu0 %1555
      %1557 = vrot.lane.b32.xlu0 %v1535, 24
      %v1558 = vpop.permute.xlu0 %1557
      %1559 = vrot.lane.b32.xlu0 %v1462, 24
      %v1560 = vpop.permute.xlu0 %1559
      %1561 = vrot.lane.b32.xlu0 %v1464, 24
      %v1562 = vpop.permute.xlu0 %1561
      %1563 = vrot.lane.b32.xlu0 %v1539, 24
      %v1564 = vpop.permute.xlu0 %1563
      %1565 = vrot.lane.b32.xlu0 %v1541, 24
      %v1566 = vpop.permute.xlu0 %1565
      %v1567 = vsel %vm303, %v1552, %v1554
      %v1568 = vsel %vm303, %v1554, %v1556
      %v1569 = vsel %vm303, %v1556, %v1558
      %v1570 = vsel %vm303, %v1560, %v1562
      %v1571 = vsel %vm303, %v1562, %v1564
      %v1572 = vsel %vm303, %v1564, %v1566
      %vm1583 = vcmask 1047744
      %1584 = vst.msk [vmem:[#allocation2] sm:$0xff] %vm1583, %v1552
      %1585 = vst [vmem:[#allocation2 + $0x8] sm:$0xff] %v1567
      %1586 = vst [vmem:[#allocation2 + $0x10] sm:$0xff] %v1568
      %1587 = vst [vmem:[#allocation2 + $0x18] sm:$0xff] %v1569
      %1588 = vst.msk [vmem:[#allocation2 + $0x20] sm:$0xff] %vm303, %v1558
      %vm1589 = vcmask 1041600
      %1590 = vst.msk [vmem:[#allocation2 + $0x28] sm:$0x3] %vm1589, %v1560
      %1591 = vst [vmem:[#allocation2 + $0x30] sm:$0x3] %v1570
      %1592 = vst [vmem:[#allocation2 + $0x38] sm:$0x3] %v1571
      %1593 = vst [vmem:[#allocation2 + $0x40] sm:$0x3] %v1572
      %1594 = vst.msk [vmem:[#allocation2 + $0x48] sm:$0x3] %vm305, %v1566
      %v1595 = vld [vmem:[#allocation2] sm:$0xff]
      %v1596 = vld [vmem:[#allocation2 + $0x8] sm:$0xff]
      %v1597 = vld [vmem:[#allocation2 + $0x10] sm:$0xff]
      %v1598 = vld [vmem:[#allocation2 + $0x18] sm:$0xff]
      %v1599 = vld [vmem:[#allocation2 + $0x20] sm:$0xff]
      %v1600 = vld [vmem:[#allocation2 + $0x28] sm:$0x3]
      %v1601 = vld [vmem:[#allocation2 + $0x30] sm:$0x3]
      %v1602 = vld [vmem:[#allocation2 + $0x38] sm:$0x3]
      %v1603 = vld [vmem:[#allocation2 + $0x40] sm:$0x3]
      %v1604 = vld [vmem:[#allocation2 + $0x48] sm:$0x3]
      %1615 = vrot.lane.b32.xlu0 %v1595, 103
      %v1616 = vpop.permute.xlu0 %1615
      %1617 = vrot.lane.b32.xlu0 %v1596, 103
      %v1618 = vpop.permute.xlu0 %1617
      %1619 = vrot.lane.b32.xlu0 %v1597, 103
      %v1620 = vpop.permute.xlu0 %1619
      %1621 = vrot.lane.b32.xlu0 %v1598, 103
      %v1622 = vpop.permute.xlu0 %1621
      %1623 = vrot.lane.b32.xlu0 %v1599, 103
      %v1624 = vpop.permute.xlu0 %1623
      %1625 = vrot.lane.b32.xlu0 %v1600, 103
      %v1626 = vpop.permute.xlu0 %1625
      %1627 = vrot.lane.b32.xlu0 %v1601, 103
      %v1628 = vpop.permute.xlu0 %1627
      %1629 = vrot.lane.b32.xlu0 %v1602, 103
      %v1630 = vpop.permute.xlu0 %1629
      %1631 = vrot.lane.b32.xlu0 %v1603, 103
      %v1632 = vpop.permute.xlu0 %1631
      %1633 = vrot.lane.b32.xlu0 %v1604, 103
      %v1634 = vpop.permute.xlu0 %1633
      %v1635 = vsel %vm447, %v1616, %v1618
      %v1636 = vsel %vm447, %v1618, %v1620
      %v1637 = vsel %vm447, %v1620, %v1622
      %v1638 = vsel %vm447, %v1622, %v1624
      %v1639 = vsel %vm447, %v1626, %v1628
      %v1640 = vsel %vm447, %v1628, %v1630
      %v1641 = vsel %vm447, %v1630, %v1632
      %v1642 = vsel %vm447, %v1632, %v1634
      %v1651 = vmax.f32 %v1456, %v1635
      %v1652 = vmax.f32 %v1458, %v1636
      %v1653 = vmax.f32 %v1533, %v1637
      %v1654 = vmax.f32 %v1535, %v1638
      %v1655 = vmax.f32 %v1462, %v1639
      %v1656 = vmax.f32 %v1464, %v1640
      %v1657 = vmax.f32 %v1539, %v1641
      %v1658 = vmax.f32 %v1541, %v1642
      %1659 = vrot.lane.b32.xlu0 %v1595, 127
      %v1660 = vpop.permute.xlu0 %1659
      %1661 = vrot.lane.b32.xlu0 %v1596, 127
      %v1662 = vpop.permute.xlu0 %1661
      %1663 = vrot.lane.b32.xlu0 %v1597, 127
      %v1664 = vpop.permute.xlu0 %1663
      %1665 = vrot.lane.b32.xlu0 %v1598, 127
      %v1666 = vpop.permute.xlu0 %1665
      %1667 = vrot.lane.b32.xlu0 %v1599, 127
      %v1668 = vpop.permute.xlu0 %1667
      %1669 = vrot.lane.b32.xlu0 %v1600, 127
      %v1670 = vpop.permute.xlu0 %1669
      %1671 = vrot.lane.b32.xlu0 %v1601, 127
      %v1672 = vpop.permute.xlu0 %1671
      %1673 = vrot.lane.b32.xlu0 %v1602, 127
      %v1674 = vpop.permute.xlu0 %1673
      %1675 = vrot.lane.b32.xlu0 %v1603, 127
      %v1676 = vpop.permute.xlu0 %1675
      %1677 = vrot.lane.b32.xlu0 %v1604, 127
      %v1678 = vpop.permute.xlu0 %1677
      %vm1679 = vcmask 1039360
      %v1680 = vsel %vm1679, %v1660, %v1662
      %v1681 = vsel %vm1679, %v1662, %v1664
      %v1682 = vsel %vm1679, %v1664, %v1666
      %v1683 = vsel %vm1679, %v1666, %v1668
      %v1684 = vsel %vm1679, %v1670, %v1672
      %v1685 = vsel %vm1679, %v1672, %v1674
      %v1686 = vsel %vm1679, %v1674, %v1676
      %v1687 = vsel %vm1679, %v1676, %v1678
      %v1698 = vmax.f32 %v1595, %v1680
      %v1699 = vmax.f32 %v1596, %v1681
      %v1700 = vmax.f32 %v1597, %v1682
      %v1701 = vmax.f32 %v1598, %v1683
      %v1702 = vmax.f32 %v1599, %v1668
      %v1703 = vmax.f32 %v1600, %v1684
      %v1704 = vmax.f32 %v1601, %v1685
      %v1705 = vmax.f32 %v1602, %v1686
      %v1706 = vmax.f32 %v1603, %v1687
      %v1707 = vmax.f32 %v1604, %v1678
      %1718 = vrot.lane.b32.xlu0 %v1698, 88
      %v1719 = vpop.permute.xlu0 %1718
      %1720 = vrot.lane.b32.xlu0 %v1699, 88
      %v1721 = vpop.permute.xlu0 %1720
      %1722 = vrot.lane.b32.xlu0 %v1700, 88
      %v1723 = vpop.permute.xlu0 %1722
      %1724 = vrot.lane.b32.xlu0 %v1701, 88
      %v1725 = vpop.permute.xlu0 %1724
      %1726 = vrot.lane.b32.xlu0 %v1702, 88
      %v1727 = vpop.permute.xlu0 %1726
      %1728 = vrot.lane.b32.xlu0 %v1703, 88
      %v1729 = vpop.permute.xlu0 %1728
      %1730 = vrot.lane.b32.xlu0 %v1704, 88
      %v1731 = vpop.permute.xlu0 %1730
      %1732 = vrot.lane.b32.xlu0 %v1705, 88
      %v1733 = vpop.permute.xlu0 %1732
      %1734 = vrot.lane.b32.xlu0 %v1706, 88
      %v1735 = vpop.permute.xlu0 %1734
      %1736 = vrot.lane.b32.xlu0 %v1707, 88
      %v1737 = vpop.permute.xlu0 %1736
      %v1738 = vsel %vm493, %v1719, %v1721
      %v1739 = vsel %vm493, %v1721, %v1723
      %v1740 = vsel %vm493, %v1723, %v1725
      %v1741 = vsel %vm493, %v1725, %v1727
      %v1742 = vsel %vm493, %v1729, %v1731
      %v1743 = vsel %vm493, %v1731, %v1733
      %v1744 = vsel %vm493, %v1733, %v1735
      %v1745 = vsel %vm493, %v1735, %v1737
      %v1754 = vmax.f32 %v1651, %v1738
      %v1755 = vmax.f32 %v1652, %v1739
      %v1756 = vmax.f32 %v1653, %v1740
      %v1757 = vmax.f32 %v1654, %v1741
      %v1758 = vmax.f32 %v1655, %v1742
      %v1759 = vmax.f32 %v1656, %v1743
      %v1760 = vmax.f32 %v1657, %v1744
      %v1761 = vmax.f32 %v1658, %v1745
      %v1764 = vcombine.low %v1754, %v1755
      %v1766 = vunpack.c.l.s4 1966171168
      %v1767 = vunpack.c.0.s8 %v1766
      %v1768 = vlaneseq
      %v1769 = vshrl.u32 %v1768, 7
      %v1770 = vsub.s32 %v1767, %v1769
      %v1771 = vrot.slane %v1764, %v1770
      %v1773 = vunpack.c.l.s4 1966171168
      %v1774 = vunpack.c.0.s8 %v1773
      %v1775 = vlaneseq
      %v1776 = vshrl.u32 %v1775, 7
      %v1777 = vsub.s32 %v1774, %v1776
      %v1778 = vrot.slane %v1771, %v1777
      %vm1780 = vcmp.lt.s32.totalorder %v318, 256
      %vm1781 = vmand %vm343, %vm1780
      %1782 = vst.msk [vmem:[#allocation5] ss:$2 sm:$0x3] %vm1781, %v1778
      %v1783 = vcombine.high %v1771, %v1771
      %v1785 = vunpack.c.l.s4 1966171168
      %v1786 = vunpack.c.0.s8 %v1785
      %v1787 = vlaneseq
      %v1788 = vshrl.u32 %v1787, 7
      %v1789 = vsub.s32 %v1786, %v1788
      %v1790 = vrot.slane %v1783, %v1789
      %s1792 = scalar_lea.vmem [#allocation5], 4
      %1793 = vst.msk [vmem:[%s1792] ss:$2 sm:$0x3] %vm1781, %v1790
      %v1794 = vcombine.high %v1778, %v1778
      %s1796 = scalar_lea.vmem [#allocation5], 8
      %1797 = vst.msk [vmem:[%s1796] ss:$2 sm:$0x3] %vm1781, %v1794
      %v1798 = vcombine.high %v1790, %v1790
      %s1800 = scalar_lea.vmem [#allocation5], 12
      %1801 = vst.msk [vmem:[%s1800] ss:$2 sm:$0x3] %vm1781, %v1798
      %v1802 = vcombine.high %v1754, %v1755
      %v1804 = vunpack.c.l.s4 1966171168
      %v1805 = vunpack.c.0.s8 %v1804
      %v1806 = vlaneseq
      %v1807 = vshrl.u32 %v1806, 7
      %v1808 = vsub.s32 %v1805, %v1807
      %v1809 = vrot.slane %v1802, %v1808
      %v1811 = vunpack.c.l.s4 1966171168
      %v1812 = vunpack.c.0.s8 %v1811
      %v1813 = vlaneseq
      %v1814 = vshrl.u32 %v1813, 7
      %v1815 = vsub.s32 %v1812, %v1814
      %v1816 = vrot.slane %v1809, %v1815
      %s1818 = scalar_lea.vmem [#allocation5], 16
      %1819 = vst.msk [vmem:[%s1818] ss:$2 sm:$0x3] %vm1781, %v1816
      %v1820 = vcombine.high %v1809, %v1809
      %v1822 = vunpack.c.l.s4 1966171168
      %v1823 = vunpack.c.0.s8 %v1822
      %v1824 = vlaneseq
      %v1825 = vshrl.u32 %v1824, 7
      %v1826 = vsub.s32 %v1823, %v1825
      %v1827 = vrot.slane %v1820, %v1826
      %s1829 = scalar_lea.vmem [#allocation5], 20
      %1830 = vst.msk [vmem:[%s1829] ss:$2 sm:$0x3] %vm1781, %v1827
      %v1831 = vcombine.high %v1816, %v1816
      %s1833 = scalar_lea.vmem [#allocation5], 24
      %1834 = vst.msk [vmem:[%s1833] ss:$2 sm:$0x3] %vm1781, %v1831
      %v1835 = vcombine.high %v1827, %v1827
      %s1837 = scalar_lea.vmem [#allocation5], 28
      %1838 = vst.msk [vmem:[%s1837] ss:$2 sm:$0x3] %vm1781, %v1835
      %v1841 = vcombine.low %v1758, %v1759
      %v1843 = vunpack.c.l.s4 1966171168
      %v1844 = vunpack.c.0.s8 %v1843
      %v1845 = vlaneseq
      %v1846 = vshrl.u32 %v1845, 7
      %v1847 = vsub.s32 %v1844, %v1846
      %v1848 = vrot.slane %v1841, %v1847
      %v1850 = vunpack.c.l.s4 1966171168
      %v1851 = vunpack.c.0.s8 %v1850
      %v1852 = vlaneseq
      %v1853 = vshrl.u32 %v1852, 7
      %v1854 = vsub.s32 %v1851, %v1853
      %v1855 = vrot.slane %v1848, %v1854
      %s1857 = scalar_lea.vmem [#allocation5], 32
      %1858 = vst.msk [vmem:[%s1857] ss:$2 sm:$0x3] %vm1781, %v1855
      %v1859 = vcombine.high %v1848, %v1848
      %v1861 = vunpack.c.l.s4 1966171168
      %v1862 = vunpack.c.0.s8 %v1861
      %v1863 = vlaneseq
      %v1864 = vshrl.u32 %v1863, 7
      %v1865 = vsub.s32 %v1862, %v1864
      %v1866 = vrot.slane %v1859, %v1865
      %s1868 = scalar_lea.vmem [#allocation5], 36
      %1869 = vst.msk [vmem:[%s1868] ss:$2 sm:$0x3] %vm1781, %v1866
      %v1872 = vcombine.low %v1756, %v1757
      %v1874 = vunpack.c.l.s4 1966171168
      %v1875 = vunpack.c.0.s8 %v1874
      %v1876 = vlaneseq
      %v1877 = vshrl.u32 %v1876, 7
      %v1878 = vsub.s32 %v1875, %v1877
      %v1879 = vrot.slane %v1872, %v1878
      %v1881 = vunpack.c.l.s4 1966171168
      %v1882 = vunpack.c.0.s8 %v1881
      %v1883 = vlaneseq
      %v1884 = vshrl.u32 %v1883, 7
      %v1885 = vsub.s32 %v1882, %v1884
      %v1886 = vrot.slane %v1879, %v1885
      %s1888 = scalar_lea.vmem [#allocation5], 1
      %1889 = vst.msk [vmem:[%s1888] ss:$2 sm:$0x3] %vm1781, %v1886
      %v1890 = vcombine.high %v1879, %v1879
      %v1892 = vunpack.c.l.s4 1966171168
      %v1893 = vunpack.c.0.s8 %v1892
      %v1894 = vlaneseq
      %v1895 = vshrl.u32 %v1894, 7
      %v1896 = vsub.s32 %v1893, %v1895
      %v1897 = vrot.slane %v1890, %v1896
      %s1899 = scalar_lea.vmem [#allocation5], 5
      %1900 = vst.msk [vmem:[%s1899] ss:$2 sm:$0x3] %vm1781, %v1897
      %v1901 = vcombine.high %v1886, %v1886
      %s1903 = scalar_lea.vmem [#allocation5], 9
      %1904 = vst.msk [vmem:[%s1903] ss:$2 sm:$0x3] %vm1781, %v1901
      %v1905 = vcombine.high %v1897, %v1897
      %s1907 = scalar_lea.vmem [#allocation5], 13
      %1908 = vst.msk [vmem:[%s1907] ss:$2 sm:$0x3] %vm1781, %v1905
      %v1909 = vcombine.high %v1756, %v1757
      %v1911 = vunpack.c.l.s4 1966171168
      %v1912 = vunpack.c.0.s8 %v1911
      %v1913 = vlaneseq
      %v1914 = vshrl.u32 %v1913, 7
      %v1915 = vsub.s32 %v1912, %v1914
      %v1916 = vrot.slane %v1909, %v1915
      %v1918 = vunpack.c.l.s4 1966171168
      %v1919 = vunpack.c.0.s8 %v1918
      %v1920 = vlaneseq
      %v1921 = vshrl.u32 %v1920, 7
      %v1922 = vsub.s32 %v1919, %v1921
      %v1923 = vrot.slane %v1916, %v1922
      %s1925 = scalar_lea.vmem [#allocation5], 17
      %1926 = vst.msk [vmem:[%s1925] ss:$2 sm:$0x3] %vm1781, %v1923
      %v1927 = vcombine.high %v1916, %v1916
      %v1929 = vunpack.c.l.s4 1966171168
      %v1930 = vunpack.c.0.s8 %v1929
      %v1931 = vlaneseq
      %v1932 = vshrl.u32 %v1931, 7
      %v1933 = vsub.s32 %v1930, %v1932
      %v1934 = vrot.slane %v1927, %v1933
      %s1936 = scalar_lea.vmem [#allocation5], 21
      %1937 = vst.msk [vmem:[%s1936] ss:$2 sm:$0x3] %vm1781, %v1934
      %v1938 = vcombine.high %v1923, %v1923
      %s1940 = scalar_lea.vmem [#allocation5], 25
      %1941 = vst.msk [vmem:[%s1940] ss:$2 sm:$0x3] %vm1781, %v1938
      %v1942 = vcombine.high %v1934, %v1934
      %s1944 = scalar_lea.vmem [#allocation5], 29
      %1945 = vst.msk [vmem:[%s1944] ss:$2 sm:$0x3] %vm1781, %v1942
      %v1948 = vcombine.low %v1760, %v1761
      %v1950 = vunpack.c.l.s4 1966171168
      %v1951 = vunpack.c.0.s8 %v1950
      %v1952 = vlaneseq
      %v1953 = vshrl.u32 %v1952, 7
      %v1954 = vsub.s32 %v1951, %v1953
      %v1955 = vrot.slane %v1948, %v1954
      %v1957 = vunpack.c.l.s4 1966171168
      %v1958 = vunpack.c.0.s8 %v1957
      %v1959 = vlaneseq
      %v1960 = vshrl.u32 %v1959, 7
      %v1961 = vsub.s32 %v1958, %v1960
      %v1962 = vrot.slane %v1955, %v1961
      %s1964 = scalar_lea.vmem [#allocation5], 33
      %1965 = vst.msk [vmem:[%s1964] ss:$2 sm:$0x3] %vm1781, %v1962
      %v1966 = vcombine.high %v1955, %v1955
      %v1968 = vunpack.c.l.s4 1966171168
      %v1969 = vunpack.c.0.s8 %v1968
      %v1970 = vlaneseq
      %v1971 = vshrl.u32 %v1970, 7
      %v1972 = vsub.s32 %v1969, %v1971
      %v1973 = vrot.slane %v1966, %v1972
      %s1975 = scalar_lea.vmem [#allocation5], 37
      %1976 = vst.msk [vmem:[%s1975] ss:$2 sm:$0x3] %vm1781, %v1973
      %v1977 = vld [vmem:[#allocation5] sm:$0xff]
      %v1978 = vld [vmem:[#allocation5 + $0x8] sm:$0xff]
      %v1979 = vld [vmem:[#allocation5 + $0x10] sm:$0xff]
      %v1980 = vld [vmem:[#allocation5 + $0x18] sm:$0xff]
      %v1981 = vld [vmem:[#allocation5 + $0x20] sm:$0xff]
      %v1982 = vld [vmem:[%s6] sm:$0xff]
      %v1983 = vld [vmem:[%s6 + $0x8] sm:$0xff]
      %v1984 = vld [vmem:[%s6 + $0x10] sm:$0xff]
      %v1985 = vld [vmem:[%s6 + $0x18] sm:$0xff]
      %v1986 = vld [vmem:[%s6 + $0x20] sm:$0xff]
      %v1987 = vld [vmem:[%s6 + $0x28] sm:$0xff]
      %v1988 = vld [vmem:[%s6 + $0x30] sm:$0xff]
      %v1989 = vld [vmem:[%s6 + $0x38] sm:$0xff]
      %v1990 = vld [vmem:[%s6 + $0x40] sm:$0xff]
      %v1991 = vld [vmem:[%s6 + $0x48] sm:$0xff]
      %v1992 = vld [vmem:[%s6 + $0x50] sm:$0xff]
      %v1993 = vld [vmem:[%s6 + $0x58] sm:$0xff]
      %v1994 = vld [vmem:[%s6 + $0x60] sm:$0xff]
      %v1995 = vld [vmem:[%s6 + $0x68] sm:$0xff]
      %v1996 = vld [vmem:[%s6 + $0x70] sm:$0xff]
      %v1997 = vld [vmem:[%s6 + $0x78] sm:$0xff]
      %v1998 = vld [vmem:[%s6 + $0x80] sm:$0xff]
      %v1999 = vld [vmem:[%s6 + $0x88] sm:$0xff]
      %v2000 = vld [vmem:[%s6 + $0x90] sm:$0xff]
      %v2001 = vld [vmem:[%s6 + $0x98] sm:$0xff]
      %v2002 = vld [vmem:[%s6 + $0xa0] sm:$0xff]
      %v2003 = vld [vmem:[%s6 + $0xa8] sm:$0xff]
      %v2004 = vld [vmem:[%s6 + $0xb0] sm:$0xff]
      %v2005 = vld [vmem:[%s6 + $0xb8] sm:$0xff]
      %v2006 = vld [vmem:[%s6 + $0xc0] sm:$0xff]
      %v2007 = vld [vmem:[%s6 + $0xc8] sm:$0xff]
      %v2008 = vld [vmem:[%s6 + $0xd0] sm:$0xff]
      %v2009 = vld [vmem:[%s6 + $0xd8] sm:$0xff]
      %v2010 = vld [vmem:[%s6 + $0xe0] sm:$0xff]
      %v2011 = vld [vmem:[%s6 + $0xe8] sm:$0xff]
      %v2012 = vld [vmem:[%s6 + $0xf0] sm:$0xff]
      %v2013 = vld [vmem:[%s6 + $0xf8] sm:$0xff]
      %v2014 = vld [vmem:[%s6 + $0x100] sm:$0xff]
      %v2015 = vld [vmem:[%s6 + $0x108] sm:$0xff]
      %v2016 = vld [vmem:[%s6 + $0x110] sm:$0xff]
      %v2017 = vld [vmem:[%s6 + $0x118] sm:$0xff]
      %v2018 = vld [vmem:[%s6 + $0x120] sm:$0xff]
      %v2019 = vld [vmem:[%s6 + $0x128] sm:$0xff]
      %v2020 = vld [vmem:[%s6 + $0x130] sm:$0xff]
      %v2021 = vld [vmem:[%s6 + $0x138] sm:$0xff]
      %v2022 = vld [vmem:[%s6 + $0x140] sm:$0xff]
      %v2023 = vld [vmem:[%s6 + $0x148] sm:$0xff]
      %v2024 = vld [vmem:[%s6 + $0x150] sm:$0xff]
      %v2025 = vld [vmem:[%s6 + $0x158] sm:$0xff]
      %v2026 = vld [vmem:[%s6 + $0x160] sm:$0xff]
      %v2027 = vld [vmem:[%s6 + $0x168] sm:$0xff]
      %v2028 = vld [vmem:[%s6 + $0x170] sm:$0xff]
      %v2029 = vld [vmem:[%s6 + $0x178] sm:$0xff]
      %v2030 = vld [vmem:[%s6 + $0x180] sm:$0xff]
      %v2031 = vld [vmem:[%s6 + $0x188] sm:$0xff]
      %v2032 = vld [vmem:[%s6 + $0x190] sm:$0xff]
      %v2033 = vld [vmem:[%s6 + $0x198] sm:$0xff]
      %v2034 = vld [vmem:[%s6 + $0x1a0] sm:$0xff]
      %v2035 = vld [vmem:[%s6 + $0x1a8] sm:$0xff]
      %v2036 = vld [vmem:[%s6 + $0x1b0] sm:$0xff]
      %v2037 = vld [vmem:[%s6 + $0x1b8] sm:$0xff]
      %v2038 = vld [vmem:[%s6 + $0x1c0] sm:$0xff]
      %v2039 = vld [vmem:[%s6 + $0x1c8] sm:$0xff]
      %v2040 = vld [vmem:[%s6 + $0x1d0] sm:$0xff]
      %v2041 = vld [vmem:[%s6 + $0x1d8] sm:$0xff]
      %v2042 = vld [vmem:[%s6 + $0x1e0] sm:$0xff]
      %v2043 = vld [vmem:[%s6 + $0x1e8] sm:$0xff]
      %v2044 = vld [vmem:[%s6 + $0x1f0] sm:$0xff]
      %v2045 = vld [vmem:[%s6 + $0x1f8] sm:$0xff]
      %v2046 = vld [vmem:[%s6 + $0x200] sm:$0xff]
      %v2047 = vld [vmem:[%s6 + $0x208] sm:$0xff]
      %v2048 = vld [vmem:[%s6 + $0x210] sm:$0xff]
      %v2049 = vld [vmem:[%s6 + $0x218] sm:$0xff]
      %v2050 = vld [vmem:[%s6 + $0x220] sm:$0xff]
      %v2051 = vld [vmem:[%s6 + $0x228] sm:$0xff]
      %v2052 = vld [vmem:[%s6 + $0x230] sm:$0xff]
      %v2053 = vld [vmem:[%s6 + $0x238] sm:$0xff]
      %v2054 = vld [vmem:[%s6 + $0x240] sm:$0xff]
      %v2055 = vld [vmem:[%s6 + $0x248] sm:$0xff]
      %v2056 = vld [vmem:[%s6 + $0x250] sm:$0xff]
      %v2057 = vld [vmem:[%s6 + $0x258] sm:$0xff]
      %v2058 = vld [vmem:[%s6 + $0x260] sm:$0xff]
      %v2059 = vld [vmem:[%s6 + $0x268] sm:$0xff]
      %v2060 = vld [vmem:[%s6 + $0x270] sm:$0xff]
      %v2061 = vld [vmem:[%s6 + $0x278] sm:$0xff]
      %v2062 = vld [vmem:[%s6 + $0x280] sm:$0xff]
      %v2063 = vld [vmem:[%s6 + $0x288] sm:$0xff]
      %v2064 = vld [vmem:[%s6 + $0x290] sm:$0xff]
      %v2065 = vld [vmem:[%s6 + $0x298] sm:$0xff]
      %v2066 = vld [vmem:[%s6 + $0x2a0] sm:$0xff]
      %v2067 = vld [vmem:[%s6 + $0x2a8] sm:$0xff]
      %v2068 = vld [vmem:[%s6 + $0x2b0] sm:$0xff]
      %v2069 = vld [vmem:[%s6 + $0x2b8] sm:$0xff]
      %v2070 = vld [vmem:[%s6 + $0x2c0] sm:$0xff]
      %v2071 = vld [vmem:[%s6 + $0x2c8] sm:$0xff]
      %v2072 = vld [vmem:[%s6 + $0x2d0] sm:$0xff]
      %v2073 = vld [vmem:[%s6 + $0x2d8] sm:$0xff]
      %v2074 = vld [vmem:[%s6 + $0x2e0] sm:$0xff]
      %v2075 = vld [vmem:[%s6 + $0x2e8] sm:$0xff]
      %v2076 = vld [vmem:[%s6 + $0x2f0] sm:$0xff]
      %v2077 = vld [vmem:[%s6 + $0x2f8] sm:$0xff]
      %v2078 = vld [vmem:[%s6 + $0x300] sm:$0xff]
      %v2079 = vld [vmem:[%s6 + $0x308] sm:$0xff]
      %v2080 = vld [vmem:[%s6 + $0x310] sm:$0xff]
      %v2081 = vld [vmem:[%s6 + $0x318] sm:$0xff]
      %v2082 = vld [vmem:[%s6 + $0x320] sm:$0xff]
      %v2083 = vld [vmem:[%s6 + $0x328] sm:$0xff]
      %v2084 = vld [vmem:[%s6 + $0x330] sm:$0xff]
      %v2085 = vld [vmem:[%s6 + $0x338] sm:$0xff]
      %v2086 = vld [vmem:[%s6 + $0x340] sm:$0xff]
      %v2087 = vld [vmem:[%s6 + $0x348] sm:$0xff]
      %v2088 = vld [vmem:[%s6 + $0x350] sm:$0xff]
      %v2089 = vld [vmem:[%s6 + $0x358] sm:$0xff]
      %v2090 = vld [vmem:[%s6 + $0x360] sm:$0xff]
      %v2091 = vld [vmem:[%s6 + $0x368] sm:$0xff]
      %v2092 = vld [vmem:[%s6 + $0x370] sm:$0xff]
      %v2093 = vld [vmem:[%s6 + $0x378] sm:$0xff]
      %v2094 = vld [vmem:[%s6 + $0x380] sm:$0xff]
      %v2095 = vld [vmem:[%s6 + $0x388] sm:$0xff]
      %v2096 = vld [vmem:[%s6 + $0x390] sm:$0xff]
      %v2097 = vld [vmem:[%s6 + $0x398] sm:$0xff]
      %v2098 = vld [vmem:[%s6 + $0x3a0] sm:$0xff]
      %v2099 = vld [vmem:[%s6 + $0x3a8] sm:$0xff]
      %v2100 = vld [vmem:[%s6 + $0x3b0] sm:$0xff]
      %v2101 = vld [vmem:[%s6 + $0x3b8] sm:$0xff]
      %v2102 = vld [vmem:[%s6 + $0x3c0] sm:$0xff]
      %v2103 = vld [vmem:[%s6 + $0x3c8] sm:$0xff]
      %v2104 = vld [vmem:[%s6 + $0x3d0] sm:$0xff]
      %v2105 = vld [vmem:[%s6 + $0x3d8] sm:$0xff]
      %v2106 = vld [vmem:[%s6 + $0x3e0] sm:$0xff]
      %v2107 = vld [vmem:[%s6 + $0x3e8] sm:$0xff]
      %v2108 = vld [vmem:[%s6 + $0x3f0] sm:$0xff]
      %v2109 = vld [vmem:[%s6 + $0x3f8] sm:$0xff]
      %v2110 = vld [vmem:[%s6 + $0x400] sm:$0xff]
      %v2111 = vld [vmem:[%s6 + $0x408] sm:$0xff]
      %v2112 = vld [vmem:[%s6 + $0x410] sm:$0xff]
      %v2113 = vld [vmem:[%s6 + $0x418] sm:$0xff]
      %v2114 = vld [vmem:[%s6 + $0x420] sm:$0xff]
      %v2115 = vld [vmem:[%s6 + $0x428] sm:$0xff]
      %v2116 = vld [vmem:[%s6 + $0x430] sm:$0xff]
      %v2117 = vld [vmem:[%s6 + $0x438] sm:$0xff]
      %v2118 = vld [vmem:[%s6 + $0x440] sm:$0xff]
      %v2119 = vld [vmem:[%s6 + $0x448] sm:$0xff]
      %v2120 = vld [vmem:[%s6 + $0x450] sm:$0xff]
      %v2121 = vld [vmem:[%s6 + $0x458] sm:$0xff]
      %v2122 = vld [vmem:[%s6 + $0x460] sm:$0xff]
      %v2123 = vld [vmem:[%s6 + $0x468] sm:$0xff]
      %v2124 = vld [vmem:[%s6 + $0x470] sm:$0xff]
      %v2125 = vld [vmem:[%s6 + $0x478] sm:$0xff]
      %v2126 = vld [vmem:[%s6 + $0x480] sm:$0xff]
      %v2127 = vld [vmem:[%s6 + $0x488] sm:$0xff]
      %v2128 = vld [vmem:[%s6 + $0x490] sm:$0xff]
      %v2129 = vld [vmem:[%s6 + $0x498] sm:$0xff]
      %v2130 = vld [vmem:[%s6 + $0x4a0] sm:$0xff]
      %v2131 = vld [vmem:[%s6 + $0x4a8] sm:$0xff]
      %v2132 = vld [vmem:[%s6 + $0x4b0] sm:$0xff]
      %v2133 = vld [vmem:[%s6 + $0x4b8] sm:$0xff]
      %v2134 = vld [vmem:[%s6 + $0x4c0] sm:$0xff]
      %v2135 = vld [vmem:[%s6 + $0x4c8] sm:$0xff]
      %v2136 = vld [vmem:[%s6 + $0x4d0] sm:$0xff]
      %v2137 = vld [vmem:[%s6 + $0x4d8] sm:$0xff]
      %v2138 = vld [vmem:[%s6 + $0x4e0] sm:$0xff]
      %v2139 = vld [vmem:[%s6 + $0x4e8] sm:$0xff]
      %v2140 = vld [vmem:[%s6 + $0x4f0] sm:$0xff]
      %v2141 = vld [vmem:[%s6 + $0x4f8] sm:$0xff]
      %v2142 = vld [vmem:[%s6 + $0x500] sm:$0xff]
      %v2143 = vld [vmem:[%s6 + $0x508] sm:$0xff]
      %v2144 = vld [vmem:[%s6 + $0x510] sm:$0xff]
      %v2145 = vld [vmem:[%s6 + $0x518] sm:$0xff]
      %v2146 = vld [vmem:[%s6 + $0x520] sm:$0xff]
      %v2147 = vld [vmem:[%s6 + $0x528] sm:$0xff]
      %v2148 = vld [vmem:[%s6 + $0x530] sm:$0xff]
      %v2149 = vld [vmem:[%s6 + $0x538] sm:$0xff]
      %v2150 = vld [vmem:[%s6 + $0x540] sm:$0xff]
      %v2151 = vld [vmem:[%s6 + $0x548] sm:$0xff]
      %v2152 = vld [vmem:[%s6 + $0x550] sm:$0xff]
      %v2153 = vld [vmem:[%s6 + $0x558] sm:$0xff]
      %v2154 = vld [vmem:[%s6 + $0x560] sm:$0xff]
      %v2155 = vld [vmem:[%s6 + $0x568] sm:$0xff]
      %v2156 = vld [vmem:[%s6 + $0x570] sm:$0xff]
      %v2157 = vld [vmem:[%s6 + $0x578] sm:$0xff]
      %v2158 = vld [vmem:[%s6 + $0x580] sm:$0xff]
      %v2159 = vld [vmem:[%s6 + $0x588] sm:$0xff]
      %v2160 = vld [vmem:[%s6 + $0x590] sm:$0xff]
      %v2161 = vld [vmem:[%s6 + $0x598] sm:$0xff]
      %v2162 = vld [vmem:[%s6 + $0x5a0] sm:$0xff]
      %v2163 = vld [vmem:[%s6 + $0x5a8] sm:$0xff]
      %v2164 = vld [vmem:[%s6 + $0x5b0] sm:$0xff]
      %v2165 = vld [vmem:[%s6 + $0x5b8] sm:$0xff]
      %v2166 = vld [vmem:[%s6 + $0x5c0] sm:$0xff]
      %v2167 = vld [vmem:[%s6 + $0x5c8] sm:$0xff]
      %v2168 = vld [vmem:[%s6 + $0x5d0] sm:$0xff]
      %v2169 = vld [vmem:[%s6 + $0x5d8] sm:$0xff]
      %v2170 = vld [vmem:[%s6 + $0x5e0] sm:$0xff]
      %v2171 = vld [vmem:[%s6 + $0x5e8] sm:$0xff]
      %v2172 = vld [vmem:[%s6 + $0x5f0] sm:$0xff]
      %v2173 = vld [vmem:[%s6 + $0x5f8] sm:$0xff]
      %v2174 = vld [vmem:[%s6 + $0x600] sm:$0xff]
      %v2175 = vld [vmem:[%s6 + $0x608] sm:$0xff]
      %v2176 = vld [vmem:[%s6 + $0x610] sm:$0xff]
      %v2177 = vld [vmem:[%s6 + $0x618] sm:$0xff]
      %v2178 = vld [vmem:[%s6 + $0x620] sm:$0xff]
      %v2179 = vld [vmem:[%s6 + $0x628] sm:$0xff]
      %v2180 = vld [vmem:[%s6 + $0x630] sm:$0xff]
      %v2181 = vld [vmem:[%s6 + $0x638] sm:$0xff]
      %v2182 = vld [vmem:[%s6 + $0x640] sm:$0xff]
      %v2183 = vld [vmem:[%s6 + $0x648] sm:$0xff]
      %v2184 = vld [vmem:[%s6 + $0x650] sm:$0xff]
      %v2185 = vld [vmem:[%s6 + $0x658] sm:$0xff]
      %v2186 = vld [vmem:[%s6 + $0x660] sm:$0xff]
      %v2187 = vld [vmem:[%s6 + $0x668] sm:$0xff]
      %v2188 = vld [vmem:[%s6 + $0x670] sm:$0xff]
      %v2189 = vld [vmem:[%s6 + $0x678] sm:$0xff]
      %v2190 = vld [vmem:[%s6 + $0x680] sm:$0xff]
      %v2191 = vld [vmem:[%s6 + $0x688] sm:$0xff]
      %v2192 = vld [vmem:[%s6 + $0x690] sm:$0xff]
      %v2193 = vld [vmem:[%s6 + $0x698] sm:$0xff]
      %v2194 = vld [vmem:[%s6 + $0x6a0] sm:$0xff]
      %v2195 = vld [vmem:[%s6 + $0x6a8] sm:$0xff]
      %v2196 = vld [vmem:[%s6 + $0x6b0] sm:$0xff]
      %v2197 = vld [vmem:[%s6 + $0x6b8] sm:$0xff]
      %v2198 = vld [vmem:[%s6 + $0x6c0] sm:$0xff]
      %v2199 = vld [vmem:[%s6 + $0x6c8] sm:$0xff]
      %v2200 = vld [vmem:[%s6 + $0x6d0] sm:$0xff]
      %v2201 = vld [vmem:[%s6 + $0x6d8] sm:$0xff]
      %v2202 = vld [vmem:[%s6 + $0x6e0] sm:$0xff]
      %v2203 = vld [vmem:[%s6 + $0x6e8] sm:$0xff]
      %v2204 = vld [vmem:[%s6 + $0x6f0] sm:$0xff]
      %v2205 = vld [vmem:[%s6 + $0x6f8] sm:$0xff]
      %v2206 = vld [vmem:[%s6 + $0x700] sm:$0xff]
      %v2207 = vld [vmem:[%s6 + $0x708] sm:$0xff]
      %v2208 = vld [vmem:[%s6 + $0x710] sm:$0xff]
      %v2209 = vld [vmem:[%s6 + $0x718] sm:$0xff]
      %v2210 = vld [vmem:[%s6 + $0x720] sm:$0xff]
      %v2211 = vld [vmem:[%s6 + $0x728] sm:$0xff]
      %v2212 = vld [vmem:[%s6 + $0x730] sm:$0xff]
      %v2213 = vld [vmem:[%s6 + $0x738] sm:$0xff]
      %v2214 = vld [vmem:[%s6 + $0x740] sm:$0xff]
      %v2215 = vld [vmem:[%s6 + $0x748] sm:$0xff]
      %v2216 = vld [vmem:[%s6 + $0x750] sm:$0xff]
      %v2217 = vld [vmem:[%s6 + $0x758] sm:$0xff]
      %v2218 = vld [vmem:[%s6 + $0x760] sm:$0xff]
      %v2219 = vld [vmem:[%s6 + $0x768] sm:$0xff]
      %v2220 = vld [vmem:[%s6 + $0x770] sm:$0xff]
      %v2221 = vld [vmem:[%s6 + $0x778] sm:$0xff]
      %v2222 = vld [vmem:[%s6 + $0x780] sm:$0xff]
      %v2223 = vld [vmem:[%s6 + $0x788] sm:$0xff]
      %v2224 = vld [vmem:[%s6 + $0x790] sm:$0xff]
      %v2225 = vld [vmem:[%s6 + $0x798] sm:$0xff]
      %v2226 = vld [vmem:[%s6 + $0x7a0] sm:$0xff]
      %v2227 = vld [vmem:[%s6 + $0x7a8] sm:$0xff]
      %v2228 = vld [vmem:[%s6 + $0x7b0] sm:$0xff]
      %v2229 = vld [vmem:[%s6 + $0x7b8] sm:$0xff]
      %v2230 = vld [vmem:[%s6 + $0x7c0] sm:$0xff]
      %v2231 = vld [vmem:[%s6 + $0x7c8] sm:$0xff]
      %v2232 = vld [vmem:[%s6 + $0x7d0] sm:$0xff]
      %v2233 = vld [vmem:[%s6 + $0x7d8] sm:$0xff]
      %v2234 = vld [vmem:[%s6 + $0x7e0] sm:$0xff]
      %v2235 = vld [vmem:[%s6 + $0x7e8] sm:$0xff]
      %v2236 = vld [vmem:[%s6 + $0x7f0] sm:$0xff]
      %v2237 = vld [vmem:[%s6 + $0x7f8] sm:$0xff]
      %v2238 = vld [vmem:[%s6 + $0x800] sm:$0xff]
      %v2239 = vld [vmem:[%s6 + $0x808] sm:$0xff]
      %v2240 = vld [vmem:[%s6 + $0x810] sm:$0xff]
      %v2241 = vld [vmem:[%s6 + $0x818] sm:$0xff]
      %v2242 = vld [vmem:[%s6 + $0x820] sm:$0xff]
      %v2243 = vld [vmem:[%s6 + $0x828] sm:$0xff]
      %v2244 = vld [vmem:[%s6 + $0x830] sm:$0xff]
      %v2245 = vld [vmem:[%s6 + $0x838] sm:$0xff]
      %v2246 = vld [vmem:[%s6 + $0x840] sm:$0xff]
      %v2247 = vld [vmem:[%s6 + $0x848] sm:$0xff]
      %v2248 = vld [vmem:[%s6 + $0x850] sm:$0xff]
      %v2249 = vld [vmem:[%s6 + $0x858] sm:$0xff]
      %v2250 = vld [vmem:[%s6 + $0x860] sm:$0xff]
      %v2251 = vld [vmem:[%s6 + $0x868] sm:$0xff]
      %v2252 = vld [vmem:[%s6 + $0x870] sm:$0xff]
      %v2253 = vld [vmem:[%s6 + $0x878] sm:$0xff]
      %v2254 = vld [vmem:[%s6 + $0x880] sm:$0xff]
      %v2255 = vld [vmem:[%s6 + $0x888] sm:$0xff]
      %v2256 = vld [vmem:[%s6 + $0x890] sm:$0xff]
      %v2257 = vld [vmem:[%s6 + $0x898] sm:$0xff]
      %v2258 = vld [vmem:[%s6 + $0x8a0] sm:$0xff]
      %v2259 = vld [vmem:[%s6 + $0x8a8] sm:$0xff]
      %v2260 = vld [vmem:[%s6 + $0x8b0] sm:$0xff]
      %v2261 = vld [vmem:[%s6 + $0x8b8] sm:$0xff]
      %v2262 = vld [vmem:[%s6 + $0x8c0] sm:$0xff]
      %v2263 = vld [vmem:[%s6 + $0x8c8] sm:$0xff]
      %v2264 = vld [vmem:[%s6 + $0x8d0] sm:$0xff]
      %v2265 = vld [vmem:[%s6 + $0x8d8] sm:$0xff]
      %v2266 = vld [vmem:[%s6 + $0x8e0] sm:$0xff]
      %v2267 = vld [vmem:[%s6 + $0x8e8] sm:$0xff]
      %v2268 = vld [vmem:[%s6 + $0x8f0] sm:$0xff]
      %v2269 = vld [vmem:[%s6 + $0x8f8] sm:$0xff]
      %v2270 = vld [vmem:[%s6 + $0x900] sm:$0xff]
      %v2271 = vld [vmem:[%s6 + $0x908] sm:$0xff]
      %v2272 = vld [vmem:[%s6 + $0x910] sm:$0xff]
      %v2273 = vld [vmem:[%s6 + $0x918] sm:$0xff]
      %v2274 = vld [vmem:[%s6 + $0x920] sm:$0xff]
      %v2275 = vld [vmem:[%s6 + $0x928] sm:$0xff]
      %v2276 = vld [vmem:[%s6 + $0x930] sm:$0xff]
      %v2277 = vld [vmem:[%s6 + $0x938] sm:$0xff]
      %v2278 = vld [vmem:[%s6 + $0x940] sm:$0xff]
      %v2279 = vld [vmem:[%s6 + $0x948] sm:$0xff]
      %v2280 = vld [vmem:[%s6 + $0x950] sm:$0xff]
      %v2281 = vld [vmem:[%s6 + $0x958] sm:$0xff]
      %v2282 = vld [vmem:[%s6 + $0x960] sm:$0xff]
      %v2283 = vld [vmem:[%s6 + $0x968] sm:$0xff]
      %v2284 = vld [vmem:[%s6 + $0x970] sm:$0xff]
      %v2285 = vld [vmem:[%s6 + $0x978] sm:$0xff]
      %v2286 = vld [vmem:[%s6 + $0x980] sm:$0xff]
      %v2287 = vld [vmem:[%s6 + $0x988] sm:$0xff]
      %v2288 = vld [vmem:[%s6 + $0x990] sm:$0xff]
      %v2289 = vld [vmem:[%s6 + $0x998] sm:$0xff]
      %v2290 = vld [vmem:[%s6 + $0x9a0] sm:$0xff]
      %v2291 = vld [vmem:[%s6 + $0x9a8] sm:$0xff]
      %v2292 = vld [vmem:[%s6 + $0x9b0] sm:$0xff]
      %v2293 = vld [vmem:[%s6 + $0x9b8] sm:$0xff]
      %v2294 = vld [vmem:[%s6 + $0x9c0] sm:$0xff]
      %v2295 = vld [vmem:[%s6 + $0x9c8] sm:$0xff]
      %v2296 = vld [vmem:[%s6 + $0x9d0] sm:$0xff]
      %v2297 = vld [vmem:[%s6 + $0x9d8] sm:$0xff]
      %v2298 = vld [vmem:[%s6 + $0x9e0] sm:$0xff]
      %v2299 = vld [vmem:[%s6 + $0x9e8] sm:$0xff]
      %v2300 = vld [vmem:[%s6 + $0x9f0] sm:$0xff]
      %v2301 = vld [vmem:[%s6 + $0x9f8] sm:$0xff]
      %v2302 = vld [vmem:[%s7] sm:$0x1]
      %v2304 = vlaneseq
      %v2305 = vshrl.u32 %v2304, 7
      %v2306 = vsub.s32 0, %v2305
      %v2307 = vrot.slane %v2302, %v2306
      %v2314 = vcombine.high %v1977, %v1977
      %v2316 = vunpack.c.l.s4 1983009808
      %v2317 = vunpack.c.0.s8 %v2316
      %v2318 = vlaneseq
      %v2319 = vshrl.u32 %v2318, 7
      %v2320 = vsub.s32 %v2317, %v2319
      %v2321 = vrot.slane %v1977, %v2320
      %v2323 = vunpack.c.l.s4 1983009808
      %v2324 = vunpack.c.0.s8 %v2323
      %v2325 = vlaneseq
      %v2326 = vshrl.u32 %v2325, 7
      %v2327 = vsub.s32 %v2324, %v2326
      %v2328 = vrot.slane %v2314, %v2327
      %v2329 = vcombine.high %v2321, %v2321
      %v2330 = vcombine.high %v2328, %v2328
      %v2331 = vcombine.high %v1978, %v1978
      %v2333 = vunpack.c.l.s4 1983009808
      %v2334 = vunpack.c.0.s8 %v2333
      %v2335 = vlaneseq
      %v2336 = vshrl.u32 %v2335, 7
      %v2337 = vsub.s32 %v2334, %v2336
      %v2338 = vrot.slane %v1978, %v2337
      %v2340 = vunpack.c.l.s4 1983009808
      %v2341 = vunpack.c.0.s8 %v2340
      %v2342 = vlaneseq
      %v2343 = vshrl.u32 %v2342, 7
      %v2344 = vsub.s32 %v2341, %v2343
      %v2345 = vrot.slane %v2331, %v2344
      %v2346 = vcombine.high %v2338, %v2338
      %v2347 = vcombine.high %v2345, %v2345
      %v2348 = vcombine.high %v1979, %v1979
      %v2350 = vunpack.c.l.s4 1983009808
      %v2351 = vunpack.c.0.s8 %v2350
      %v2352 = vlaneseq
      %v2353 = vshrl.u32 %v2352, 7
      %v2354 = vsub.s32 %v2351, %v2353
      %v2355 = vrot.slane %v1979, %v2354
      %v2357 = vunpack.c.l.s4 1983009808
      %v2358 = vunpack.c.0.s8 %v2357
      %v2359 = vlaneseq
      %v2360 = vshrl.u32 %v2359, 7
      %v2361 = vsub.s32 %v2358, %v2360
      %v2362 = vrot.slane %v2348, %v2361
      %v2363 = vcombine.high %v2355, %v2355
      %v2364 = vcombine.high %v2362, %v2362
      %v2365 = vcombine.high %v1980, %v1980
      %v2367 = vunpack.c.l.s4 1983009808
      %v2368 = vunpack.c.0.s8 %v2367
      %v2369 = vlaneseq
      %v2370 = vshrl.u32 %v2369, 7
      %v2371 = vsub.s32 %v2368, %v2370
      %v2372 = vrot.slane %v1980, %v2371
      %v2374 = vunpack.c.l.s4 1983009808
      %v2375 = vunpack.c.0.s8 %v2374
      %v2376 = vlaneseq
      %v2377 = vshrl.u32 %v2376, 7
      %v2378 = vsub.s32 %v2375, %v2377
      %v2379 = vrot.slane %v2365, %v2378
      %v2380 = vcombine.high %v2372, %v2372
      %v2381 = vcombine.high %v2379, %v2379
      %v2382 = vcombine.high %v1981, %v1981
      %v2384 = vunpack.c.l.s4 1983009808
      %v2385 = vunpack.c.0.s8 %v2384
      %v2386 = vlaneseq
      %v2387 = vshrl.u32 %v2386, 7
      %v2388 = vsub.s32 %v2385, %v2387
      %v2389 = vrot.slane %v1981, %v2388
      %v2391 = vunpack.c.l.s4 1983009808
      %v2392 = vunpack.c.0.s8 %v2391
      %v2393 = vlaneseq
      %v2394 = vshrl.u32 %v2393, 7
      %v2395 = vsub.s32 %v2392, %v2394
      %v2396 = vrot.slane %v2382, %v2395
      %v2397 = vcombine.high %v2389, %v2389
      %v2398 = vcombine.high %v2396, %v2396
      %2419 = vmatprep.subr.mxu0 0.0
      %2420 = vmatpush1.msra.mxu0 %v1982
      %2421 = vmatprep.subr.mxu0 0.0
      %2422 = vmatpush1.msra.mxu0 %v1983
      %2423 = vmatprep.subr.mxu0 0.0
      %2424 = vmatpush1.msra.mxu0 %v1984
      %2425 = vmatprep.subr.mxu0 0.0
      %2426 = vmatpush1.msra.mxu0 %v1985
      %2427 = vmatprep.subr.mxu0 0.0
      %2428 = vmatpush1.msra.mxu0 %v1986
      %2429 = vmatprep.subr.mxu0 0.0
      %2430 = vmatpush1.msra.mxu0 %v1987
      %2431 = vmatprep.subr.mxu0 0.0
      %2432 = vmatpush1.msra.mxu0 %v1988
      %2433 = vmatprep.subr.mxu0 0.0
      %2434 = vmatpush1.msra.mxu0 %v1989
      %2435 = vmatprep.subr.mxu0 0.0
      %2436 = vmatpush1.msra.mxu0 %v1990
      %2437 = vmatprep.subr.mxu0 0.0
      %2438 = vmatpush1.msra.mxu0 %v1991
      %2439 = vmatprep.subr.mxu0 0.0
      %2440 = vmatpush1.msra.mxu0 %v1992
      %2441 = vmatprep.subr.mxu0 0.0
      %2442 = vmatpush1.msra.mxu0 %v1993
      %2443 = vmatprep.subr.mxu0 0.0
      %2444 = vmatpush1.msra.mxu0 %v1994
      %2445 = vmatprep.subr.mxu0 0.0
      %2446 = vmatpush1.msra.mxu0 %v1995
      %2447 = vmatprep.subr.mxu0 0.0
      %2448 = vmatpush1.msra.mxu0 %v1996
      %2449 = vmatprep.subr.mxu0 0.0
      %2450 = vmatpush1.msra.mxu0 %v1997
      %2451 = vmatprep.subr.mxu0 0.0
      %2452 = vmatpush1.msra.mxu0 %v1998
      %2453 = vmatprep.subr.mxu0 0.0
      %2454 = vmatpush1.msra.mxu0 %v1999
      %2455 = vmatprep.subr.mxu0 0.0
      %2456 = vmatpush1.msra.mxu0 %v2000
      %2457 = vmatprep.subr.mxu0 0.0
      %2458 = vmatpush1.msra.mxu0 %v2001
      %2459 = vmatprep.subr.mxu0 0.0
      %2460 = vmatpush1.msra.mxu0 %v2002
      %2461 = vmatprep.subr.mxu0 0.0
      %2462 = vmatpush1.msra.mxu0 %v2003
      %2463 = vmatprep.subr.mxu0 0.0
      %2464 = vmatpush1.msra.mxu0 %v2004
      %2465 = vmatprep.subr.mxu0 0.0
      %2466 = vmatpush1.msra.mxu0 %v2005
      %2467 = vmatprep.subr.mxu0 0.0
      %2468 = vmatpush1.msra.mxu0 %v2006
      %2469 = vmatprep.subr.mxu0 0.0
      %2470 = vmatpush1.msra.mxu0 %v2007
      %2471 = vmatprep.subr.mxu0 0.0
      %2472 = vmatpush1.msra.mxu0 %v2008
      %2473 = vmatprep.subr.mxu0 0.0
      %2474 = vmatpush1.msra.mxu0 %v2009
      %2475 = vmatprep.subr.mxu0 0.0
      %2476 = vmatpush1.msra.mxu0 %v2010
      %2477 = vmatprep.subr.mxu0 0.0
      %2478 = vmatpush1.msra.mxu0 %v2011
      %2479 = vmatprep.subr.mxu0 0.0
      %2480 = vmatpush1.msra.mxu0 %v2012
      %2481 = vmatprep.subr.mxu0 0.0
      %2482 = vmatpush1.msra.mxu0 %v2013
      %2483 = vmatprep.mubr.f32.mxu0 %v2329
      %2484 = vmatmul.mubr.f32.gmra.mrb[0].mxu0 %v2321
      %v2485 = vpop.f32.mrb[0].mxu0
      %v2486 = vadd.f32 %v2307, %v2485
      %v2487 = vpop.f32.mrb[0].mxu0
      %2488 = vdwg.mxu0
      %2489 = vmatprep.subr.mxu0 0.0
      %2490 = vmatpush1.msra.mxu0 %v2014
      %2491 = vmatprep.subr.mxu0 0.0
      %2492 = vmatpush1.msra.mxu0 %v2015
      %2493 = vmatprep.subr.mxu0 0.0
      %2494 = vmatpush1.msra.mxu0 %v2016
      %2495 = vmatprep.subr.mxu0 0.0
      %2496 = vmatpush1.msra.mxu0 %v2017
      %2497 = vmatprep.subr.mxu0 0.0
      %2498 = vmatpush1.msra.mxu0 %v2018
      %2499 = vmatprep.subr.mxu0 0.0
      %2500 = vmatpush1.msra.mxu0 %v2019
      %2501 = vmatprep.subr.mxu0 0.0
      %2502 = vmatpush1.msra.mxu0 %v2020
      %2503 = vmatprep.subr.mxu0 0.0
      %2504 = vmatpush1.msra.mxu0 %v2021
      %2505 = vmatprep.subr.mxu0 0.0
      %2506 = vmatpush1.msra.mxu0 %v2022
      %2507 = vmatprep.subr.mxu0 0.0
      %2508 = vmatpush1.msra.mxu0 %v2023
      %2509 = vmatprep.subr.mxu0 0.0
      %2510 = vmatpush1.msra.mxu0 %v2024
      %2511 = vmatprep.subr.mxu0 0.0
      %2512 = vmatpush1.msra.mxu0 %v2025
      %2513 = vmatprep.subr.mxu0 0.0
      %2514 = vmatpush1.msra.mxu0 %v2026
      %2515 = vmatprep.subr.mxu0 0.0
      %2516 = vmatpush1.msra.mxu0 %v2027
      %2517 = vmatprep.subr.mxu0 0.0
      %2518 = vmatpush1.msra.mxu0 %v2028
      %2519 = vmatprep.subr.mxu0 0.0
      %2520 = vmatpush1.msra.mxu0 %v2029
      %2521 = vmatprep.subr.mxu0 0.0
      %2522 = vmatpush1.msra.mxu0 %v2030
      %2523 = vmatprep.subr.mxu0 0.0
      %2524 = vmatpush1.msra.mxu0 %v2031
      %2525 = vmatprep.subr.mxu0 0.0
      %2526 = vmatpush1.msra.mxu0 %v2032
      %2527 = vmatprep.subr.mxu0 0.0
      %2528 = vmatpush1.msra.mxu0 %v2033
      %2529 = vmatprep.subr.mxu0 0.0
      %2530 = vmatpush1.msra.mxu0 %v2034
      %2531 = vmatprep.subr.mxu0 0.0
      %2532 = vmatpush1.msra.mxu0 %v2035
      %2533 = vmatprep.subr.mxu0 0.0
      %2534 = vmatpush1.msra.mxu0 %v2036
      %2535 = vmatprep.subr.mxu0 0.0
      %2536 = vmatpush1.msra.mxu0 %v2037
      %2537 = vmatprep.subr.mxu0 0.0
      %2538 = vmatpush1.msra.mxu0 %v2038
      %2539 = vmatprep.subr.mxu0 0.0
      %2540 = vmatpush1.msra.mxu0 %v2039
      %2541 = vmatprep.subr.mxu0 0.0
      %2542 = vmatpush1.msra.mxu0 %v2040
      %2543 = vmatprep.subr.mxu0 0.0
      %2544 = vmatpush1.msra.mxu0 %v2041
      %2545 = vmatprep.subr.mxu0 0.0
      %2546 = vmatpush1.msra.mxu0 %v2042
      %2547 = vmatprep.subr.mxu0 0.0
      %2548 = vmatpush1.msra.mxu0 %v2043
      %2549 = vmatprep.subr.mxu0 0.0
      %2550 = vmatpush1.msra.mxu0 %v2044
      %2551 = vmatprep.subr.mxu0 0.0
      %2552 = vmatpush1.msra.mxu0 %v2045
      %2553 = vmatprep.mubr.f32.mxu0 %v2330
      %2554 = vmatmul.mubr.f32.gmra.mrb[0].mxu0 %v2328
      %v2555 = vpop.f32.mrb[0].mxu0
      %v2556 = vadd.f32 %v2486, %v2555
      %v2557 = vpop.f32.mrb[0].mxu0
      %2558 = vdwg.mxu0
      %2559 = vmatprep.subr.mxu0 0.0
      %2560 = vmatpush1.msra.mxu0 %v2046
      %2561 = vmatprep.subr.mxu0 0.0
      %2562 = vmatpush1.msra.mxu0 %v2047
      %2563 = vmatprep.subr.mxu0 0.0
      %2564 = vmatpush1.msra.mxu0 %v2048
      %2565 = vmatprep.subr.mxu0 0.0
      %2566 = vmatpush1.msra.mxu0 %v2049
      %2567 = vmatprep.subr.mxu0 0.0
      %2568 = vmatpush1.msra.mxu0 %v2050
      %2569 = vmatprep.subr.mxu0 0.0
      %2570 = vmatpush1.msra.mxu0 %v2051
      %2571 = vmatprep.subr.mxu0 0.0
      %2572 = vmatpush1.msra.mxu0 %v2052
      %2573 = vmatprep.subr.mxu0 0.0
      %2574 = vmatpush1.msra.mxu0 %v2053
      %2575 = vmatprep.subr.mxu0 0.0
      %2576 = vmatpush1.msra.mxu0 %v2054
      %2577 = vmatprep.subr.mxu0 0.0
      %2578 = vmatpush1.msra.mxu0 %v2055
      %2579 = vmatprep.subr.mxu0 0.0
      %2580 = vmatpush1.msra.mxu0 %v2056
      %2581 = vmatprep.subr.mxu0 0.0
      %2582 = vmatpush1.msra.mxu0 %v2057
      %2583 = vmatprep.subr.mxu0 0.0
      %2584 = vmatpush1.msra.mxu0 %v2058
      %2585 = vmatprep.subr.mxu0 0.0
      %2586 = vmatpush1.msra.mxu0 %v2059
      %2587 = vmatprep.subr.mxu0 0.0
      %2588 = vmatpush1.msra.mxu0 %v2060
      %2589 = vmatprep.subr.mxu0 0.0
      %2590 = vmatpush1.msra.mxu0 %v2061
      %2591 = vmatprep.subr.mxu0 0.0
      %2592 = vmatpush1.msra.mxu0 %v2062
      %2593 = vmatprep.subr.mxu0 0.0
      %2594 = vmatpush1.msra.mxu0 %v2063
      %2595 = vmatprep.subr.mxu0 0.0
      %2596 = vmatpush1.msra.mxu0 %v2064
      %2597 = vmatprep.subr.mxu0 0.0
      %2598 = vmatpush1.msra.mxu0 %v2065
      %2599 = vmatprep.subr.mxu0 0.0
      %2600 = vmatpush1.msra.mxu0 %v2066
      %2601 = vmatprep.subr.mxu0 0.0
      %2602 = vmatpush1.msra.mxu0 %v2067
      %2603 = vmatprep.subr.mxu0 0.0
      %2604 = vmatpush1.msra.mxu0 %v2068
      %2605 = vmatprep.subr.mxu0 0.0
      %2606 = vmatpush1.msra.mxu0 %v2069
      %2607 = vmatprep.subr.mxu0 0.0
      %2608 = vmatpush1.msra.mxu0 %v2070
      %2609 = vmatprep.subr.mxu0 0.0
      %2610 = vmatpush1.msra.mxu0 %v2071
      %2611 = vmatprep.subr.mxu0 0.0
      %2612 = vmatpush1.msra.mxu0 %v2072
      %2613 = vmatprep.subr.mxu0 0.0
      %2614 = vmatpush1.msra.mxu0 %v2073
      %2615 = vmatprep.subr.mxu0 0.0
      %2616 = vmatpush1.msra.mxu0 %v2074
      %2617 = vmatprep.subr.mxu0 0.0
      %2618 = vmatpush1.msra.mxu0 %v2075
      %2619 = vmatprep.subr.mxu0 0.0
      %2620 = vmatpush1.msra.mxu0 %v2076
      %2621 = vmatprep.subr.mxu0 0.0
      %2622 = vmatpush1.msra.mxu0 %v2077
      %2623 = vmatprep.mubr.f32.mxu0 %v2346
      %2624 = vmatmul.mubr.f32.gmra.mrb[0].mxu0 %v2338
      %v2625 = vpop.f32.mrb[0].mxu0
      %v2626 = vadd.f32 %v2556, %v2625
      %v2627 = vpop.f32.mrb[0].mxu0
      %2628 = vdwg.mxu0
      %2629 = vmatprep.subr.mxu0 0.0
      %2630 = vmatpush1.msra.mxu0 %v2078
      %2631 = vmatprep.subr.mxu0 0.0
      %2632 = vmatpush1.msra.mxu0 %v2079
      %2633 = vmatprep.subr.mxu0 0.0
      %2634 = vmatpush1.msra.mxu0 %v2080
      %2635 = vmatprep.subr.mxu0 0.0
      %2636 = vmatpush1.msra.mxu0 %v2081
      %2637 = vmatprep.subr.mxu0 0.0
      %2638 = vmatpush1.msra.mxu0 %v2082
      %2639 = vmatprep.subr.mxu0 0.0
      %2640 = vmatpush1.msra.mxu0 %v2083
      %2641 = vmatprep.subr.mxu0 0.0
      %2642 = vmatpush1.msra.mxu0 %v2084
      %2643 = vmatprep.subr.mxu0 0.0
      %2644 = vmatpush1.msra.mxu0 %v2085
      %2645 = vmatprep.subr.mxu0 0.0
      %2646 = vmatpush1.msra.mxu0 %v2086
      %2647 = vmatprep.subr.mxu0 0.0
      %2648 = vmatpush1.msra.mxu0 %v2087
      %2649 = vmatprep.subr.mxu0 0.0
      %2650 = vmatpush1.msra.mxu0 %v2088
      %2651 = vmatprep.subr.mxu0 0.0
      %2652 = vmatpush1.msra.mxu0 %v2089
      %2653 = vmatprep.subr.mxu0 0.0
      %2654 = vmatpush1.msra.mxu0 %v2090
      %2655 = vmatprep.subr.mxu0 0.0
      %2656 = vmatpush1.msra.mxu0 %v2091
      %2657 = vmatprep.subr.mxu0 0.0
      %2658 = vmatpush1.msra.mxu0 %v2092
      %2659 = vmatprep.subr.mxu0 0.0
      %2660 = vmatpush1.msra.mxu0 %v2093
      %2661 = vmatprep.subr.mxu0 0.0
      %2662 = vmatpush1.msra.mxu0 %v2094
      %2663 = vmatprep.subr.mxu0 0.0
      %2664 = vmatpush1.msra.mxu0 %v2095
      %2665 = vmatprep.subr.mxu0 0.0
      %2666 = vmatpush1.msra.mxu0 %v2096
      %2667 = vmatprep.subr.mxu0 0.0
      %2668 = vmatpush1.msra.mxu0 %v2097
      %2669 = vmatprep.subr.mxu0 0.0
      %2670 = vmatpush1.msra.mxu0 %v2098
      %2671 = vmatprep.subr.mxu0 0.0
      %2672 = vmatpush1.msra.mxu0 %v2099
      %2673 = vmatprep.subr.mxu0 0.0
      %2674 = vmatpush1.msra.mxu0 %v2100
      %2675 = vmatprep.subr.mxu0 0.0
      %2676 = vmatpush1.msra.mxu0 %v2101
      %2677 = vmatprep.subr.mxu0 0.0
      %2678 = vmatpush1.msra.mxu0 %v2102
      %2679 = vmatprep.subr.mxu0 0.0
      %2680 = vmatpush1.msra.mxu0 %v2103
      %2681 = vmatprep.subr.mxu0 0.0
      %2682 = vmatpush1.msra.mxu0 %v2104
      %2683 = vmatprep.subr.mxu0 0.0
      %2684 = vmatpush1.msra.mxu0 %v2105
      %2685 = vmatprep.subr.mxu0 0.0
      %2686 = vmatpush1.msra.mxu0 %v2106
      %2687 = vmatprep.subr.mxu0 0.0
      %2688 = vmatpush1.msra.mxu0 %v2107
      %2689 = vmatprep.subr.mxu0 0.0
      %2690 = vmatpush1.msra.mxu0 %v2108
      %2691 = vmatprep.subr.mxu0 0.0
      %2692 = vmatpush1.msra.mxu0 %v2109
      %2693 = vmatprep.mubr.f32.mxu0 %v2347
      %2694 = vmatmul.mubr.f32.gmra.mrb[0].mxu0 %v2345
      %v2695 = vpop.f32.mrb[0].mxu0
      %v2696 = vadd.f32 %v2626, %v2695
      %v2697 = vpop.f32.mrb[0].mxu0
      %2698 = vdwg.mxu0
      %2699 = vmatprep.subr.mxu0 0.0
      %2700 = vmatpush1.msra.mxu0 %v2110
      %2701 = vmatprep.subr.mxu0 0.0
      %2702 = vmatpush1.msra.mxu0 %v2111
      %2703 = vmatprep.subr.mxu0 0.0
      %2704 = vmatpush1.msra.mxu0 %v2112
      %2705 = vmatprep.subr.mxu0 0.0
      %2706 = vmatpush1.msra.mxu0 %v2113
      %2707 = vmatprep.subr.mxu0 0.0
      %2708 = vmatpush1.msra.mxu0 %v2114
      %2709 = vmatprep.subr.mxu0 0.0
      %2710 = vmatpush1.msra.mxu0 %v2115
      %2711 = vmatprep.subr.mxu0 0.0
      %2712 = vmatpush1.msra.mxu0 %v2116
      %2713 = vmatprep.subr.mxu0 0.0
      %2714 = vmatpush1.msra.mxu0 %v2117
      %2715 = vmatprep.subr.mxu0 0.0
      %2716 = vmatpush1.msra.mxu0 %v2118
      %2717 = vmatprep.subr.mxu0 0.0
      %2718 = vmatpush1.msra.mxu0 %v2119
      %2719 = vmatprep.subr.mxu0 0.0
      %2720 = vmatpush1.msra.mxu0 %v2120
      %2721 = vmatprep.subr.mxu0 0.0
      %2722 = vmatpush1.msra.mxu0 %v2121
      %2723 = vmatprep.subr.mxu0 0.0
      %2724 = vmatpush1.msra.mxu0 %v2122
      %2725 = vmatprep.subr.mxu0 0.0
      %2726 = vmatpush1.msra.mxu0 %v2123
      %2727 = vmatprep.subr.mxu0 0.0
      %2728 = vmatpush1.msra.mxu0 %v2124
      %2729 = vmatprep.subr.mxu0 0.0
      %2730 = vmatpush1.msra.mxu0 %v2125
      %2731 = vmatprep.subr.mxu0 0.0
      %2732 = vmatpush1.msra.mxu0 %v2126
      %2733 = vmatprep.subr.mxu0 0.0
      %2734 = vmatpush1.msra.mxu0 %v2127
      %2735 = vmatprep.subr.mxu0 0.0
      %2736 = vmatpush1.msra.mxu0 %v2128
      %2737 = vmatprep.subr.mxu0 0.0
      %2738 = vmatpush1.msra.mxu0 %v2129
      %2739 = vmatprep.subr.mxu0 0.0
      %2740 = vmatpush1.msra.mxu0 %v2130
      %2741 = vmatprep.subr.mxu0 0.0
      %2742 = vmatpush1.msra.mxu0 %v2131
      %2743 = vmatprep.subr.mxu0 0.0
      %2744 = vmatpush1.msra.mxu0 %v2132
      %2745 = vmatprep.subr.mxu0 0.0
      %2746 = vmatpush1.msra.mxu0 %v2133
      %2747 = vmatprep.subr.mxu0 0.0
      %2748 = vmatpush1.msra.mxu0 %v2134
      %2749 = vmatprep.subr.mxu0 0.0
      %2750 = vmatpush1.msra.mxu0 %v2135
      %2751 = vmatprep.subr.mxu0 0.0
      %2752 = vmatpush1.msra.mxu0 %v2136
      %2753 = vmatprep.subr.mxu0 0.0
      %2754 = vmatpush1.msra.mxu0 %v2137
      %2755 = vmatprep.subr.mxu0 0.0
      %2756 = vmatpush1.msra.mxu0 %v2138
      %2757 = vmatprep.subr.mxu0 0.0
      %2758 = vmatpush1.msra.mxu0 %v2139
      %2759 = vmatprep.subr.mxu0 0.0
      %2760 = vmatpush1.msra.mxu0 %v2140
      %2761 = vmatprep.subr.mxu0 0.0
      %2762 = vmatpush1.msra.mxu0 %v2141
      %2763 = vmatprep.mubr.f32.mxu0 %v2363
      %2764 = vmatmul.mubr.f32.gmra.mrb[0].mxu0 %v2355
      %v2765 = vpop.f32.mrb[0].mxu0
      %v2766 = vadd.f32 %v2696, %v2765
      %v2767 = vpop.f32.mrb[0].mxu0
      %2768 = vdwg.mxu0
      %2769 = vmatprep.subr.mxu0 0.0
      %2770 = vmatpush1.msra.mxu0 %v2142
      %2771 = vmatprep.subr.mxu0 0.0
      %2772 = vmatpush1.msra.mxu0 %v2143
      %2773 = vmatprep.subr.mxu0 0.0
      %2774 = vmatpush1.msra.mxu0 %v2144
      %2775 = vmatprep.subr.mxu0 0.0
      %2776 = vmatpush1.msra.mxu0 %v2145
      %2777 = vmatprep.subr.mxu0 0.0
      %2778 = vmatpush1.msra.mxu0 %v2146
      %2779 = vmatprep.subr.mxu0 0.0
      %2780 = vmatpush1.msra.mxu0 %v2147
      %2781 = vmatprep.subr.mxu0 0.0
      %2782 = vmatpush1.msra.mxu0 %v2148
      %2783 = vmatprep.subr.mxu0 0.0
      %2784 = vmatpush1.msra.mxu0 %v2149
      %2785 = vmatprep.subr.mxu0 0.0
      %2786 = vmatpush1.msra.mxu0 %v2150
      %2787 = vmatprep.subr.mxu0 0.0
      %2788 = vmatpush1.msra.mxu0 %v2151
      %2789 = vmatprep.subr.mxu0 0.0
      %2790 = vmatpush1.msra.mxu0 %v2152
      %2791 = vmatprep.subr.mxu0 0.0
      %2792 = vmatpush1.msra.mxu0 %v2153
      %2793 = vmatprep.subr.mxu0 0.0
      %2794 = vmatpush1.msra.mxu0 %v2154
      %2795 = vmatprep.subr.mxu0 0.0
      %2796 = vmatpush1.msra.mxu0 %v2155
      %2797 = vmatprep.subr.mxu0 0.0
      %2798 = vmatpush1.msra.mxu0 %v2156
      %2799 = vmatprep.subr.mxu0 0.0
      %2800 = vmatpush1.msra.mxu0 %v2157
      %2801 = vmatprep.subr.mxu0 0.0
      %2802 = vmatpush1.msra.mxu0 %v2158
      %2803 = vmatprep.subr.mxu0 0.0
      %2804 = vmatpush1.msra.mxu0 %v2159
      %2805 = vmatprep.subr.mxu0 0.0
      %2806 = vmatpush1.msra.mxu0 %v2160
      %2807 = vmatprep.subr.mxu0 0.0
      %2808 = vmatpush1.msra.mxu0 %v2161
      %2809 = vmatprep.subr.mxu0 0.0
      %2810 = vmatpush1.msra.mxu0 %v2162
      %2811 = vmatprep.subr.mxu0 0.0
      %2812 = vmatpush1.msra.mxu0 %v2163
      %2813 = vmatprep.subr.mxu0 0.0
      %2814 = vmatpush1.msra.mxu0 %v2164
      %2815 = vmatprep.subr.mxu0 0.0
      %2816 = vmatpush1.msra.mxu0 %v2165
      %2817 = vmatprep.subr.mxu0 0.0
      %2818 = vmatpush1.msra.mxu0 %v2166
      %2819 = vmatprep.subr.mxu0 0.0
      %2820 = vmatpush1.msra.mxu0 %v2167
      %2821 = vmatprep.subr.mxu0 0.0
      %2822 = vmatpush1.msra.mxu0 %v2168
      %2823 = vmatprep.subr.mxu0 0.0
      %2824 = vmatpush1.msra.mxu0 %v2169
      %2825 = vmatprep.subr.mxu0 0.0
      %2826 = vmatpush1.msra.mxu0 %v2170
      %2827 = vmatprep.subr.mxu0 0.0
      %2828 = vmatpush1.msra.mxu0 %v2171
      %2829 = vmatprep.subr.mxu0 0.0
      %2830 = vmatpush1.msra.mxu0 %v2172
      %2831 = vmatprep.subr.mxu0 0.0
      %2832 = vmatpush1.msra.mxu0 %v2173
      %2833 = vmatprep.mubr.f32.mxu0 %v2364
      %2834 = vmatmul.mubr.f32.gmra.mrb[0].mxu0 %v2362
      %v2835 = vpop.f32.mrb[0].mxu0
      %v2836 = vadd.f32 %v2766, %v2835
      %v2837 = vpop.f32.mrb[0].mxu0
      %2838 = vdwg.mxu0
      %2839 = vmatprep.subr.mxu0 0.0
      %2840 = vmatpush1.msra.mxu0 %v2174
      %2841 = vmatprep.subr.mxu0 0.0
      %2842 = vmatpush1.msra.mxu0 %v2175
      %2843 = vmatprep.subr.mxu0 0.0
      %2844 = vmatpush1.msra.mxu0 %v2176
      %2845 = vmatprep.subr.mxu0 0.0
      %2846 = vmatpush1.msra.mxu0 %v2177
      %2847 = vmatprep.subr.mxu0 0.0
      %2848 = vmatpush1.msra.mxu0 %v2178
      %2849 = vmatprep.subr.mxu0 0.0
      %2850 = vmatpush1.msra.mxu0 %v2179
      %2851 = vmatprep.subr.mxu0 0.0
      %2852 = vmatpush1.msra.mxu0 %v2180
      %2853 = vmatprep.subr.mxu0 0.0
      %2854 = vmatpush1.msra.mxu0 %v2181
      %2855 = vmatprep.subr.mxu0 0.0
      %2856 = vmatpush1.msra.mxu0 %v2182
      %2857 = vmatprep.subr.mxu0 0.0
      %2858 = vmatpush1.msra.mxu0 %v2183
      %2859 = vmatprep.subr.mxu0 0.0
      %2860 = vmatpush1.msra.mxu0 %v2184
      %2861 = vmatprep.subr.mxu0 0.0
      %2862 = vmatpush1.msra.mxu0 %v2185
      %2863 = vmatprep.subr.mxu0 0.0
      %2864 = vmatpush1.msra.mxu0 %v2186
      %2865 = vmatprep.subr.mxu0 0.0
      %2866 = vmatpush1.msra.mxu0 %v2187
      %2867 = vmatprep.subr.mxu0 0.0
      %2868 = vmatpush1.msra.mxu0 %v2188
      %2869 = vmatprep.subr.mxu0 0.0
      %2870 = vmatpush1.msra.mxu0 %v2189
      %2871 = vmatprep.subr.mxu0 0.0
      %2872 = vmatpush1.msra.mxu0 %v2190
      %2873 = vmatprep.subr.mxu0 0.0
      %2874 = vmatpush1.msra.mxu0 %v2191
      %2875 = vmatprep.subr.mxu0 0.0
      %2876 = vmatpush1.msra.mxu0 %v2192
      %2877 = vmatprep.subr.mxu0 0.0
      %2878 = vmatpush1.msra.mxu0 %v2193
      %2879 = vmatprep.subr.mxu0 0.0
      %2880 = vmatpush1.msra.mxu0 %v2194
      %2881 = vmatprep.subr.mxu0 0.0
      %2882 = vmatpush1.msra.mxu0 %v2195
      %2883 = vmatprep.subr.mxu0 0.0
      %2884 = vmatpush1.msra.mxu0 %v2196
      %2885 = vmatprep.subr.mxu0 0.0
      %2886 = vmatpush1.msra.mxu0 %v2197
      %2887 = vmatprep.subr.mxu0 0.0
      %2888 = vmatpush1.msra.mxu0 %v2198
      %2889 = vmatprep.subr.mxu0 0.0
      %2890 = vmatpush1.msra.mxu0 %v2199
      %2891 = vmatprep.subr.mxu0 0.0
      %2892 = vmatpush1.msra.mxu0 %v2200
      %2893 = vmatprep.subr.mxu0 0.0
      %2894 = vmatpush1.msra.mxu0 %v2201
      %2895 = vmatprep.subr.mxu0 0.0
      %2896 = vmatpush1.msra.mxu0 %v2202
      %2897 = vmatprep.subr.mxu0 0.0
      %2898 = vmatpush1.msra.mxu0 %v2203
      %2899 = vmatprep.subr.mxu0 0.0
      %2900 = vmatpush1.msra.mxu0 %v2204
      %2901 = vmatprep.subr.mxu0 0.0
      %2902 = vmatpush1.msra.mxu0 %v2205
      %2903 = vmatprep.mubr.f32.mxu0 %v2380
      %2904 = vmatmul.mubr.f32.gmra.mrb[0].mxu0 %v2372
      %v2905 = vpop.f32.mrb[0].mxu0
      %v2906 = vadd.f32 %v2836, %v2905
      %v2907 = vpop.f32.mrb[0].mxu0
      %2908 = vdwg.mxu0
      %2909 = vmatprep.subr.mxu0 0.0
      %2910 = vmatpush1.msra.mxu0 %v2206
      %2911 = vmatprep.subr.mxu0 0.0
      %2912 = vmatpush1.msra.mxu0 %v2207
      %2913 = vmatprep.subr.mxu0 0.0
      %2914 = vmatpush1.msra.mxu0 %v2208
      %2915 = vmatprep.subr.mxu0 0.0
      %2916 = vmatpush1.msra.mxu0 %v2209
      %2917 = vmatprep.subr.mxu0 0.0
      %2918 = vmatpush1.msra.mxu0 %v2210
      %2919 = vmatprep.subr.mxu0 0.0
      %2920 = vmatpush1.msra.mxu0 %v2211
      %2921 = vmatprep.subr.mxu0 0.0
      %2922 = vmatpush1.msra.mxu0 %v2212
      %2923 = vmatprep.subr.mxu0 0.0
      %2924 = vmatpush1.msra.mxu0 %v2213
      %2925 = vmatprep.subr.mxu0 0.0
      %2926 = vmatpush1.msra.mxu0 %v2214
      %2927 = vmatprep.subr.mxu0 0.0
      %2928 = vmatpush1.msra.mxu0 %v2215
      %2929 = vmatprep.subr.mxu0 0.0
      %2930 = vmatpush1.msra.mxu0 %v2216
      %2931 = vmatprep.subr.mxu0 0.0
      %2932 = vmatpush1.msra.mxu0 %v2217
      %2933 = vmatprep.subr.mxu0 0.0
      %2934 = vmatpush1.msra.mxu0 %v2218
      %2935 = vmatprep.subr.mxu0 0.0
      %2936 = vmatpush1.msra.mxu0 %v2219
      %2937 = vmatprep.subr.mxu0 0.0
      %2938 = vmatpush1.msra.mxu0 %v2220
      %2939 = vmatprep.subr.mxu0 0.0
      %2940 = vmatpush1.msra.mxu0 %v2221
      %2941 = vmatprep.subr.mxu0 0.0
      %2942 = vmatpush1.msra.mxu0 %v2222
      %2943 = vmatprep.subr.mxu0 0.0
      %2944 = vmatpush1.msra.mxu0 %v2223
      %2945 = vmatprep.subr.mxu0 0.0
      %2946 = vmatpush1.msra.mxu0 %v2224
      %2947 = vmatprep.subr.mxu0 0.0
      %2948 = vmatpush1.msra.mxu0 %v2225
      %2949 = vmatprep.subr.mxu0 0.0
      %2950 = vmatpush1.msra.mxu0 %v2226
      %2951 = vmatprep.subr.mxu0 0.0
      %2952 = vmatpush1.msra.mxu0 %v2227
      %2953 = vmatprep.subr.mxu0 0.0
      %2954 = vmatpush1.msra.mxu0 %v2228
      %2955 = vmatprep.subr.mxu0 0.0
      %2956 = vmatpush1.msra.mxu0 %v2229
      %2957 = vmatprep.subr.mxu0 0.0
      %2958 = vmatpush1.msra.mxu0 %v2230
      %2959 = vmatprep.subr.mxu0 0.0
      %2960 = vmatpush1.msra.mxu0 %v2231
      %2961 = vmatprep.subr.mxu0 0.0
      %2962 = vmatpush1.msra.mxu0 %v2232
      %2963 = vmatprep.subr.mxu0 0.0
      %2964 = vmatpush1.msra.mxu0 %v2233
      %2965 = vmatprep.subr.mxu0 0.0
      %2966 = vmatpush1.msra.mxu0 %v2234
      %2967 = vmatprep.subr.mxu0 0.0
      %2968 = vmatpush1.msra.mxu0 %v2235
      %2969 = vmatprep.subr.mxu0 0.0
      %2970 = vmatpush1.msra.mxu0 %v2236
      %2971 = vmatprep.subr.mxu0 0.0
      %2972 = vmatpush1.msra.mxu0 %v2237
      %2973 = vmatprep.mubr.f32.mxu0 %v2381
      %2974 = vmatmul.mubr.f32.gmra.mrb[0].mxu0 %v2379
      %v2975 = vpop.f32.mrb[0].mxu0
      %v2976 = vadd.f32 %v2906, %v2975
      %v2977 = vpop.f32.mrb[0].mxu0
      %2978 = vdwg.mxu0
      %2979 = vmatprep.subr.mxu0 0.0
      %2980 = vmatpush1.msra.mxu0 %v2238
      %2981 = vmatprep.subr.mxu0 0.0
      %2982 = vmatpush1.msra.mxu0 %v2239
      %2983 = vmatprep.subr.mxu0 0.0
      %2984 = vmatpush1.msra.mxu0 %v2240
      %2985 = vmatprep.subr.mxu0 0.0
      %2986 = vmatpush1.msra.mxu0 %v2241
      %2987 = vmatprep.subr.mxu0 0.0
      %2988 = vmatpush1.msra.mxu0 %v2242
      %2989 = vmatprep.subr.mxu0 0.0
      %2990 = vmatpush1.msra.mxu0 %v2243
      %2991 = vmatprep.subr.mxu0 0.0
      %2992 = vmatpush1.msra.mxu0 %v2244
      %2993 = vmatprep.subr.mxu0 0.0
      %2994 = vmatpush1.msra.mxu0 %v2245
      %2995 = vmatprep.subr.mxu0 0.0
      %2996 = vmatpush1.msra.mxu0 %v2246
      %2997 = vmatprep.subr.mxu0 0.0
      %2998 = vmatpush1.msra.mxu0 %v2247
      %2999 = vmatprep.subr.mxu0 0.0
      %3000 = vmatpush1.msra.mxu0 %v2248
      %3001 = vmatprep.subr.mxu0 0.0
      %3002 = vmatpush1.msra.mxu0 %v2249
      %3003 = vmatprep.subr.mxu0 0.0
      %3004 = vmatpush1.msra.mxu0 %v2250
      %3005 = vmatprep.subr.mxu0 0.0
      %3006 = vmatpush1.msra.mxu0 %v2251
      %3007 = vmatprep.subr.mxu0 0.0
      %3008 = vmatpush1.msra.mxu0 %v2252
      %3009 = vmatprep.subr.mxu0 0.0
      %3010 = vmatpush1.msra.mxu0 %v2253
      %3011 = vmatprep.subr.mxu0 0.0
      %3012 = vmatpush1.msra.mxu0 %v2254
      %3013 = vmatprep.subr.mxu0 0.0
      %3014 = vmatpush1.msra.mxu0 %v2255
      %3015 = vmatprep.subr.mxu0 0.0
      %3016 = vmatpush1.msra.mxu0 %v2256
      %3017 = vmatprep.subr.mxu0 0.0
      %3018 = vmatpush1.msra.mxu0 %v2257
      %3019 = vmatprep.subr.mxu0 0.0
      %3020 = vmatpush1.msra.mxu0 %v2258
      %3021 = vmatprep.subr.mxu0 0.0
      %3022 = vmatpush1.msra.mxu0 %v2259
      %3023 = vmatprep.subr.mxu0 0.0
      %3024 = vmatpush1.msra.mxu0 %v2260
      %3025 = vmatprep.subr.mxu0 0.0
      %3026 = vmatpush1.msra.mxu0 %v2261
      %3027 = vmatprep.subr.mxu0 0.0
      %3028 = vmatpush1.msra.mxu0 %v2262
      %3029 = vmatprep.subr.mxu0 0.0
      %3030 = vmatpush1.msra.mxu0 %v2263
      %3031 = vmatprep.subr.mxu0 0.0
      %3032 = vmatpush1.msra.mxu0 %v2264
      %3033 = vmatprep.subr.mxu0 0.0
      %3034 = vmatpush1.msra.mxu0 %v2265
      %3035 = vmatprep.subr.mxu0 0.0
      %3036 = vmatpush1.msra.mxu0 %v2266
      %3037 = vmatprep.subr.mxu0 0.0
      %3038 = vmatpush1.msra.mxu0 %v2267
      %3039 = vmatprep.subr.mxu0 0.0
      %3040 = vmatpush1.msra.mxu0 %v2268
      %3041 = vmatprep.subr.mxu0 0.0
      %3042 = vmatpush1.msra.mxu0 %v2269
      %3043 = vmatprep.mubr.f32.mxu0 %v2397
      %3044 = vmatmul.mubr.f32.gmra.mrb[0].mxu0 %v2389
      %v3045 = vpop.f32.mrb[0].mxu0
      %v3046 = vadd.f32 %v2976, %v3045
      %v3047 = vpop.f32.mrb[0].mxu0
      %3048 = vdwg.mxu0
      %3049 = vmatprep.subr.mxu0 0.0
      %3050 = vmatpush1.msra.mxu0 %v2270
      %3051 = vmatprep.subr.mxu0 0.0
      %3052 = vmatpush1.msra.mxu0 %v2271
      %3053 = vmatprep.subr.mxu0 0.0
      %3054 = vmatpush1.msra.mxu0 %v2272
      %3055 = vmatprep.subr.mxu0 0.0
      %3056 = vmatpush1.msra.mxu0 %v2273
      %3057 = vmatprep.subr.mxu0 0.0
      %3058 = vmatpush1.msra.mxu0 %v2274
      %3059 = vmatprep.subr.mxu0 0.0
      %3060 = vmatpush1.msra.mxu0 %v2275
      %3061 = vmatprep.subr.mxu0 0.0
      %3062 = vmatpush1.msra.mxu0 %v2276
      %3063 = vmatprep.subr.mxu0 0.0
      %3064 = vmatpush1.msra.mxu0 %v2277
      %3065 = vmatprep.subr.mxu0 0.0
      %3066 = vmatpush1.msra.mxu0 %v2278
      %3067 = vmatprep.subr.mxu0 0.0
      %3068 = vmatpush1.msra.mxu0 %v2279
      %3069 = vmatprep.subr.mxu0 0.0
      %3070 = vmatpush1.msra.mxu0 %v2280
      %3071 = vmatprep.subr.mxu0 0.0
      %3072 = vmatpush1.msra.mxu0 %v2281
      %3073 = vmatprep.subr.mxu0 0.0
      %3074 = vmatpush1.msra.mxu0 %v2282
      %3075 = vmatprep.subr.mxu0 0.0
      %3076 = vmatpush1.msra.mxu0 %v2283
      %3077 = vmatprep.subr.mxu0 0.0
      %3078 = vmatpush1.msra.mxu0 %v2284
      %3079 = vmatprep.subr.mxu0 0.0
      %3080 = vmatpush1.msra.mxu0 %v2285
      %3081 = vmatprep.subr.mxu0 0.0
      %3082 = vmatpush1.msra.mxu0 %v2286
      %3083 = vmatprep.subr.mxu0 0.0
      %3084 = vmatpush1.msra.mxu0 %v2287
      %3085 = vmatprep.subr.mxu0 0.0
      %3086 = vmatpush1.msra.mxu0 %v2288
      %3087 = vmatprep.subr.mxu0 0.0
      %3088 = vmatpush1.msra.mxu0 %v2289
      %3089 = vmatprep.subr.mxu0 0.0
      %3090 = vmatpush1.msra.mxu0 %v2290
      %3091 = vmatprep.subr.mxu0 0.0
      %3092 = vmatpush1.msra.mxu0 %v2291
      %3093 = vmatprep.subr.mxu0 0.0
      %3094 = vmatpush1.msra.mxu0 %v2292
      %3095 = vmatprep.subr.mxu0 0.0
      %3096 = vmatpush1.msra.mxu0 %v2293
      %3097 = vmatprep.subr.mxu0 0.0
      %3098 = vmatpush1.msra.mxu0 %v2294
      %3099 = vmatprep.subr.mxu0 0.0
      %3100 = vmatpush1.msra.mxu0 %v2295
      %3101 = vmatprep.subr.mxu0 0.0
      %3102 = vmatpush1.msra.mxu0 %v2296
      %3103 = vmatprep.subr.mxu0 0.0
      %3104 = vmatpush1.msra.mxu0 %v2297
      %3105 = vmatprep.subr.mxu0 0.0
      %3106 = vmatpush1.msra.mxu0 %v2298
      %3107 = vmatprep.subr.mxu0 0.0
      %3108 = vmatpush1.msra.mxu0 %v2299
      %3109 = vmatprep.subr.mxu0 0.0
      %3110 = vmatpush1.msra.mxu0 %v2300
      %3111 = vmatprep.subr.mxu0 0.0
      %3112 = vmatpush1.msra.mxu0 %v2301
      %3113 = vmatprep.mubr.f32.mxu0 %v2398
      %3114 = vmatmul.mubr.f32.gmra.mrb[0].mxu0 %v2396
      %v3115 = vpop.f32.mrb[0].mxu0
      %v3116 = vadd.f32 %v3046, %v3115
      %v3117 = vpop.f32.mrb[0].mxu0
      %3118 = vdwg.mxu0
      %vm3119 = vcmask 254976
      %3120 = vst.msk [vmem:[%s302] sm:$0x3] %vm3119, %v3116
      %p3121 = scmp.lt.s32.totalorder %s19, 1
      %s3122 = scalar_select %p3121, %s19, 1
      %s3123 = smul.addr %s3122, 2
      %s3124 = scalar_lea.vmem %s8, %s3123
      // Predicated region
      $region53: #{conv_net_forward.2} parent=51 // pred_check
        %p3125 = pneg %p210
      $region54: #{conv_net_forward.2} parent=51 // pred_check_branch
        %3127 = sbr.rel (%p3125) target = $region56
      $region55: #{conv_net_forward.2} parent=51 // pred_region
        _
      $region56: #{conv_net_forward.2} parent=51 // pred_fallthru
        _
    $region52: #{conv_net_forward.2} parent=5 // pred_fallthru
      _
    %p3128 = scmp.le.s32.totalorder 2, %s14
    // Predicated region
    $region57: #{conv_net_forward.2} parent=5 // pred_check
      %p3129 = pneg %p3128
    $region58: #{conv_net_forward.2} parent=5 // pred_check_branch
      %3131 = sbr.rel (%p3129) target = $region60
    $region59: #{conv_net_forward.2} parent=5 // pred_region
      %s3132 = ssub.s32 %s14, 2
      // Predicated region
      $region61: #{conv_net_forward.2} parent=59 // pred_check
        %p3133 = pneg %p216
      $region62: #{conv_net_forward.2} parent=59 // pred_check_branch
        %3135 = sbr.rel (%p3133) target = $region64
      $region63: #{conv_net_forward.2} parent=59 // pred_region
        %p3136 = scmp.lt.s32.totalorder %s20, 1
        %s3137 = scalar_select %p3136, %s20, 1
        %s3138 = smul.addr %s3137, 2
        %s3139 = scalar_lea.vmem %s8, %s3138
      $region64: #{conv_net_forward.2} parent=59 // pred_fallthru
        _
    $region60: #{conv_net_forward.2} parent=5 // pred_fallthru
      _
  $region6: #{conv_net_forward.2} parent=0 // loop_footer
    %s18 = sadd.s32 1, %s14
  $region7: #{conv_net_forward.2} parent=0 // loop_footer_branch
    %13 = sbr.rel target = $region3
  $region8: #{conv_net_forward.2} parent=0 // loop_exit
    _

</llo_original>
